<compile_context>
chip_gen: v7x
topology: tpu7x:2x2x1
jax: 0.10.0
libtpu: 0.0.40
codegen_flags: <defaults>
</compile_context>

<pallas_src>
import functools
import math

import jax
import jax.numpy as jnp
from jax import lax
from jax.experimental import pallas as pl
from jax.experimental.pallas import tpu as pltpu


# ----------------------------------------------------------------------------
# Fused Pallas kernel: one grid step == one batch element, end to end.
# ----------------------------------------------------------------------------

def _layernorm(x, g, b, eps=1e-5):
    mu = jnp.mean(x, axis=-1, keepdims=True)
    xc = x - mu
    var = jnp.mean(xc * xc, axis=-1, keepdims=True)
    return xc * lax.rsqrt(var + eps) * g + b


def _transvg_kernel(x_ref, bias_ref,
                    hmask_ref, w_in_ref, pos_ref,
                    wq_ref, bq_ref, wk_ref, bk_ref, wv_ref, bv_ref,
                    wo_ref, bo_ref, ln1g_ref, ln1b_ref,
                    wff1_ref, bff1_ref, wff2_ref, bff2_ref,
                    ln2g_ref, ln2b_ref,
                    bw1_ref, bb1_ref, bw2_ref, bb2_ref, bw3_ref, bb3_ref,
                    out_ref, *, hidden, nhead, num_layers):
    H = hidden
    f32 = jnp.float32
    bf16 = jnp.bfloat16
    Lp = pos_ref.shape[0]

    def mm(a, b):
        # activations cast to bf16, weights already bf16, f32 accumulation.
        return jnp.dot(a.astype(bf16), b, preferred_element_type=f32)

    # ---- layer-invariant values hoisted once (no per-layer re-broadcast/cast)
    pos = pos_ref[...]                                       # [Lp, H]     f32
    hmask_f = hmask_ref[...]                                 # [nH*Lp, H]  f32
    hmask_bf = hmask_f.astype(bf16)
    bias_full = jnp.broadcast_to(bias_ref[...], (Lp, nhead * Lp))

    # reg-token lookup + text_proj + visu_proj (+ biases) in ONE matmul.
    src = mm(x_ref[...], w_in_ref[...])                      # [Lp, H] f32

    for l in range(num_layers):
        xp = src + pos
        # separate Q/K/V projections (no lane slicing); 1/sqrt(Dh) folded in Wq.
        q = mm(xp, wq_ref[l]) + bq_ref[l]                    # [Lp, H]
        k = mm(xp, wk_ref[l]) + bk_ref[l]                    # [Lp, H]
        v = mm(src, wv_ref[l]) + bv_ref[l]                   # [Lp, H]

        # Block-diagonal per-head K/V stacks: head h occupies sublane rows
        # [h*Lp:(h+1)*Lp] with only its Dh feature columns non-zero.
        k_bd = (jnp.concatenate([k] * nhead, axis=0) * hmask_f).astype(bf16)
        v_bd = (jnp.concatenate([v] * nhead, axis=0) * hmask_f).astype(bf16)

        # Scores for ALL heads in one lane-dense matmul: [Lp, nhead*Lp].
        s = lax.dot_general(q.astype(bf16), k_bd,
                            (((1,), (1,)), ((), ())),
                            preferred_element_type=f32)
        s = s + bias_full
        m = jnp.max(s, axis=-1, keepdims=True)               # shared max (stability)
        p = jnp.exp(s - m)
        p_bf = p.astype(bf16)
        # per-head denominators replicated over each head's Dh feature columns
        den = jnp.dot(p_bf, hmask_bf, preferred_element_type=f32)  # [Lp, H]
        # weighted values, already head-concatenated along features
        o = jnp.dot(p_bf, v_bd, preferred_element_type=f32)        # [Lp, H]
        attn = o * pl.reciprocal(den, approx=True)
        attn = mm(attn, wo_ref[l]) + bo_ref[l]               # single out-proj matmul

        # post-norm residual blocks (DETR encoder layer, eval mode).
        x1 = _layernorm(src + attn, ln1g_ref[l], ln1b_ref[l])
        hdn = jnp.maximum(mm(x1, wff1_ref[l]) + bff1_ref[l], 0.0)
        ff = mm(hdn, wff2_ref[l]) + bff2_ref[l]
        src = _layernorm(x1 + ff, ln2g_ref[l], ln2b_ref[l])

    # bbox MLP head on the reg token (sequence position 0) + sigmoid.
    vg = src[0:1, :]                                         # [1, H]
    hb = jnp.maximum(mm(vg, bw1_ref[...]) + bb1_ref[...], 0.0)
    hb = jnp.maximum(mm(hb, bw2_ref[...]) + bb2_ref[...], 0.0)
    y = mm(hb, bw3_ref[...]) + bb3_ref[...]                  # [1, 128] lane-dense
    out_ref[...] = (1.0 / (1.0 + jnp.exp(-y))).astype(out_ref.dtype)


# ----------------------------------------------------------------------------
# Parameter construction (deterministic, synthetic)
# ----------------------------------------------------------------------------

def _w(key, shape, scale=0.02):
    return (scale * jax.random.normal(key, shape)).astype(jnp.float32)


def init_params(key, *, hidden, nhead, ff_dim, num_layers,
                c_text, c_visu, num_total):
    keys = iter(jax.random.split(key, 64))
    params = {
        "vl_pos_embed": _w(next(keys), (num_total, hidden)),
        "reg_token": _w(next(keys), (1, hidden)),
        "visu_proj_w": _w(next(keys), (c_visu, hidden)),
        "visu_proj_b": jnp.zeros((1, hidden), jnp.float32),
        "text_proj_w": _w(next(keys), (c_text, hidden)),
        "text_proj_b": jnp.zeros((1, hidden), jnp.float32),
        "layers": [],
        "bbox": {
            "w1": _w(next(keys), (hidden, hidden)),
            "b1": jnp.zeros((1, hidden), jnp.float32),
            "w2": _w(next(keys), (hidden, hidden)),
            "b2": jnp.zeros((1, hidden), jnp.float32),
            "w3": _w(next(keys), (hidden, 4)),
            "b3": jnp.zeros((1, 4), jnp.float32),
        },
    }
    for _ in range(num_layers):
        lyr = {
            "wq": _w(next(keys), (hidden, hidden)),
            "bq": jnp.zeros((1, hidden), jnp.float32),
            "wk": _w(next(keys), (hidden, hidden)),
            "bk": jnp.zeros((1, hidden), jnp.float32),
            "wv": _w(next(keys), (hidden, hidden)),
            "bv": jnp.zeros((1, hidden), jnp.float32),
            "wo": _w(next(keys), (hidden, hidden)),
            "bo": jnp.zeros((1, hidden), jnp.float32),
            "ln1_g": jnp.ones((1, hidden), jnp.float32),
            "ln1_b": jnp.zeros((1, hidden), jnp.float32),
            "wff1": _w(next(keys), (hidden, ff_dim)),
            "bff1": jnp.zeros((1, ff_dim), jnp.float32),
            "wff2": _w(next(keys), (ff_dim, hidden)),
            "bff2": jnp.zeros((1, hidden), jnp.float32),
            "ln2_g": jnp.ones((1, hidden), jnp.float32),
            "ln2_b": jnp.zeros((1, hidden), jnp.float32),
        }
        params["layers"].append(lyr)
    return params


# ----------------------------------------------------------------------------
# TransVG forward (thin wrapper: weight stacking + one pallas_call)
# ----------------------------------------------------------------------------

def transvg_forward(params, cfg, text_src, text_mask, visu_src, visu_mask):
    """
    text_src : [B, Lt, Ct]   text backbone features (batch-first)
    text_mask: [B, Lt]       float, 1.0 == padded token
    visu_src : [Lv, B, Cv]   visual backbone features (seq-first, DETR-style)
    visu_mask: [B, Lv]       float, 1.0 == padded token
    returns  : [B, 4]        sigmoid bbox predictions
    """
    H, nH = cfg["hidden"], cfg["nhead"]
    assert H % nH == 0
    Dh = H // nH
    f32, bf16 = jnp.float32, jnp.bfloat16
    B, Lt, Ct = text_src.shape
    Lv, _, Cv = visu_src.shape
    L = 1 + Lt + Lv
    Lp = ((L + 7) // 8) * 8                       # sublane-aligned seq length
    C_in = 1 + Ct + 1 + Cv + 1                    # one-hot / feat / bias columns
    Cp = ((C_in + 127) // 128) * 128              # lane-aligned contraction dim
    OUTP = 128                                    # lane-dense output width

    # --- fused "embedding" input rows: [reg one-hot | text feat,1 | visu feat,1]
    visu_b = jnp.transpose(visu_src, (1, 0, 2))                      # [B, Lv, Cv]
    reg_rows = jnp.zeros((B, 1, C_in), f32).at[:, :, 0].set(1.0)
    text_rows = jnp.concatenate(
        [jnp.zeros((B, Lt, 1), f32), text_src, jnp.ones((B, Lt, 1), f32),
         jnp.zeros((B, Lt, Cv + 1), f32)], axis=-1)
    visu_rows = jnp.concatenate(
        [jnp.zeros((B, Lv, 1 + Ct + 1), f32), visu_b,
         jnp.ones((B, Lv, 1), f32)], axis=-1)
    x_in = jnp.concatenate([reg_rows, text_rows, visu_rows], axis=1)  # [B, L, C_in]
    x_in = jnp.pad(x_in, ((0, 0), (0, Lp - L), (0, Cp - C_in)))       # [B, Lp, Cp]

    # matching block-stacked input projection weight [Cp, H] (bf16)
    w_in = jnp.concatenate(
        [params["reg_token"], params["text_proj_w"], params["text_proj_b"],
         params["visu_proj_w"], params["visu_proj_b"]], axis=0)
    w_in = jnp.pad(w_in, ((0, Cp - C_in), (0, 0))).astype(bf16)

    # --- additive key-padding bias, tiled lane-dense across heads: [B, 1, nH*Lp]
    vl_mask = jnp.concatenate(
        [jnp.zeros((B, 1), f32), text_mask, visu_mask], axis=1)       # [B, L]
    key_bias = jnp.pad(vl_mask * (-1e9), ((0, 0), (0, Lp - L)),
                       constant_values=-1e9)                          # [B, Lp]
    attn_bias = jnp.tile(key_bias, (1, nH))[:, None, :]               # [B,1,nH*Lp]

    # --- per-head feature-column mask [nH*Lp, H] (block-diagonal head select)
    row_head = jnp.repeat(jnp.arange(nH), Lp)
    col_head = jnp.arange(H) // Dh
    hmask = (row_head[:, None] == col_head[None, :]).astype(f32)

    pos = jnp.pad(params["vl_pos_embed"], ((0, Lp - L), (0, 0)))      # [Lp, H]

    # --- stacked per-layer weights; matmul weights in bf16, rest f32
    lyrs = params["layers"]
    scale = 1.0 / math.sqrt(Dh)
    wq = jnp.stack([l["wq"] * scale for l in lyrs]).astype(bf16)      # scale folded
    bq = jnp.stack([l["bq"] * scale for l in lyrs])
    wk = jnp.stack([l["wk"] for l in lyrs]).astype(bf16)
    bk = jnp.stack([l["bk"] for l in lyrs])
    wv = jnp.stack([l["wv"] for l in lyrs]).astype(bf16)
    bv = jnp.stack([l["bv"] for l in lyrs])
    wo = jnp.stack([l["wo"] for l in lyrs]).astype(bf16)
    bo = jnp.stack([l["bo"] for l in lyrs])
    ln1g = jnp.stack([l["ln1_g"] for l in lyrs])
    ln1b = jnp.stack([l["ln1_b"] for l in lyrs])
    wff1 = jnp.stack([l["wff1"] for l in lyrs]).astype(bf16)
    bff1 = jnp.stack([l["bff1"] for l in lyrs])
    wff2 = jnp.stack([l["wff2"] for l in lyrs]).astype(bf16)
    bff2 = jnp.stack([l["bff2"] for l in lyrs])
    ln2g = jnp.stack([l["ln2_g"] for l in lyrs])
    ln2b = jnp.stack([l["ln2_b"] for l in lyrs])
    bb = params["bbox"]
    bw1 = bb["w1"].astype(bf16)
    bb1 = bb["b1"]
    bw2 = bb["w2"].astype(bf16)
    bb2 = bb["b2"]
    bw3 = jnp.pad(bb["w3"], ((0, 0), (0, OUTP - 4))).astype(bf16)     # lane-dense
    bb3 = jnp.pad(bb["b3"], ((0, 0), (0, OUTP - 4)))

    weights = (hmask, w_in, pos, wq, bq, wk, bk, wv, bv, wo, bo,
               ln1g, ln1b, wff1, bff1, wff2, bff2, ln2g, ln2b,
               bw1, bb1, bw2, bb2, bw3, bb3)

    def rep(arr):
        zeros = (0,) * arr.ndim
        return pl.BlockSpec(arr.shape, lambda b: zeros)

    # --- advisory cost estimate so XLA schedules surrounding ops around us
    nL = len(lyrs)
    FF = int(wff1.shape[-1])
    mm2 = lambda m, k, n: 2 * m * k * n
    per_layer = (3 * mm2(Lp, H, H)                 # Q/K/V projections
                 + mm2(Lp, H, nH * Lp)             # scores (all heads)
                 + 2 * mm2(Lp, nH * Lp, H)         # denominators + weighted values
                 + mm2(Lp, H, H)                   # output projection
                 + mm2(Lp, H, FF) + mm2(Lp, FF, H))
    flops = B * (mm2(Lp, Cp, H) + nL * per_layer
                 + 2 * mm2(1, H, H) + mm2(1, H, OUTP))
    transcendentals = B * (nL * Lp * nH * Lp + OUTP)
    call_args = (x_in, attn_bias) + weights
    bytes_accessed = int(sum(int(a.size) * a.dtype.itemsize for a in call_args)
                         + B * OUTP * 4)

    kernel = functools.partial(_transvg_kernel, hidden=H, nhead=nH,
                               num_layers=nL)

    pred = pl.pallas_call(
        kernel,
        grid=(B,),
        out_shape=jax.ShapeDtypeStruct((B, 1, OUTP), f32),
        in_specs=[pl.BlockSpec((None, Lp, Cp), lambda b: (b, 0, 0)),
                  pl.BlockSpec((None, 1, nH * Lp), lambda b: (b, 0, 0))]
                 + [rep(w) for w in weights],
        out_specs=pl.BlockSpec((None, 1, OUTP), lambda b: (b, 0, 0)),
        compiler_params=pltpu.CompilerParams(
            dimension_semantics=("parallel",)),   # shard batch on v7x's 2 TCs
        cost_estimate=pl.CostEstimate(flops=flops,
                                      transcendentals=transcendentals,
                                      bytes_accessed=bytes_accessed),
    )(x_in, attn_bias, *weights)
    return pred.reshape(B, OUTP)[:, :4]


# ----------------------------------------------------------------------------
# Main
# ----------------------------------------------------------------------------

if __name__ == "__main__":
    # Small synthetic configuration consistent with TransVG's forward:
    #   num_visu_token = (imsize / 32)**2 = 16  (imsize = 128)
    #   num_text_token = max_query_len     = 8
    #   vl_hidden_dim                      = 32
    B = 2
    HIDDEN = 32
    NHEAD = 4
    FF_DIM = 64
    NUM_LAYERS = 2
    L_TEXT = 8
    L_VISU = 16
    C_TEXT = 64   # textmodel.num_channels
    C_VISU = 48   # visumodel.num_channels
    NUM_TOTAL = L_VISU + L_TEXT + 1

    cfg = {"hidden": HIDDEN, "nhead": NHEAD}

    root = jax.random.PRNGKey(0)
    k_params, k_t, k_v, k_m1, k_m2 = jax.random.split(root, 5)

    params = init_params(
        k_params, hidden=HIDDEN, nhead=NHEAD, ff_dim=FF_DIM,
        num_layers=NUM_LAYERS, c_text=C_TEXT, c_visu=C_VISU,
        num_total=NUM_TOTAL)

    # Synthetic backbone outputs (see TODO(synk) at top).
    text_src = jax.random.normal(k_t, (B, L_TEXT, C_TEXT), jnp.float32)
    visu_src = jax.random.normal(k_v, (L_VISU, B, C_VISU), jnp.float32)
    text_mask = (jax.random.uniform(k_m1, (B, L_TEXT)) > 0.8).astype(jnp.float32)
    visu_mask = (jax.random.uniform(k_m2, (B, L_VISU)) > 0.9).astype(jnp.float32)

    pred_box = transvg_forward(params, cfg, text_src, text_mask,
                               visu_src, visu_mask)
    pred_box = jax.block_until_ready(pred_box)

    assert pred_box.shape == (B, 4)
    assert bool(jnp.all(jnp.isfinite(pred_box)))
    assert bool(jnp.all((pred_box >= 0.0) & (pred_box <= 1.0)))
    print("KERNEL_OK")
</pallas_src>

<mosaic_0001>
module attributes {stable_mosaic.version = 11 : i64} {
  func.func @_transvg_kernel(%arg0: i32, %arg1: memref<1x32x128xf32, #tpu.memory_space<vmem>>, %arg2: memref<1x1x128xf32, #tpu.memory_space<vmem>>, %arg3: memref<128x32xf32, #tpu.memory_space<vmem>>, %arg4: memref<128x32xbf16, #tpu.memory_space<vmem>>, %arg5: memref<32x32xf32, #tpu.memory_space<vmem>>, %arg6: memref<2x32x32xbf16, #tpu.memory_space<vmem>>, %arg7: memref<2x1x32xf32, #tpu.memory_space<vmem>>, %arg8: memref<2x32x32xbf16, #tpu.memory_space<vmem>>, %arg9: memref<2x1x32xf32, #tpu.memory_space<vmem>>, %arg10: memref<2x32x32xbf16, #tpu.memory_space<vmem>>, %arg11: memref<2x1x32xf32, #tpu.memory_space<vmem>>, %arg12: memref<2x32x32xbf16, #tpu.memory_space<vmem>>, %arg13: memref<2x1x32xf32, #tpu.memory_space<vmem>>, %arg14: memref<2x1x32xf32, #tpu.memory_space<vmem>>, %arg15: memref<2x1x32xf32, #tpu.memory_space<vmem>>, %arg16: memref<2x32x64xbf16, #tpu.memory_space<vmem>>, %arg17: memref<2x1x64xf32, #tpu.memory_space<vmem>>, %arg18: memref<2x64x32xbf16, #tpu.memory_space<vmem>>, %arg19: memref<2x1x32xf32, #tpu.memory_space<vmem>>, %arg20: memref<2x1x32xf32, #tpu.memory_space<vmem>>, %arg21: memref<2x1x32xf32, #tpu.memory_space<vmem>>, %arg22: memref<32x32xbf16, #tpu.memory_space<vmem>>, %arg23: memref<1x32xf32, #tpu.memory_space<vmem>>, %arg24: memref<32x32xbf16, #tpu.memory_space<vmem>>, %arg25: memref<1x32xf32, #tpu.memory_space<vmem>>, %arg26: memref<32x128xbf16, #tpu.memory_space<vmem>>, %arg27: memref<1x128xf32, #tpu.memory_space<vmem>>, %arg28: memref<1x1x128xf32, #tpu.memory_space<vmem>>) attributes {dimension_semantics = [#tpu.dimension_semantics<parallel>], iteration_bounds = array<i64: 2>, scalar_prefetch = 0 : i64, scratch_operands = 0 : i64, tpu.core_type = #tpu.core_type<tc>, window_params = [{transform_indices = @transform_0, window_bounds = array<i64: 1, 32, 128>}, {transform_indices = @transform_1, window_bounds = array<i64: 1, 1, 128>}, {pipeline_mode = #tpu.pipeline_mode<synchronous>, transform_indices = @transform_2, window_bounds = array<i64: 128, 32>}, {pipeline_mode = #tpu.pipeline_mode<synchronous>, transform_indices = @transform_3, window_bounds = array<i64: 128, 32>}, {pipeline_mode = #tpu.pipeline_mode<synchronous>, transform_indices = @transform_4, window_bounds = array<i64: 32, 32>}, {pipeline_mode = #tpu.pipeline_mode<synchronous>, transform_indices = @transform_5, window_bounds = array<i64: 2, 32, 32>}, {pipeline_mode = #tpu.pipeline_mode<synchronous>, transform_indices = @transform_6, window_bounds = array<i64: 2, 1, 32>}, {pipeline_mode = #tpu.pipeline_mode<synchronous>, transform_indices = @transform_7, window_bounds = array<i64: 2, 32, 32>}, {pipeline_mode = #tpu.pipeline_mode<synchronous>, transform_indices = @transform_8, window_bounds = array<i64: 2, 1, 32>}, {pipeline_mode = #tpu.pipeline_mode<synchronous>, transform_indices = @transform_9, window_bounds = array<i64: 2, 32, 32>}, {pipeline_mode = #tpu.pipeline_mode<synchronous>, transform_indices = @transform_10, window_bounds = array<i64: 2, 1, 32>}, {pipeline_mode = #tpu.pipeline_mode<synchronous>, transform_indices = @transform_11, window_bounds = array<i64: 2, 32, 32>}, {pipeline_mode = #tpu.pipeline_mode<synchronous>, transform_indices = @transform_12, window_bounds = array<i64: 2, 1, 32>}, {pipeline_mode = #tpu.pipeline_mode<synchronous>, transform_indices = @transform_13, window_bounds = array<i64: 2, 1, 32>}, {pipeline_mode = #tpu.pipeline_mode<synchronous>, transform_indices = @transform_14, window_bounds = array<i64: 2, 1, 32>}, {pipeline_mode = #tpu.pipeline_mode<synchronous>, transform_indices = @transform_15, window_bounds = array<i64: 2, 32, 64>}, {pipeline_mode = #tpu.pipeline_mode<synchronous>, transform_indices = @transform_16, window_bounds = array<i64: 2, 1, 64>}, {pipeline_mode = #tpu.pipeline_mode<synchronous>, transform_indices = @transform_17, window_bounds = array<i64: 2, 64, 32>}, {pipeline_mode = #tpu.pipeline_mode<synchronous>, transform_indices = @transform_18, window_bounds = array<i64: 2, 1, 32>}, {pipeline_mode = #tpu.pipeline_mode<synchronous>, transform_indices = @transform_19, window_bounds = array<i64: 2, 1, 32>}, {pipeline_mode = #tpu.pipeline_mode<synchronous>, transform_indices = @transform_20, window_bounds = array<i64: 2, 1, 32>}, {pipeline_mode = #tpu.pipeline_mode<synchronous>, transform_indices = @transform_21, window_bounds = array<i64: 32, 32>}, {pipeline_mode = #tpu.pipeline_mode<synchronous>, transform_indices = @transform_22, window_bounds = array<i64: 1, 32>}, {pipeline_mode = #tpu.pipeline_mode<synchronous>, transform_indices = @transform_23, window_bounds = array<i64: 32, 32>}, {pipeline_mode = #tpu.pipeline_mode<synchronous>, transform_indices = @transform_24, window_bounds = array<i64: 1, 32>}, {pipeline_mode = #tpu.pipeline_mode<synchronous>, transform_indices = @transform_25, window_bounds = array<i64: 32, 128>}, {pipeline_mode = #tpu.pipeline_mode<synchronous>, transform_indices = @transform_26, window_bounds = array<i64: 1, 128>}, {transform_indices = @transform_27, window_bounds = array<i64: 1, 1, 128>}]} {
    %c0 = arith.constant 0 : index
    %c0_0 = arith.constant 0 : index
    %0 = vector.load %arg5[%c0, %c0_0] : memref<32x32xf32, #tpu.memory_space<vmem>>, vector<32x32xf32>
    %c0_1 = arith.constant 0 : index
    %c0_2 = arith.constant 0 : index
    %1 = vector.load %arg3[%c0_1, %c0_2] : memref<128x32xf32, #tpu.memory_space<vmem>>, vector<128x32xf32>
    %2 = arith.truncf %1 : vector<128x32xf32> to vector<128x32xbf16>
    %c0_3 = arith.constant 0 : index
    %c0_4 = arith.constant 0 : index
    %c0_5 = arith.constant 0 : index
    %3 = vector.load %arg2[%c0_3, %c0_4, %c0_5] : memref<1x1x128xf32, #tpu.memory_space<vmem>>, vector<1x1x128xf32>
    %4 = vector.shape_cast %3 : vector<1x1x128xf32> to vector<1x128xf32>
    %5 = vector.shape_cast %4 : vector<1x128xf32> to vector<1x128xf32>
    %6 = vector.broadcast %5 : vector<1x128xf32> to vector<32x128xf32>
    %c0_6 = arith.constant 0 : index
    %c0_7 = arith.constant 0 : index
    %c0_8 = arith.constant 0 : index
    %7 = vector.load %arg1[%c0_6, %c0_7, %c0_8] : memref<1x32x128xf32, #tpu.memory_space<vmem>>, vector<1x32x128xf32>
    %8 = vector.shape_cast %7 : vector<1x32x128xf32> to vector<32x128xf32>
    %c0_9 = arith.constant 0 : index
    %c0_10 = arith.constant 0 : index
    %9 = vector.load %arg4[%c0_9, %c0_10] : memref<128x32xbf16, #tpu.memory_space<vmem>>, vector<128x32xbf16>
    %10 = arith.truncf %8 : vector<32x128xf32> to vector<32x128xbf16>
    %cst = arith.constant dense<0.000000e+00> : vector<32x32xf32>
    %11 = tpu.matmul %10, %9, %cst {dimension_numbers = #tpu.dot_dimension_numbers<[1], [0], [0], [1], [0, 0, 1, 1], [], []>} : vector<32x128xbf16>, vector<128x32xbf16>, vector<32x32xf32> -> vector<32x32xf32>
    %12 = arith.addf %11, %0 : vector<32x32xf32>
    %c0_11 = arith.constant 0 : index
    %c0_12 = arith.constant 0 : index
    %c0_13 = arith.constant 0 : index
    %13 = vector.load %arg6[%c0_11, %c0_12, %c0_13] : memref<2x32x32xbf16, #tpu.memory_space<vmem>>, vector<1x32x32xbf16>
    %14 = vector.shape_cast %13 : vector<1x32x32xbf16> to vector<32x32xbf16>
    %15 = arith.truncf %12 : vector<32x32xf32> to vector<32x32xbf16>
    %cst_14 = arith.constant dense<0.000000e+00> : vector<32x32xf32>
    %16 = tpu.matmul %15, %14, %cst_14 {dimension_numbers = #tpu.dot_dimension_numbers<[1], [0], [0], [1], [0, 0, 1, 1], [], []>} : vector<32x32xbf16>, vector<32x32xbf16>, vector<32x32xf32> -> vector<32x32xf32>
    %c0_15 = arith.constant 0 : index
    %c0_16 = arith.constant 0 : index
    %c0_17 = arith.constant 0 : index
    %17 = vector.load %arg7[%c0_15, %c0_16, %c0_17] : memref<2x1x32xf32, #tpu.memory_space<vmem>>, vector<1x1x32xf32>
    %18 = vector.shape_cast %17 : vector<1x1x32xf32> to vector<1x32xf32>
    %19 = vector.broadcast %18 : vector<1x32xf32> to vector<32x32xf32>
    %20 = arith.addf %16, %19 : vector<32x32xf32>
    %c0_18 = arith.constant 0 : index
    %c0_19 = arith.constant 0 : index
    %c0_20 = arith.constant 0 : index
    %21 = vector.load %arg8[%c0_18, %c0_19, %c0_20] : memref<2x32x32xbf16, #tpu.memory_space<vmem>>, vector<1x32x32xbf16>
    %22 = vector.shape_cast %21 : vector<1x32x32xbf16> to vector<32x32xbf16>
    %23 = arith.truncf %12 : vector<32x32xf32> to vector<32x32xbf16>
    %cst_21 = arith.constant dense<0.000000e+00> : vector<32x32xf32>
    %24 = tpu.matmul %23, %22, %cst_21 {dimension_numbers = #tpu.dot_dimension_numbers<[1], [0], [0], [1], [0, 0, 1, 1], [], []>} : vector<32x32xbf16>, vector<32x32xbf16>, vector<32x32xf32> -> vector<32x32xf32>
    %c0_22 = arith.constant 0 : index
    %c0_23 = arith.constant 0 : index
    %c0_24 = arith.constant 0 : index
    %25 = vector.load %arg9[%c0_22, %c0_23, %c0_24] : memref<2x1x32xf32, #tpu.memory_space<vmem>>, vector<1x1x32xf32>
    %26 = vector.shape_cast %25 : vector<1x1x32xf32> to vector<1x32xf32>
    %27 = vector.broadcast %26 : vector<1x32xf32> to vector<32x32xf32>
    %28 = arith.addf %24, %27 : vector<32x32xf32>
    %c0_25 = arith.constant 0 : index
    %c0_26 = arith.constant 0 : index
    %c0_27 = arith.constant 0 : index
    %29 = vector.load %arg10[%c0_25, %c0_26, %c0_27] : memref<2x32x32xbf16, #tpu.memory_space<vmem>>, vector<1x32x32xbf16>
    %30 = vector.shape_cast %29 : vector<1x32x32xbf16> to vector<32x32xbf16>
    %31 = arith.truncf %11 : vector<32x32xf32> to vector<32x32xbf16>
    %cst_28 = arith.constant dense<0.000000e+00> : vector<32x32xf32>
    %32 = tpu.matmul %31, %30, %cst_28 {dimension_numbers = #tpu.dot_dimension_numbers<[1], [0], [0], [1], [0, 0, 1, 1], [], []>} : vector<32x32xbf16>, vector<32x32xbf16>, vector<32x32xf32> -> vector<32x32xf32>
    %c0_29 = arith.constant 0 : index
    %c0_30 = arith.constant 0 : index
    %c0_31 = arith.constant 0 : index
    %33 = vector.load %arg11[%c0_29, %c0_30, %c0_31] : memref<2x1x32xf32, #tpu.memory_space<vmem>>, vector<1x1x32xf32>
    %34 = vector.shape_cast %33 : vector<1x1x32xf32> to vector<1x32xf32>
    %35 = vector.broadcast %34 : vector<1x32xf32> to vector<32x32xf32>
    %36 = arith.addf %32, %35 : vector<32x32xf32>
    %37 = tpu.concatenate %28, %28, %28, %28 in 0 : vector<32x32xf32>, vector<32x32xf32>, vector<32x32xf32>, vector<32x32xf32> -> vector<128x32xf32>
    %38 = arith.mulf %37, %1 : vector<128x32xf32>
    %39 = arith.truncf %38 : vector<128x32xf32> to vector<128x32xbf16>
    %40 = tpu.concatenate %36, %36, %36, %36 in 0 : vector<32x32xf32>, vector<32x32xf32>, vector<32x32xf32>, vector<32x32xf32> -> vector<128x32xf32>
    %41 = arith.mulf %40, %1 : vector<128x32xf32>
    %42 = arith.truncf %41 : vector<128x32xf32> to vector<128x32xbf16>
    %43 = arith.truncf %20 : vector<32x32xf32> to vector<32x32xbf16>
    %cst_32 = arith.constant dense<0.000000e+00> : vector<32x128xf32>
    %44 = tpu.matmul %43, %39, %cst_32 {dimension_numbers = #tpu.dot_dimension_numbers<[1], [1], [0], [0], [0, 0, 1, 0], [], []>} : vector<32x32xbf16>, vector<128x32xbf16>, vector<32x128xf32> -> vector<32x128xf32>
    %45 = arith.addf %44, %6 : vector<32x128xf32>
    %cst_33 = arith.constant dense<0xFF800000> : vector<32xf32>
    %46 = vector.multi_reduction <maximumf>, %45, %cst_33 [1] : vector<32x128xf32> to vector<32xf32>
    %47 = vector.shape_cast %46 : vector<32xf32> to vector<32x1xf32>
    %48 = vector.broadcast %47 : vector<32x1xf32> to vector<32x128xf32>
    %49 = arith.subf %45, %48 : vector<32x128xf32>
    %50 = math.exp %49 : vector<32x128xf32>
    %51 = arith.truncf %50 : vector<32x128xf32> to vector<32x128xbf16>
    %cst_34 = arith.constant dense<0.000000e+00> : vector<32x32xf32>
    %52 = tpu.matmul %51, %2, %cst_34 {dimension_numbers = #tpu.dot_dimension_numbers<[1], [0], [0], [1], [0, 0, 1, 1], [], []>} : vector<32x128xbf16>, vector<128x32xbf16>, vector<32x32xf32> -> vector<32x32xf32>
    %cst_35 = arith.constant dense<0.000000e+00> : vector<32x32xf32>
    %53 = tpu.matmul %51, %42, %cst_35 {dimension_numbers = #tpu.dot_dimension_numbers<[1], [0], [0], [1], [0, 0, 1, 1], [], []>} : vector<32x128xbf16>, vector<128x32xbf16>, vector<32x32xf32> -> vector<32x32xf32>
    %54 = tpu.reciprocal %52 {approx = true} : vector<32x32xf32> -> vector<32x32xf32>
    %55 = arith.mulf %53, %54 : vector<32x32xf32>
    %c0_36 = arith.constant 0 : index
    %c0_37 = arith.constant 0 : index
    %c0_38 = arith.constant 0 : index
    %56 = vector.load %arg12[%c0_36, %c0_37, %c0_38] : memref<2x32x32xbf16, #tpu.memory_space<vmem>>, vector<1x32x32xbf16>
    %57 = vector.shape_cast %56 : vector<1x32x32xbf16> to vector<32x32xbf16>
    %58 = arith.truncf %55 : vector<32x32xf32> to vector<32x32xbf16>
    %cst_39 = arith.constant dense<0.000000e+00> : vector<32x32xf32>
    %59 = tpu.matmul %58, %57, %cst_39 {dimension_numbers = #tpu.dot_dimension_numbers<[1], [0], [0], [1], [0, 0, 1, 1], [], []>} : vector<32x32xbf16>, vector<32x32xbf16>, vector<32x32xf32> -> vector<32x32xf32>
    %c0_40 = arith.constant 0 : index
    %c0_41 = arith.constant 0 : index
    %c0_42 = arith.constant 0 : index
    %60 = vector.load %arg13[%c0_40, %c0_41, %c0_42] : memref<2x1x32xf32, #tpu.memory_space<vmem>>, vector<1x1x32xf32>
    %61 = vector.shape_cast %60 : vector<1x1x32xf32> to vector<1x32xf32>
    %62 = vector.broadcast %61 : vector<1x32xf32> to vector<32x32xf32>
    %63 = arith.addf %59, %62 : vector<32x32xf32>
    %64 = arith.addf %11, %63 : vector<32x32xf32>
    %c0_43 = arith.constant 0 : index
    %c0_44 = arith.constant 0 : index
    %c0_45 = arith.constant 0 : index
    %65 = vector.load %arg14[%c0_43, %c0_44, %c0_45] : memref<2x1x32xf32, #tpu.memory_space<vmem>>, vector<1x1x32xf32>
    %66 = vector.shape_cast %65 : vector<1x1x32xf32> to vector<1x32xf32>
    %c0_46 = arith.constant 0 : index
    %c0_47 = arith.constant 0 : index
    %c0_48 = arith.constant 0 : index
    %67 = vector.load %arg15[%c0_46, %c0_47, %c0_48] : memref<2x1x32xf32, #tpu.memory_space<vmem>>, vector<1x1x32xf32>
    %68 = vector.shape_cast %67 : vector<1x1x32xf32> to vector<1x32xf32>
    %cst_49 = arith.constant dense<0.000000e+00> : vector<32xf32>
    %69 = vector.multi_reduction <add>, %64, %cst_49 [1] : vector<32x32xf32> to vector<32xf32>
    %70 = vector.shape_cast %69 : vector<32xf32> to vector<32x1xf32>
    %cst_50 = arith.constant 3.200000e+01 : f32
    %71 = vector.broadcast %cst_50 : f32 to vector<32x1xf32>
    %72 = arith.divf %70, %71 : vector<32x1xf32>
    %73 = vector.broadcast %72 : vector<32x1xf32> to vector<32x32xf32>
    %74 = arith.subf %64, %73 : vector<32x32xf32>
    %75 = arith.mulf %74, %74 : vector<32x32xf32>
    %cst_51 = arith.constant dense<0.000000e+00> : vector<32xf32>
    %76 = vector.multi_reduction <add>, %75, %cst_51 [1] : vector<32x32xf32> to vector<32xf32>
    %77 = vector.shape_cast %76 : vector<32xf32> to vector<32x1xf32>
    %cst_52 = arith.constant 3.200000e+01 : f32
    %78 = vector.broadcast %cst_52 : f32 to vector<32x1xf32>
    %79 = arith.divf %77, %78 : vector<32x1xf32>
    %cst_53 = arith.constant 9.99999974E-6 : f32
    %80 = vector.broadcast %cst_53 : f32 to vector<32x1xf32>
    %81 = arith.addf %79, %80 : vector<32x1xf32>
    %82 = math.rsqrt %81 : vector<32x1xf32>
    %83 = vector.broadcast %82 : vector<32x1xf32> to vector<32x32xf32>
    %84 = arith.mulf %74, %83 : vector<32x32xf32>
    %85 = vector.broadcast %66 : vector<1x32xf32> to vector<32x32xf32>
    %86 = arith.mulf %84, %85 : vector<32x32xf32>
    %87 = vector.broadcast %68 : vector<1x32xf32> to vector<32x32xf32>
    %88 = arith.addf %86, %87 : vector<32x32xf32>
    %c0_54 = arith.constant 0 : index
    %c0_55 = arith.constant 0 : index
    %c0_56 = arith.constant 0 : index
    %89 = vector.load %arg16[%c0_54, %c0_55, %c0_56] : memref<2x32x64xbf16, #tpu.memory_space<vmem>>, vector<1x32x64xbf16>
    %90 = vector.shape_cast %89 : vector<1x32x64xbf16> to vector<32x64xbf16>
    %91 = arith.truncf %88 : vector<32x32xf32> to vector<32x32xbf16>
    %cst_57 = arith.constant dense<0.000000e+00> : vector<32x64xf32>
    %92 = tpu.matmul %91, %90, %cst_57 {dimension_numbers = #tpu.dot_dimension_numbers<[1], [0], [0], [1], [0, 0, 1, 1], [], []>} : vector<32x32xbf16>, vector<32x64xbf16>, vector<32x64xf32> -> vector<32x64xf32>
    %c0_58 = arith.constant 0 : index
    %c0_59 = arith.constant 0 : index
    %c0_60 = arith.constant 0 : index
    %93 = vector.load %arg17[%c0_58, %c0_59, %c0_60] : memref<2x1x64xf32, #tpu.memory_space<vmem>>, vector<1x1x64xf32>
    %94 = vector.shape_cast %93 : vector<1x1x64xf32> to vector<1x64xf32>
    %95 = vector.broadcast %94 : vector<1x64xf32> to vector<32x64xf32>
    %96 = arith.addf %92, %95 : vector<32x64xf32>
    %cst_61 = arith.constant 0.000000e+00 : f32
    %97 = vector.broadcast %cst_61 : f32 to vector<32x64xf32>
    %98 = arith.maximumf %96, %97 : vector<32x64xf32>
    %c0_62 = arith.constant 0 : index
    %c0_63 = arith.constant 0 : index
    %c0_64 = arith.constant 0 : index
    %99 = vector.load %arg18[%c0_62, %c0_63, %c0_64] : memref<2x64x32xbf16, #tpu.memory_space<vmem>>, vector<1x64x32xbf16>
    %100 = vector.shape_cast %99 : vector<1x64x32xbf16> to vector<64x32xbf16>
    %101 = arith.truncf %98 : vector<32x64xf32> to vector<32x64xbf16>
    %cst_65 = arith.constant dense<0.000000e+00> : vector<32x32xf32>
    %102 = tpu.matmul %101, %100, %cst_65 {dimension_numbers = #tpu.dot_dimension_numbers<[1], [0], [0], [1], [0, 0, 1, 1], [], []>} : vector<32x64xbf16>, vector<64x32xbf16>, vector<32x32xf32> -> vector<32x32xf32>
    %c0_66 = arith.constant 0 : index
    %c0_67 = arith.constant 0 : index
    %c0_68 = arith.constant 0 : index
    %103 = vector.load %arg19[%c0_66, %c0_67, %c0_68] : memref<2x1x32xf32, #tpu.memory_space<vmem>>, vector<1x1x32xf32>
    %104 = vector.shape_cast %103 : vector<1x1x32xf32> to vector<1x32xf32>
    %105 = vector.broadcast %104 : vector<1x32xf32> to vector<32x32xf32>
    %106 = arith.addf %102, %105 : vector<32x32xf32>
    %107 = arith.addf %88, %106 : vector<32x32xf32>
    %c0_69 = arith.constant 0 : index
    %c0_70 = arith.constant 0 : index
    %c0_71 = arith.constant 0 : index
    %108 = vector.load %arg20[%c0_69, %c0_70, %c0_71] : memref<2x1x32xf32, #tpu.memory_space<vmem>>, vector<1x1x32xf32>
    %109 = vector.shape_cast %108 : vector<1x1x32xf32> to vector<1x32xf32>
    %c0_72 = arith.constant 0 : index
    %c0_73 = arith.constant 0 : index
    %c0_74 = arith.constant 0 : index
    %110 = vector.load %arg21[%c0_72, %c0_73, %c0_74] : memref<2x1x32xf32, #tpu.memory_space<vmem>>, vector<1x1x32xf32>
    %111 = vector.shape_cast %110 : vector<1x1x32xf32> to vector<1x32xf32>
    %cst_75 = arith.constant dense<0.000000e+00> : vector<32xf32>
    %112 = vector.multi_reduction <add>, %107, %cst_75 [1] : vector<32x32xf32> to vector<32xf32>
    %113 = vector.shape_cast %112 : vector<32xf32> to vector<32x1xf32>
    %cst_76 = arith.constant 3.200000e+01 : f32
    %114 = vector.broadcast %cst_76 : f32 to vector<32x1xf32>
    %115 = arith.divf %113, %114 : vector<32x1xf32>
    %116 = vector.broadcast %115 : vector<32x1xf32> to vector<32x32xf32>
    %117 = arith.subf %107, %116 : vector<32x32xf32>
    %118 = arith.mulf %117, %117 : vector<32x32xf32>
    %cst_77 = arith.constant dense<0.000000e+00> : vector<32xf32>
    %119 = vector.multi_reduction <add>, %118, %cst_77 [1] : vector<32x32xf32> to vector<32xf32>
    %120 = vector.shape_cast %119 : vector<32xf32> to vector<32x1xf32>
    %cst_78 = arith.constant 3.200000e+01 : f32
    %121 = vector.broadcast %cst_78 : f32 to vector<32x1xf32>
    %122 = arith.divf %120, %121 : vector<32x1xf32>
    %cst_79 = arith.constant 9.99999974E-6 : f32
    %123 = vector.broadcast %cst_79 : f32 to vector<32x1xf32>
    %124 = arith.addf %122, %123 : vector<32x1xf32>
    %125 = math.rsqrt %124 : vector<32x1xf32>
    %126 = vector.broadcast %125 : vector<32x1xf32> to vector<32x32xf32>
    %127 = arith.mulf %117, %126 : vector<32x32xf32>
    %128 = vector.broadcast %109 : vector<1x32xf32> to vector<32x32xf32>
    %129 = arith.mulf %127, %128 : vector<32x32xf32>
    %130 = vector.broadcast %111 : vector<1x32xf32> to vector<32x32xf32>
    %131 = arith.addf %129, %130 : vector<32x32xf32>
    %132 = arith.addf %131, %0 : vector<32x32xf32>
    %c1 = arith.constant 1 : index
    %c0_80 = arith.constant 0 : index
    %c0_81 = arith.constant 0 : index
    %133 = vector.load %arg6[%c1, %c0_80, %c0_81] : memref<2x32x32xbf16, #tpu.memory_space<vmem>>, vector<1x32x32xbf16>
    %134 = vector.shape_cast %133 : vector<1x32x32xbf16> to vector<32x32xbf16>
    %135 = arith.truncf %132 : vector<32x32xf32> to vector<32x32xbf16>
    %cst_82 = arith.constant dense<0.000000e+00> : vector<32x32xf32>
    %136 = tpu.matmul %135, %134, %cst_82 {dimension_numbers = #tpu.dot_dimension_numbers<[1], [0], [0], [1], [0, 0, 1, 1], [], []>} : vector<32x32xbf16>, vector<32x32xbf16>, vector<32x32xf32> -> vector<32x32xf32>
    %c1_83 = arith.constant 1 : index
    %c0_84 = arith.constant 0 : index
    %c0_85 = arith.constant 0 : index
    %137 = vector.load %arg7[%c1_83, %c0_84, %c0_85] : memref<2x1x32xf32, #tpu.memory_space<vmem>>, vector<1x1x32xf32>
    %138 = vector.shape_cast %137 : vector<1x1x32xf32> to vector<1x32xf32>
    %139 = vector.broadcast %138 : vector<1x32xf32> to vector<32x32xf32>
    %140 = arith.addf %136, %139 : vector<32x32xf32>
    %c1_86 = arith.constant 1 : index
    %c0_87 = arith.constant 0 : index
    %c0_88 = arith.constant 0 : index
    %141 = vector.load %arg8[%c1_86, %c0_87, %c0_88] : memref<2x32x32xbf16, #tpu.memory_space<vmem>>, vector<1x32x32xbf16>
    %142 = vector.shape_cast %141 : vector<1x32x32xbf16> to vector<32x32xbf16>
    %143 = arith.truncf %132 : vector<32x32xf32> to vector<32x32xbf16>
    %cst_89 = arith.constant dense<0.000000e+00> : vector<32x32xf32>
    %144 = tpu.matmul %143, %142, %cst_89 {dimension_numbers = #tpu.dot_dimension_numbers<[1], [0], [0], [1], [0, 0, 1, 1], [], []>} : vector<32x32xbf16>, vector<32x32xbf16>, vector<32x32xf32> -> vector<32x32xf32>
    %c1_90 = arith.constant 1 : index
    %c0_91 = arith.constant 0 : index
    %c0_92 = arith.constant 0 : index
    %145 = vector.load %arg9[%c1_90, %c0_91, %c0_92] : memref<2x1x32xf32, #tpu.memory_space<vmem>>, vector<1x1x32xf32>
    %146 = vector.shape_cast %145 : vector<1x1x32xf32> to vector<1x32xf32>
    %147 = vector.broadcast %146 : vector<1x32xf32> to vector<32x32xf32>
    %148 = arith.addf %144, %147 : vector<32x32xf32>
    %c1_93 = arith.constant 1 : index
    %c0_94 = arith.constant 0 : index
    %c0_95 = arith.constant 0 : index
    %149 = vector.load %arg10[%c1_93, %c0_94, %c0_95] : memref<2x32x32xbf16, #tpu.memory_space<vmem>>, vector<1x32x32xbf16>
    %150 = vector.shape_cast %149 : vector<1x32x32xbf16> to vector<32x32xbf16>
    %151 = arith.truncf %131 : vector<32x32xf32> to vector<32x32xbf16>
    %cst_96 = arith.constant dense<0.000000e+00> : vector<32x32xf32>
    %152 = tpu.matmul %151, %150, %cst_96 {dimension_numbers = #tpu.dot_dimension_numbers<[1], [0], [0], [1], [0, 0, 1, 1], [], []>} : vector<32x32xbf16>, vector<32x32xbf16>, vector<32x32xf32> -> vector<32x32xf32>
    %c1_97 = arith.constant 1 : index
    %c0_98 = arith.constant 0 : index
    %c0_99 = arith.constant 0 : index
    %153 = vector.load %arg11[%c1_97, %c0_98, %c0_99] : memref<2x1x32xf32, #tpu.memory_space<vmem>>, vector<1x1x32xf32>
    %154 = vector.shape_cast %153 : vector<1x1x32xf32> to vector<1x32xf32>
    %155 = vector.broadcast %154 : vector<1x32xf32> to vector<32x32xf32>
    %156 = arith.addf %152, %155 : vector<32x32xf32>
    %157 = tpu.concatenate %148, %148, %148, %148 in 0 : vector<32x32xf32>, vector<32x32xf32>, vector<32x32xf32>, vector<32x32xf32> -> vector<128x32xf32>
    %158 = arith.mulf %157, %1 : vector<128x32xf32>
    %159 = arith.truncf %158 : vector<128x32xf32> to vector<128x32xbf16>
    %160 = tpu.concatenate %156, %156, %156, %156 in 0 : vector<32x32xf32>, vector<32x32xf32>, vector<32x32xf32>, vector<32x32xf32> -> vector<128x32xf32>
    %161 = arith.mulf %160, %1 : vector<128x32xf32>
    %162 = arith.truncf %161 : vector<128x32xf32> to vector<128x32xbf16>
    %163 = arith.truncf %140 : vector<32x32xf32> to vector<32x32xbf16>
    %cst_100 = arith.constant dense<0.000000e+00> : vector<32x128xf32>
    %164 = tpu.matmul %163, %159, %cst_100 {dimension_numbers = #tpu.dot_dimension_numbers<[1], [1], [0], [0], [0, 0, 1, 0], [], []>} : vector<32x32xbf16>, vector<128x32xbf16>, vector<32x128xf32> -> vector<32x128xf32>
    %165 = arith.addf %164, %6 : vector<32x128xf32>
    %cst_101 = arith.constant dense<0xFF800000> : vector<32xf32>
    %166 = vector.multi_reduction <maximumf>, %165, %cst_101 [1] : vector<32x128xf32> to vector<32xf32>
    %167 = vector.shape_cast %166 : vector<32xf32> to vector<32x1xf32>
    %168 = vector.broadcast %167 : vector<32x1xf32> to vector<32x128xf32>
    %169 = arith.subf %165, %168 : vector<32x128xf32>
    %170 = math.exp %169 : vector<32x128xf32>
    %171 = arith.truncf %170 : vector<32x128xf32> to vector<32x128xbf16>
    %cst_102 = arith.constant dense<0.000000e+00> : vector<32x32xf32>
    %172 = tpu.matmul %171, %2, %cst_102 {dimension_numbers = #tpu.dot_dimension_numbers<[1], [0], [0], [1], [0, 0, 1, 1], [], []>} : vector<32x128xbf16>, vector<128x32xbf16>, vector<32x32xf32> -> vector<32x32xf32>
    %cst_103 = arith.constant dense<0.000000e+00> : vector<32x32xf32>
    %173 = tpu.matmul %171, %162, %cst_103 {dimension_numbers = #tpu.dot_dimension_numbers<[1], [0], [0], [1], [0, 0, 1, 1], [], []>} : vector<32x128xbf16>, vector<128x32xbf16>, vector<32x32xf32> -> vector<32x32xf32>
    %174 = tpu.reciprocal %172 {approx = true} : vector<32x32xf32> -> vector<32x32xf32>
    %175 = arith.mulf %173, %174 : vector<32x32xf32>
    %c1_104 = arith.constant 1 : index
    %c0_105 = arith.constant 0 : index
    %c0_106 = arith.constant 0 : index
    %176 = vector.load %arg12[%c1_104, %c0_105, %c0_106] : memref<2x32x32xbf16, #tpu.memory_space<vmem>>, vector<1x32x32xbf16>
    %177 = vector.shape_cast %176 : vector<1x32x32xbf16> to vector<32x32xbf16>
    %178 = arith.truncf %175 : vector<32x32xf32> to vector<32x32xbf16>
    %cst_107 = arith.constant dense<0.000000e+00> : vector<32x32xf32>
    %179 = tpu.matmul %178, %177, %cst_107 {dimension_numbers = #tpu.dot_dimension_numbers<[1], [0], [0], [1], [0, 0, 1, 1], [], []>} : vector<32x32xbf16>, vector<32x32xbf16>, vector<32x32xf32> -> vector<32x32xf32>
    %c1_108 = arith.constant 1 : index
    %c0_109 = arith.constant 0 : index
    %c0_110 = arith.constant 0 : index
    %180 = vector.load %arg13[%c1_108, %c0_109, %c0_110] : memref<2x1x32xf32, #tpu.memory_space<vmem>>, vector<1x1x32xf32>
    %181 = vector.shape_cast %180 : vector<1x1x32xf32> to vector<1x32xf32>
    %182 = vector.broadcast %181 : vector<1x32xf32> to vector<32x32xf32>
    %183 = arith.addf %179, %182 : vector<32x32xf32>
    %184 = arith.addf %131, %183 : vector<32x32xf32>
    %c1_111 = arith.constant 1 : index
    %c0_112 = arith.constant 0 : index
    %c0_113 = arith.constant 0 : index
    %185 = vector.load %arg14[%c1_111, %c0_112, %c0_113] : memref<2x1x32xf32, #tpu.memory_space<vmem>>, vector<1x1x32xf32>
    %186 = vector.shape_cast %185 : vector<1x1x32xf32> to vector<1x32xf32>
    %c1_114 = arith.constant 1 : index
    %c0_115 = arith.constant 0 : index
    %c0_116 = arith.constant 0 : index
    %187 = vector.load %arg15[%c1_114, %c0_115, %c0_116] : memref<2x1x32xf32, #tpu.memory_space<vmem>>, vector<1x1x32xf32>
    %188 = vector.shape_cast %187 : vector<1x1x32xf32> to vector<1x32xf32>
    %cst_117 = arith.constant dense<0.000000e+00> : vector<32xf32>
    %189 = vector.multi_reduction <add>, %184, %cst_117 [1] : vector<32x32xf32> to vector<32xf32>
    %190 = vector.shape_cast %189 : vector<32xf32> to vector<32x1xf32>
    %cst_118 = arith.constant 3.200000e+01 : f32
    %191 = vector.broadcast %cst_118 : f32 to vector<32x1xf32>
    %192 = arith.divf %190, %191 : vector<32x1xf32>
    %193 = vector.broadcast %192 : vector<32x1xf32> to vector<32x32xf32>
    %194 = arith.subf %184, %193 : vector<32x32xf32>
    %195 = arith.mulf %194, %194 : vector<32x32xf32>
    %cst_119 = arith.constant dense<0.000000e+00> : vector<32xf32>
    %196 = vector.multi_reduction <add>, %195, %cst_119 [1] : vector<32x32xf32> to vector<32xf32>
    %197 = vector.shape_cast %196 : vector<32xf32> to vector<32x1xf32>
    %cst_120 = arith.constant 3.200000e+01 : f32
    %198 = vector.broadcast %cst_120 : f32 to vector<32x1xf32>
    %199 = arith.divf %197, %198 : vector<32x1xf32>
    %cst_121 = arith.constant 9.99999974E-6 : f32
    %200 = vector.broadcast %cst_121 : f32 to vector<32x1xf32>
    %201 = arith.addf %199, %200 : vector<32x1xf32>
    %202 = math.rsqrt %201 : vector<32x1xf32>
    %203 = vector.broadcast %202 : vector<32x1xf32> to vector<32x32xf32>
    %204 = arith.mulf %194, %203 : vector<32x32xf32>
    %205 = vector.broadcast %186 : vector<1x32xf32> to vector<32x32xf32>
    %206 = arith.mulf %204, %205 : vector<32x32xf32>
    %207 = vector.broadcast %188 : vector<1x32xf32> to vector<32x32xf32>
    %208 = arith.addf %206, %207 : vector<32x32xf32>
    %c1_122 = arith.constant 1 : index
    %c0_123 = arith.constant 0 : index
    %c0_124 = arith.constant 0 : index
    %209 = vector.load %arg16[%c1_122, %c0_123, %c0_124] : memref<2x32x64xbf16, #tpu.memory_space<vmem>>, vector<1x32x64xbf16>
    %210 = vector.shape_cast %209 : vector<1x32x64xbf16> to vector<32x64xbf16>
    %211 = arith.truncf %208 : vector<32x32xf32> to vector<32x32xbf16>
    %cst_125 = arith.constant dense<0.000000e+00> : vector<32x64xf32>
    %212 = tpu.matmul %211, %210, %cst_125 {dimension_numbers = #tpu.dot_dimension_numbers<[1], [0], [0], [1], [0, 0, 1, 1], [], []>} : vector<32x32xbf16>, vector<32x64xbf16>, vector<32x64xf32> -> vector<32x64xf32>
    %c1_126 = arith.constant 1 : index
    %c0_127 = arith.constant 0 : index
    %c0_128 = arith.constant 0 : index
    %213 = vector.load %arg17[%c1_126, %c0_127, %c0_128] : memref<2x1x64xf32, #tpu.memory_space<vmem>>, vector<1x1x64xf32>
    %214 = vector.shape_cast %213 : vector<1x1x64xf32> to vector<1x64xf32>
    %215 = vector.broadcast %214 : vector<1x64xf32> to vector<32x64xf32>
    %216 = arith.addf %212, %215 : vector<32x64xf32>
    %cst_129 = arith.constant 0.000000e+00 : f32
    %217 = vector.broadcast %cst_129 : f32 to vector<32x64xf32>
    %218 = arith.maximumf %216, %217 : vector<32x64xf32>
    %c1_130 = arith.constant 1 : index
    %c0_131 = arith.constant 0 : index
    %c0_132 = arith.constant 0 : index
    %219 = vector.load %arg18[%c1_130, %c0_131, %c0_132] : memref<2x64x32xbf16, #tpu.memory_space<vmem>>, vector<1x64x32xbf16>
    %220 = vector.shape_cast %219 : vector<1x64x32xbf16> to vector<64x32xbf16>
    %221 = arith.truncf %218 : vector<32x64xf32> to vector<32x64xbf16>
    %cst_133 = arith.constant dense<0.000000e+00> : vector<32x32xf32>
    %222 = tpu.matmul %221, %220, %cst_133 {dimension_numbers = #tpu.dot_dimension_numbers<[1], [0], [0], [1], [0, 0, 1, 1], [], []>} : vector<32x64xbf16>, vector<64x32xbf16>, vector<32x32xf32> -> vector<32x32xf32>
    %c1_134 = arith.constant 1 : index
    %c0_135 = arith.constant 0 : index
    %c0_136 = arith.constant 0 : index
    %223 = vector.load %arg19[%c1_134, %c0_135, %c0_136] : memref<2x1x32xf32, #tpu.memory_space<vmem>>, vector<1x1x32xf32>
    %224 = vector.shape_cast %223 : vector<1x1x32xf32> to vector<1x32xf32>
    %225 = vector.broadcast %224 : vector<1x32xf32> to vector<32x32xf32>
    %226 = arith.addf %222, %225 : vector<32x32xf32>
    %227 = arith.addf %208, %226 : vector<32x32xf32>
    %c1_137 = arith.constant 1 : index
    %c0_138 = arith.constant 0 : index
    %c0_139 = arith.constant 0 : index
    %228 = vector.load %arg20[%c1_137, %c0_138, %c0_139] : memref<2x1x32xf32, #tpu.memory_space<vmem>>, vector<1x1x32xf32>
    %229 = vector.shape_cast %228 : vector<1x1x32xf32> to vector<1x32xf32>
    %c1_140 = arith.constant 1 : index
    %c0_141 = arith.constant 0 : index
    %c0_142 = arith.constant 0 : index
    %230 = vector.load %arg21[%c1_140, %c0_141, %c0_142] : memref<2x1x32xf32, #tpu.memory_space<vmem>>, vector<1x1x32xf32>
    %231 = vector.shape_cast %230 : vector<1x1x32xf32> to vector<1x32xf32>
    %cst_143 = arith.constant dense<0.000000e+00> : vector<32xf32>
    %232 = vector.multi_reduction <add>, %227, %cst_143 [1] : vector<32x32xf32> to vector<32xf32>
    %233 = vector.shape_cast %232 : vector<32xf32> to vector<32x1xf32>
    %cst_144 = arith.constant 3.200000e+01 : f32
    %234 = vector.broadcast %cst_144 : f32 to vector<32x1xf32>
    %235 = arith.divf %233, %234 : vector<32x1xf32>
    %236 = vector.broadcast %235 : vector<32x1xf32> to vector<32x32xf32>
    %237 = arith.subf %227, %236 : vector<32x32xf32>
    %238 = arith.mulf %237, %237 : vector<32x32xf32>
    %cst_145 = arith.constant dense<0.000000e+00> : vector<32xf32>
    %239 = vector.multi_reduction <add>, %238, %cst_145 [1] : vector<32x32xf32> to vector<32xf32>
    %240 = vector.shape_cast %239 : vector<32xf32> to vector<32x1xf32>
    %cst_146 = arith.constant 3.200000e+01 : f32
    %241 = vector.broadcast %cst_146 : f32 to vector<32x1xf32>
    %242 = arith.divf %240, %241 : vector<32x1xf32>
    %cst_147 = arith.constant 9.99999974E-6 : f32
    %243 = vector.broadcast %cst_147 : f32 to vector<32x1xf32>
    %244 = arith.addf %242, %243 : vector<32x1xf32>
    %245 = math.rsqrt %244 : vector<32x1xf32>
    %246 = vector.broadcast %245 : vector<32x1xf32> to vector<32x32xf32>
    %247 = arith.mulf %237, %246 : vector<32x32xf32>
    %248 = vector.broadcast %229 : vector<1x32xf32> to vector<32x32xf32>
    %249 = arith.mulf %247, %248 : vector<32x32xf32>
    %250 = vector.broadcast %231 : vector<1x32xf32> to vector<32x32xf32>
    %251 = arith.addf %249, %250 : vector<32x32xf32>
    %252 = vector.extract_strided_slice %251 {offsets = [0, 0], sizes = [1, 32], strides = [1, 1]} : vector<32x32xf32> to vector<1x32xf32>
    %c0_148 = arith.constant 0 : index
    %c0_149 = arith.constant 0 : index
    %253 = vector.load %arg22[%c0_148, %c0_149] : memref<32x32xbf16, #tpu.memory_space<vmem>>, vector<32x32xbf16>
    %254 = arith.truncf %252 : vector<1x32xf32> to vector<1x32xbf16>
    %cst_150 = arith.constant dense<0.000000e+00> : vector<1x32xf32>
    %255 = tpu.matmul %254, %253, %cst_150 {dimension_numbers = #tpu.dot_dimension_numbers<[1], [0], [0], [1], [0, 0, 1, 1], [], []>} : vector<1x32xbf16>, vector<32x32xbf16>, vector<1x32xf32> -> vector<1x32xf32>
    %c0_151 = arith.constant 0 : index
    %c0_152 = arith.constant 0 : index
    %256 = vector.load %arg23[%c0_151, %c0_152] : memref<1x32xf32, #tpu.memory_space<vmem>>, vector<1x32xf32>
    %257 = arith.addf %255, %256 : vector<1x32xf32>
    %cst_153 = arith.constant 0.000000e+00 : f32
    %258 = vector.broadcast %cst_153 : f32 to vector<1x32xf32>
    %259 = arith.maximumf %257, %258 : vector<1x32xf32>
    %c0_154 = arith.constant 0 : index
    %c0_155 = arith.constant 0 : index
    %260 = vector.load %arg24[%c0_154, %c0_155] : memref<32x32xbf16, #tpu.memory_space<vmem>>, vector<32x32xbf16>
    %261 = arith.truncf %259 : vector<1x32xf32> to vector<1x32xbf16>
    %cst_156 = arith.constant dense<0.000000e+00> : vector<1x32xf32>
    %262 = tpu.matmul %261, %260, %cst_156 {dimension_numbers = #tpu.dot_dimension_numbers<[1], [0], [0], [1], [0, 0, 1, 1], [], []>} : vector<1x32xbf16>, vector<32x32xbf16>, vector<1x32xf32> -> vector<1x32xf32>
    %c0_157 = arith.constant 0 : index
    %c0_158 = arith.constant 0 : index
    %263 = vector.load %arg25[%c0_157, %c0_158] : memref<1x32xf32, #tpu.memory_space<vmem>>, vector<1x32xf32>
    %264 = arith.addf %262, %263 : vector<1x32xf32>
    %cst_159 = arith.constant 0.000000e+00 : f32
    %265 = vector.broadcast %cst_159 : f32 to vector<1x32xf32>
    %266 = arith.maximumf %264, %265 : vector<1x32xf32>
    %c0_160 = arith.constant 0 : index
    %c0_161 = arith.constant 0 : index
    %267 = vector.load %arg26[%c0_160, %c0_161] : memref<32x128xbf16, #tpu.memory_space<vmem>>, vector<32x128xbf16>
    %268 = arith.truncf %266 : vector<1x32xf32> to vector<1x32xbf16>
    %cst_162 = arith.constant dense<0.000000e+00> : vector<1x128xf32>
    %269 = tpu.matmul %268, %267, %cst_162 {dimension_numbers = #tpu.dot_dimension_numbers<[1], [0], [0], [1], [0, 0, 1, 1], [], []>} : vector<1x32xbf16>, vector<32x128xbf16>, vector<1x128xf32> -> vector<1x128xf32>
    %c0_163 = arith.constant 0 : index
    %c0_164 = arith.constant 0 : index
    %270 = vector.load %arg27[%c0_163, %c0_164] : memref<1x128xf32, #tpu.memory_space<vmem>>, vector<1x128xf32>
    %271 = arith.addf %269, %270 : vector<1x128xf32>
    %cst_165 = arith.constant 0.000000e+00 : f32
    %272 = vector.broadcast %cst_165 : f32 to vector<1x128xf32>
    %273 = arith.subf %272, %271 : vector<1x128xf32>
    %274 = math.exp %273 : vector<1x128xf32>
    %cst_166 = arith.constant 1.000000e+00 : f32
    %275 = vector.broadcast %cst_166 : f32 to vector<1x128xf32>
    %276 = arith.addf %275, %274 : vector<1x128xf32>
    %cst_167 = arith.constant 1.000000e+00 : f32
    %277 = vector.broadcast %cst_167 : f32 to vector<1x128xf32>
    %278 = arith.divf %277, %276 : vector<1x128xf32>
    %c0_168 = arith.constant 0 : index
    %c0_169 = arith.constant 0 : index
    %c0_170 = arith.constant 0 : index
    %279 = vector.load %arg28[%c0_168, %c0_169, %c0_170] : memref<1x1x128xf32, #tpu.memory_space<vmem>>, vector<1x1x128xf32>
    %280 = vector.shape_cast %279 : vector<1x1x128xf32> to vector<1x128xf32>
    %281 = vector.shape_cast %278 : vector<1x128xf32> to vector<1x1x128xf32>
    tpu.vector_store %arg28[%c0_168, %c0_169, %c0_170], %281 {strides = array<i32>} : memref<1x1x128xf32, #tpu.memory_space<vmem>>, vector<1x1x128xf32>,
    return
  }
  func.func @transform_0(%arg0: i32) -> (i32, i32, i32) {
    %c0_i32 = arith.constant 0 : i32
    %c0_i32_0 = arith.constant 0 : i32
    %c0_i32_1 = arith.constant 0 : i32
    return %arg0, %c0_i32, %c0_i32_0 : i32, i32, i32
  }
  func.func @transform_1(%arg0: i32) -> (i32, i32, i32) {
    %c0_i32 = arith.constant 0 : i32
    %c0_i32_0 = arith.constant 0 : i32
    %c0_i32_1 = arith.constant 0 : i32
    return %arg0, %c0_i32, %c0_i32_0 : i32, i32, i32
  }
  func.func @transform_2(%arg0: i32) -> (i32, i32) {
    %c0_i32 = arith.constant 0 : i32
    %c0_i32_0 = arith.constant 0 : i32
    %c0_i32_1 = arith.constant 0 : i32
    return %c0_i32, %c0_i32_0 : i32, i32
  }
  func.func @transform_3(%arg0: i32) -> (i32, i32) {
    %c0_i32 = arith.constant 0 : i32
    %c0_i32_0 = arith.constant 0 : i32
    %c0_i32_1 = arith.constant 0 : i32
    return %c0_i32, %c0_i32_0 : i32, i32
  }
  func.func @transform_4(%arg0: i32) -> (i32, i32) {
    %c0_i32 = arith.constant 0 : i32
    %c0_i32_0 = arith.constant 0 : i32
    %c0_i32_1 = arith.constant 0 : i32
    return %c0_i32, %c0_i32_0 : i32, i32
  }
  func.func @transform_5(%arg0: i32) -> (i32, i32, i32) {
    %c0_i32 = arith.constant 0 : i32
    %c0_i32_0 = arith.constant 0 : i32
    %c0_i32_1 = arith.constant 0 : i32
    %c0_i32_2 = arith.constant 0 : i32
    return %c0_i32, %c0_i32_0, %c0_i32_1 : i32, i32, i32
  }
  func.func @transform_6(%arg0: i32) -> (i32, i32, i32) {
    %c0_i32 = arith.constant 0 : i32
    %c0_i32_0 = arith.constant 0 : i32
    %c0_i32_1 = arith.constant 0 : i32
    %c0_i32_2 = arith.constant 0 : i32
    return %c0_i32, %c0_i32_0, %c0_i32_1 : i32, i32, i32
  }
  func.func @transform_7(%arg0: i32) -> (i32, i32, i32) {
    %c0_i32 = arith.constant 0 : i32
    %c0_i32_0 = arith.constant 0 : i32
    %c0_i32_1 = arith.constant 0 : i32
    %c0_i32_2 = arith.constant 0 : i32
    return %c0_i32, %c0_i32_0, %c0_i32_1 : i32, i32, i32
  }
  func.func @transform_8(%arg0: i32) -> (i32, i32, i32) {
    %c0_i32 = arith.constant 0 : i32
    %c0_i32_0 = arith.constant 0 : i32
    %c0_i32_1 = arith.constant 0 : i32
    %c0_i32_2 = arith.constant 0 : i32
    return %c0_i32, %c0_i32_0, %c0_i32_1 : i32, i32, i32
  }
  func.func @transform_9(%arg0: i32) -> (i32, i32, i32) {
    %c0_i32 = arith.constant 0 : i32
    %c0_i32_0 = arith.constant 0 : i32
    %c0_i32_1 = arith.constant 0 : i32
    %c0_i32_2 = arith.constant 0 : i32
    return %c0_i32, %c0_i32_0, %c0_i32_1 : i32, i32, i32
  }
  func.func @transform_10(%arg0: i32) -> (i32, i32, i32) {
    %c0_i32 = arith.constant 0 : i32
    %c0_i32_0 = arith.constant 0 : i32
    %c0_i32_1 = arith.constant 0 : i32
    %c0_i32_2 = arith.constant 0 : i32
    return %c0_i32, %c0_i32_0, %c0_i32_1 : i32, i32, i32
  }
  func.func @transform_11(%arg0: i32) -> (i32, i32, i32) {
    %c0_i32 = arith.constant 0 : i32
    %c0_i32_0 = arith.constant 0 : i32
    %c0_i32_1 = arith.constant 0 : i32
    %c0_i32_2 = arith.constant 0 : i32
    return %c0_i32, %c0_i32_0, %c0_i32_1 : i32, i32, i32
  }
  func.func @transform_12(%arg0: i32) -> (i32, i32, i32) {
    %c0_i32 = arith.constant 0 : i32
    %c0_i32_0 = arith.constant 0 : i32
    %c0_i32_1 = arith.constant 0 : i32
    %c0_i32_2 = arith.constant 0 : i32
    return %c0_i32, %c0_i32_0, %c0_i32_1 : i32, i32, i32
  }
  func.func @transform_13(%arg0: i32) -> (i32, i32, i32) {
    %c0_i32 = arith.constant 0 : i32
    %c0_i32_0 = arith.constant 0 : i32
    %c0_i32_1 = arith.constant 0 : i32
    %c0_i32_2 = arith.constant 0 : i32
    return %c0_i32, %c0_i32_0, %c0_i32_1 : i32, i32, i32
  }
  func.func @transform_14(%arg0: i32) -> (i32, i32, i32) {
    %c0_i32 = arith.constant 0 : i32
    %c0_i32_0 = arith.constant 0 : i32
    %c0_i32_1 = arith.constant 0 : i32
    %c0_i32_2 = arith.constant 0 : i32
    return %c0_i32, %c0_i32_0, %c0_i32_1 : i32, i32, i32
  }
  func.func @transform_15(%arg0: i32) -> (i32, i32, i32) {
    %c0_i32 = arith.constant 0 : i32
    %c0_i32_0 = arith.constant 0 : i32
    %c0_i32_1 = arith.constant 0 : i32
    %c0_i32_2 = arith.constant 0 : i32
    return %c0_i32, %c0_i32_0, %c0_i32_1 : i32, i32, i32
  }
  func.func @transform_16(%arg0: i32) -> (i32, i32, i32) {
    %c0_i32 = arith.constant 0 : i32
    %c0_i32_0 = arith.constant 0 : i32
    %c0_i32_1 = arith.constant 0 : i32
    %c0_i32_2 = arith.constant 0 : i32
    return %c0_i32, %c0_i32_0, %c0_i32_1 : i32, i32, i32
  }
  func.func @transform_17(%arg0: i32) -> (i32, i32, i32) {
    %c0_i32 = arith.constant 0 : i32
    %c0_i32_0 = arith.constant 0 : i32
    %c0_i32_1 = arith.constant 0 : i32
    %c0_i32_2 = arith.constant 0 : i32
    return %c0_i32, %c0_i32_0, %c0_i32_1 : i32, i32, i32
  }
  func.func @transform_18(%arg0: i32) -> (i32, i32, i32) {
    %c0_i32 = arith.constant 0 : i32
    %c0_i32_0 = arith.constant 0 : i32
    %c0_i32_1 = arith.constant 0 : i32
    %c0_i32_2 = arith.constant 0 : i32
    return %c0_i32, %c0_i32_0, %c0_i32_1 : i32, i32, i32
  }
  func.func @transform_19(%arg0: i32) -> (i32, i32, i32) {
    %c0_i32 = arith.constant 0 : i32
    %c0_i32_0 = arith.constant 0 : i32
    %c0_i32_1 = arith.constant 0 : i32
    %c0_i32_2 = arith.constant 0 : i32
    return %c0_i32, %c0_i32_0, %c0_i32_1 : i32, i32, i32
  }
  func.func @transform_20(%arg0: i32) -> (i32, i32, i32) {
    %c0_i32 = arith.constant 0 : i32
    %c0_i32_0 = arith.constant 0 : i32
    %c0_i32_1 = arith.constant 0 : i32
    %c0_i32_2 = arith.constant 0 : i32
    return %c0_i32, %c0_i32_0, %c0_i32_1 : i32, i32, i32
  }
  func.func @transform_21(%arg0: i32) -> (i32, i32) {
    %c0_i32 = arith.constant 0 : i32
    %c0_i32_0 = arith.constant 0 : i32
    %c0_i32_1 = arith.constant 0 : i32
    return %c0_i32, %c0_i32_0 : i32, i32
  }
  func.func @transform_22(%arg0: i32) -> (i32, i32) {
    %c0_i32 = arith.constant 0 : i32
    %c0_i32_0 = arith.constant 0 : i32
    %c0_i32_1 = arith.constant 0 : i32
    return %c0_i32, %c0_i32_0 : i32, i32
  }
  func.func @transform_23(%arg0: i32) -> (i32, i32) {
    %c0_i32 = arith.constant 0 : i32
    %c0_i32_0 = arith.constant 0 : i32
    %c0_i32_1 = arith.constant 0 : i32
    return %c0_i32, %c0_i32_0 : i32, i32
  }
  func.func @transform_24(%arg0: i32) -> (i32, i32) {
    %c0_i32 = arith.constant 0 : i32
    %c0_i32_0 = arith.constant 0 : i32
    %c0_i32_1 = arith.constant 0 : i32
    return %c0_i32, %c0_i32_0 : i32, i32
  }
  func.func @transform_25(%arg0: i32) -> (i32, i32) {
    %c0_i32 = arith.constant 0 : i32
    %c0_i32_0 = arith.constant 0 : i32
    %c0_i32_1 = arith.constant 0 : i32
    return %c0_i32, %c0_i32_0 : i32, i32
  }
  func.func @transform_26(%arg0: i32) -> (i32, i32) {
    %c0_i32 = arith.constant 0 : i32
    %c0_i32_0 = arith.constant 0 : i32
    %c0_i32_1 = arith.constant 0 : i32
    return %c0_i32, %c0_i32_0 : i32, i32
  }
  func.func @transform_27(%arg0: i32) -> (i32, i32, i32) {
    %c0_i32 = arith.constant 0 : i32
    %c0_i32_0 = arith.constant 0 : i32
    %c0_i32_1 = arith.constant 0 : i32
    return %arg0, %c0_i32, %c0_i32_0 : i32, i32, i32
  }
}

</mosaic_0001>

<llo_original>
// kernel: tpu_custom_call.1
$region0: #{tpu_custom_call.1}
  #allocation0 [shape = 'u32[]', space=smem, size = 0x4, offset = 0x4, fixed_abs, tag = 'smem constant byte address 0x4 - core index']
  #allocation1 [shape = 'u32[144,128]{1,0:T(1,128)}', space=vmem, size = 0x12000, scoped, tag = 'internal scratch']
  %s0 = inlined_call_operand.vmem [shape: f32[2,32,128], index: 0, kind: input, shape index: {}]
  %s1 = inlined_call_operand.vmem [shape: f32[2,1,128], index: 1, kind: input, shape index: {}]
  %s2 = inlined_call_operand.vmem [shape: f32[128,32], index: 2, kind: input, shape index: {}]
  %s3 = inlined_call_operand.vmem [shape: bf16[128,32], index: 3, kind: input, shape index: {}]
  %s4 = inlined_call_operand.vmem [shape: f32[32,32], index: 4, kind: input, shape index: {}]
  %s5 = inlined_call_operand.vmem [shape: bf16[2,32,32], index: 5, kind: input, shape index: {}]
  %s6 = inlined_call_operand.vmem [shape: f32[2,1,32], index: 6, kind: input, shape index: {}]
  %s7 = inlined_call_operand.vmem [shape: bf16[2,32,32], index: 7, kind: input, shape index: {}]
  %s8 = inlined_call_operand.hbm [shape: f32[2,1,32], index: 8, kind: input, shape index: {}]
  %s9 = inlined_call_operand.vmem [shape: bf16[2,32,32], index: 9, kind: input, shape index: {}]
  %s10 = inlined_call_operand.hbm [shape: f32[2,1,32], index: 10, kind: input, shape index: {}]
  %s11 = inlined_call_operand.vmem [shape: bf16[2,32,32], index: 11, kind: input, shape index: {}]
  %s12 = inlined_call_operand.vmem [shape: f32[2,1,32], index: 12, kind: input, shape index: {}]
  %s13 = inlined_call_operand.vmem [shape: f32[2,1,32], index: 13, kind: input, shape index: {}]
  %s14 = inlined_call_operand.vmem [shape: f32[2,1,32], index: 14, kind: input, shape index: {}]
  %s15 = inlined_call_operand.vmem [shape: bf16[2,32,64], index: 15, kind: input, shape index: {}]
  %s16 = inlined_call_operand.vmem [shape: f32[2,1,64], index: 16, kind: input, shape index: {}]
  %s17 = inlined_call_operand.vmem [shape: bf16[2,64,32], index: 17, kind: input, shape index: {}]
  %s18 = inlined_call_operand.vmem [shape: f32[2,1,32], index: 18, kind: input, shape index: {}]
  %s19 = inlined_call_operand.vmem [shape: f32[2,1,32], index: 19, kind: input, shape index: {}]
  %s20 = inlined_call_operand.vmem [shape: f32[2,1,32], index: 20, kind: input, shape index: {}]
  %s21 = inlined_call_operand.vmem [shape: bf16[32,32], index: 21, kind: input, shape index: {}]
  %s22 = inlined_call_operand.vmem [shape: f32[1,32], index: 22, kind: input, shape index: {}]
  %s23 = inlined_call_operand.vmem [shape: bf16[32,32], index: 23, kind: input, shape index: {}]
  %s24 = inlined_call_operand.vmem [shape: f32[1,32], index: 24, kind: input, shape index: {}]
  %s25 = inlined_call_operand.vmem [shape: bf16[32,128], index: 25, kind: input, shape index: {}]
  %s26 = inlined_call_operand.vmem [shape: f32[1,128], index: 26, kind: input, shape index: {}]
  %s27 = inlined_call_operand.hbm [shape: f32[2,1,128], index: 27, kind: output, shape index: {}]
  %s28 = sld [smem:[#allocation0]]
  $region149: #{tpu_custom_call.1} parent=0
    _
  %s30 = ssub.s32 1, %s28
  %s31 = scalar_select 0, %s30, %s28
  $region1: #{tpu_custom_call.1} parent=0
    #allocation2 [shape = 'u8[1024]{0}', space=vmem, size = 0x400, scoped, tag = 'input window, operand 8, single buffered']
    #allocation3 [shape = 's32[2]{0}', space=sflag, size = 0x8, scoped, tag = 'scoped memory for tpu_custom_call.1']
    #allocation4 [shape = 's32[2]{0}', space=sflag, size = 0x8, scoped, tag = 'scoped memory for tpu_custom_call.1']
    #allocation5 [shape = 'u8[1024]{0}', space=vmem, size = 0x400, scoped, tag = 'input window, operand 10, single buffered']
    #allocation6 [shape = 's32[1]{0}', space=sflag, size = 0x4, scoped, tag = 'scoped memory for tpu_custom_call.1']
    #allocation7 [shape = 'u8[1024]{0}', space=vmem, size = 0x400, scoped, tag = 'output window, operand 0']
    %32 = vsyncpa [#allocation3], 0
    %33 = vsyncpa [#allocation6], 0
    %34 = vsyncpa [#allocation4], 0
    %s35 = scalar_lea.sflag [#allocation4], 1
    %36 = vsyncpa %s35, 0
    loop: start=0, step=1, limit=4
    $region2: #{tpu_custom_call.1} parent=1 // loop_pre_header
      _
    $region3: #{tpu_custom_call.1} parent=1 // loop_header
      %s38 = sphi 0, %s42
      %p39 = scmp.ge.s32.totalorder %s38, 4
      %s48 = sphi 0, %s50
      %s51 = sphi 0, %s48
      %s52 = sphi 0, %s51
      %s68 = sphi 0, %s52
      %s74 = sphi 0, %s76
      %s77 = sphi 0, %s74
      %s78 = sphi 0, %s77
      %s94 = sphi 0, %s78
      %s98 = sphi 0, %s98
      %s100 = sphi 0, %s98
      %s101 = sphi 0, %s100
      %s115 = sphi 0, %s101
      %s119 = sphi 0, %s119
      %s121 = sphi 0, %s119
      %s122 = sphi 0, %s121
      %s136 = sphi 0, %s122
      %s140 = sphi 0, %s140
      %s142 = sphi 0, %s140
      %s143 = sphi 0, %s142
      %s157 = sphi 0, %s143
      %s161 = sphi 0, %s161
      %s163 = sphi 0, %s161
      %s164 = sphi 0, %s163
      %s178 = sphi 0, %s164
      %s182 = sphi 0, %s182
      %s184 = sphi 0, %s182
      %s185 = sphi 0, %s184
      %s199 = sphi 0, %s185
      %s203 = sphi 0, %s203
      %s205 = sphi 0, %s203
      %s206 = sphi 0, %s205
      %s220 = sphi 0, %s206
      %s224 = sphi 0, %s224
      %s226 = sphi 0, %s224
      %s227 = sphi 0, %s226
      %s241 = sphi 0, %s227
      %s245 = sphi 0, %s245
      %s247 = sphi 0, %s245
      %s248 = sphi 0, %s247
      %s262 = sphi 0, %s248
      %s266 = sphi 0, %s266
      %s268 = sphi 0, %s266
      %s269 = sphi 0, %s268
      %s283 = sphi 0, %s269
      %s287 = sphi 0, %s287
      %s289 = sphi 0, %s287
      %s290 = sphi 0, %s289
      %s304 = sphi 0, %s290
      %s308 = sphi 0, %s308
      %s310 = sphi 0, %s308
      %s311 = sphi 0, %s310
      %s325 = sphi 0, %s311
      %s329 = sphi 0, %s329
      %s331 = sphi 0, %s329
      %s332 = sphi 0, %s331
      %s346 = sphi 0, %s332
      %s350 = sphi 0, %s350
      %s352 = sphi 0, %s350
      %s353 = sphi 0, %s352
      %s367 = sphi 0, %s353
      %s371 = sphi 0, %s371
      %s373 = sphi 0, %s371
      %s374 = sphi 0, %s373
      %s388 = sphi 0, %s374
      %s392 = sphi 0, %s392
      %s394 = sphi 0, %s392
      %s395 = sphi 0, %s394
      %s409 = sphi 0, %s395
      %s413 = sphi 0, %s413
      %s415 = sphi 0, %s413
      %s416 = sphi 0, %s415
      %s430 = sphi 0, %s416
      %s434 = sphi 0, %s434
      %s436 = sphi 0, %s434
      %s437 = sphi 0, %s436
      %s451 = sphi 0, %s437
      %s455 = sphi 0, %s455
      %s457 = sphi 0, %s455
      %s458 = sphi 0, %s457
      %s472 = sphi 0, %s458
      %s476 = sphi 0, %s476
      %s478 = sphi 0, %s476
      %s479 = sphi 0, %s478
      %s493 = sphi 0, %s479
      %s497 = sphi 0, %s497
      %s499 = sphi 0, %s497
      %s500 = sphi 0, %s499
      %s514 = sphi 0, %s500
      %s518 = sphi 0, %s518
      %s520 = sphi 0, %s518
      %s521 = sphi 0, %s520
      %s535 = sphi 0, %s521
      %s539 = sphi 0, %s539
      %s541 = sphi 0, %s539
      %s542 = sphi 0, %s541
      %s556 = sphi 0, %s542
      %s560 = sphi 0, %s560
      %s562 = sphi 0, %s560
      %s563 = sphi 0, %s562
      %s577 = sphi 0, %s563
      %s581 = sphi 0, %s581
      %s583 = sphi 0, %s581
      %s584 = sphi 0, %s583
      %s598 = sphi 0, %s584
      %s602 = sphi 0, %s602
      %s604 = sphi 0, %s602
      %s605 = sphi 0, %s604
      %s619 = sphi 0, %s605
      %s625 = sphi 0, %s627
      %s628 = sphi 0, %s625
      %s629 = sphi 0, %s628
      %s645 = sphi 0, %s629
    $region4: #{tpu_custom_call.1} parent=1 // loop_header_branch
      %41 = sbr.rel (%p39) target = $region8
    $region5: #{tpu_custom_call.1} parent=1 // loop_body
      %s43 = ssub.s32 %s38, 1
      %s44 = ssub.s32 %s38, 2
      %s45 = sadd.s32 %s38, 1
      %s46 = ssub.s32 %s38, %s45
      %p47 = scmp.eq.s32.totalorder %s46, 0
      %s49 = sadd.s32 %s48, 1
      %s50 = scalar_select %p47, %s48, %s49
      %p53 = pneg %p47
      %p54 = scmp.eq.s32.totalorder %s38, 1
      %p55 = por %p53, %p54
      %p56 = scmp.ne.s32.totalorder %s48, %s51
      %p57 = scmp.eq.s32.totalorder %s38, 0
      %p58 = por %p56, %p57
      %p59 = scmp.ne.s32.totalorder %s48, %s51
      %p60 = scmp.eq.s32.totalorder %s43, 1
      %p61 = por %p59, %p60
      %p62 = scmp.ne.s32.totalorder %s51, %s52
      %p63 = scmp.eq.s32.totalorder %s43, 0
      %p64 = por %p62, %p63
      %p65 = scmp.ne.s32.totalorder %s51, %s52
      %p66 = scmp.eq.s32.totalorder %s44, 1
      %p67 = por %p65, %p66
      %p69 = scmp.ne.s32.totalorder %s52, %s68
      %p70 = scmp.eq.s32.totalorder %s44, 0
      %p71 = por %p69, %p70
      %s72 = ssub.s32 %s38, %s45
      %p73 = scmp.eq.s32.totalorder %s72, 0
      %s75 = sadd.s32 %s74, 1
      %s76 = scalar_select %p73, %s74, %s75
      %p79 = pneg %p73
      %p80 = scmp.eq.s32.totalorder %s38, 1
      %p81 = por %p79, %p80
      %p82 = scmp.ne.s32.totalorder %s74, %s77
      %p83 = scmp.eq.s32.totalorder %s38, 0
      %p84 = por %p82, %p83
      %p85 = scmp.ne.s32.totalorder %s74, %s77
      %p86 = scmp.eq.s32.totalorder %s43, 1
      %p87 = por %p85, %p86
      %p88 = scmp.ne.s32.totalorder %s77, %s78
      %p89 = scmp.eq.s32.totalorder %s43, 0
      %p90 = por %p88, %p89
      %p91 = scmp.ne.s32.totalorder %s77, %s78
      %p92 = scmp.eq.s32.totalorder %s44, 1
      %p93 = por %p91, %p92
      %p95 = scmp.ne.s32.totalorder %s78, %s94
      %p96 = scmp.eq.s32.totalorder %s44, 0
      %p97 = por %p95, %p96
      %s99 = sadd.s32 %s98, 1
      %p102 = scmp.eq.s32.totalorder %s38, 1
      %p103 = scmp.ne.s32.totalorder %s98, %s100
      %p104 = scmp.eq.s32.totalorder %s38, 0
      %p105 = por %p103, %p104
      %p106 = scmp.ne.s32.totalorder %s98, %s100
      %p107 = scmp.eq.s32.totalorder %s43, 1
      %p108 = por %p106, %p107
      %p109 = scmp.ne.s32.totalorder %s100, %s101
      %p110 = scmp.eq.s32.totalorder %s43, 0
      %p111 = por %p109, %p110
      %p112 = scmp.ne.s32.totalorder %s100, %s101
      %p113 = scmp.eq.s32.totalorder %s44, 1
      %p114 = por %p112, %p113
      %p116 = scmp.ne.s32.totalorder %s101, %s115
      %p117 = scmp.eq.s32.totalorder %s44, 0
      %p118 = por %p116, %p117
      %s120 = sadd.s32 %s119, 1
      %p123 = scmp.eq.s32.totalorder %s38, 1
      %p124 = scmp.ne.s32.totalorder %s119, %s121
      %p125 = scmp.eq.s32.totalorder %s38, 0
      %p126 = por %p124, %p125
      %p127 = scmp.ne.s32.totalorder %s119, %s121
      %p128 = scmp.eq.s32.totalorder %s43, 1
      %p129 = por %p127, %p128
      %p130 = scmp.ne.s32.totalorder %s121, %s122
      %p131 = scmp.eq.s32.totalorder %s43, 0
      %p132 = por %p130, %p131
      %p133 = scmp.ne.s32.totalorder %s121, %s122
      %p134 = scmp.eq.s32.totalorder %s44, 1
      %p135 = por %p133, %p134
      %p137 = scmp.ne.s32.totalorder %s122, %s136
      %p138 = scmp.eq.s32.totalorder %s44, 0
      %p139 = por %p137, %p138
      %s141 = sadd.s32 %s140, 1
      %p144 = scmp.eq.s32.totalorder %s38, 1
      %p145 = scmp.ne.s32.totalorder %s140, %s142
      %p146 = scmp.eq.s32.totalorder %s38, 0
      %p147 = por %p145, %p146
      %p148 = scmp.ne.s32.totalorder %s140, %s142
      %p149 = scmp.eq.s32.totalorder %s43, 1
      %p150 = por %p148, %p149
      %p151 = scmp.ne.s32.totalorder %s142, %s143
      %p152 = scmp.eq.s32.totalorder %s43, 0
      %p153 = por %p151, %p152
      %p154 = scmp.ne.s32.totalorder %s142, %s143
      %p155 = scmp.eq.s32.totalorder %s44, 1
      %p156 = por %p154, %p155
      %p158 = scmp.ne.s32.totalorder %s143, %s157
      %p159 = scmp.eq.s32.totalorder %s44, 0
      %p160 = por %p158, %p159
      %s162 = sadd.s32 %s161, 1
      %p165 = scmp.eq.s32.totalorder %s38, 1
      %p166 = scmp.ne.s32.totalorder %s161, %s163
      %p167 = scmp.eq.s32.totalorder %s38, 0
      %p168 = por %p166, %p167
      %p169 = scmp.ne.s32.totalorder %s161, %s163
      %p170 = scmp.eq.s32.totalorder %s43, 1
      %p171 = por %p169, %p170
      %p172 = scmp.ne.s32.totalorder %s163, %s164
      %p173 = scmp.eq.s32.totalorder %s43, 0
      %p174 = por %p172, %p173
      %p175 = scmp.ne.s32.totalorder %s163, %s164
      %p176 = scmp.eq.s32.totalorder %s44, 1
      %p177 = por %p175, %p176
      %p179 = scmp.ne.s32.totalorder %s164, %s178
      %p180 = scmp.eq.s32.totalorder %s44, 0
      %p181 = por %p179, %p180
      %s183 = sadd.s32 %s182, 1
      %p186 = scmp.eq.s32.totalorder %s38, 1
      %p187 = scmp.ne.s32.totalorder %s182, %s184
      %p188 = scmp.eq.s32.totalorder %s38, 0
      %p189 = por %p187, %p188
      %p190 = scmp.ne.s32.totalorder %s182, %s184
      %p191 = scmp.eq.s32.totalorder %s43, 1
      %p192 = por %p190, %p191
      %p193 = scmp.ne.s32.totalorder %s184, %s185
      %p194 = scmp.eq.s32.totalorder %s43, 0
      %p195 = por %p193, %p194
      %p196 = scmp.ne.s32.totalorder %s184, %s185
      %p197 = scmp.eq.s32.totalorder %s44, 1
      %p198 = por %p196, %p197
      %p200 = scmp.ne.s32.totalorder %s185, %s199
      %p201 = scmp.eq.s32.totalorder %s44, 0
      %p202 = por %p200, %p201
      %s204 = sadd.s32 %s203, 1
      %p207 = scmp.eq.s32.totalorder %s38, 1
      %p208 = scmp.ne.s32.totalorder %s203, %s205
      %p209 = scmp.eq.s32.totalorder %s38, 0
      %p210 = por %p208, %p209
      %p211 = scmp.ne.s32.totalorder %s203, %s205
      %p212 = scmp.eq.s32.totalorder %s43, 1
      %p213 = por %p211, %p212
      %p214 = scmp.ne.s32.totalorder %s205, %s206
      %p215 = scmp.eq.s32.totalorder %s43, 0
      %p216 = por %p214, %p215
      %p217 = scmp.ne.s32.totalorder %s205, %s206
      %p218 = scmp.eq.s32.totalorder %s44, 1
      %p219 = por %p217, %p218
      %p221 = scmp.ne.s32.totalorder %s206, %s220
      %p222 = scmp.eq.s32.totalorder %s44, 0
      %p223 = por %p221, %p222
      %s225 = sadd.s32 %s224, 1
      %p228 = scmp.eq.s32.totalorder %s38, 1
      %p229 = scmp.ne.s32.totalorder %s224, %s226
      %p230 = scmp.eq.s32.totalorder %s38, 0
      %p231 = por %p229, %p230
      %p232 = scmp.ne.s32.totalorder %s224, %s226
      %p233 = scmp.eq.s32.totalorder %s43, 1
      %p234 = por %p232, %p233
      %p235 = scmp.ne.s32.totalorder %s226, %s227
      %p236 = scmp.eq.s32.totalorder %s43, 0
      %p237 = por %p235, %p236
      %p238 = scmp.ne.s32.totalorder %s226, %s227
      %p239 = scmp.eq.s32.totalorder %s44, 1
      %p240 = por %p238, %p239
      %p242 = scmp.ne.s32.totalorder %s227, %s241
      %p243 = scmp.eq.s32.totalorder %s44, 0
      %p244 = por %p242, %p243
      %s246 = sadd.s32 %s245, 1
      %p249 = scmp.eq.s32.totalorder %s38, 1
      %p250 = scmp.ne.s32.totalorder %s245, %s247
      %p251 = scmp.eq.s32.totalorder %s38, 0
      %p252 = por %p250, %p251
      %p253 = scmp.ne.s32.totalorder %s245, %s247
      %p254 = scmp.eq.s32.totalorder %s43, 1
      %p255 = por %p253, %p254
      %p256 = scmp.ne.s32.totalorder %s247, %s248
      %p257 = scmp.eq.s32.totalorder %s43, 0
      %p258 = por %p256, %p257
      %p259 = scmp.ne.s32.totalorder %s247, %s248
      %p260 = scmp.eq.s32.totalorder %s44, 1
      %p261 = por %p259, %p260
      %p263 = scmp.ne.s32.totalorder %s248, %s262
      %p264 = scmp.eq.s32.totalorder %s44, 0
      %p265 = por %p263, %p264
      %s267 = sadd.s32 %s266, 1
      %p270 = scmp.eq.s32.totalorder %s38, 1
      %p271 = scmp.ne.s32.totalorder %s266, %s268
      %p272 = scmp.eq.s32.totalorder %s38, 0
      %p273 = por %p271, %p272
      %p274 = scmp.ne.s32.totalorder %s266, %s268
      %p275 = scmp.eq.s32.totalorder %s43, 1
      %p276 = por %p274, %p275
      %p277 = scmp.ne.s32.totalorder %s268, %s269
      %p278 = scmp.eq.s32.totalorder %s43, 0
      %p279 = por %p277, %p278
      %p280 = scmp.ne.s32.totalorder %s268, %s269
      %p281 = scmp.eq.s32.totalorder %s44, 1
      %p282 = por %p280, %p281
      %p284 = scmp.ne.s32.totalorder %s269, %s283
      %p285 = scmp.eq.s32.totalorder %s44, 0
      %p286 = por %p284, %p285
      %s288 = sadd.s32 %s287, 1
      %p291 = scmp.eq.s32.totalorder %s38, 1
      %p292 = scmp.ne.s32.totalorder %s287, %s289
      %p293 = scmp.eq.s32.totalorder %s38, 0
      %p294 = por %p292, %p293
      %p295 = scmp.ne.s32.totalorder %s287, %s289
      %p296 = scmp.eq.s32.totalorder %s43, 1
      %p297 = por %p295, %p296
      %p298 = scmp.ne.s32.totalorder %s289, %s290
      %p299 = scmp.eq.s32.totalorder %s43, 0
      %p300 = por %p298, %p299
      %p301 = scmp.ne.s32.totalorder %s289, %s290
      %p302 = scmp.eq.s32.totalorder %s44, 1
      %p303 = por %p301, %p302
      %p305 = scmp.ne.s32.totalorder %s290, %s304
      %p306 = scmp.eq.s32.totalorder %s44, 0
      %p307 = por %p305, %p306
      %s309 = sadd.s32 %s308, 1
      %p312 = scmp.eq.s32.totalorder %s38, 1
      %p313 = scmp.ne.s32.totalorder %s308, %s310
      %p314 = scmp.eq.s32.totalorder %s38, 0
      %p315 = por %p313, %p314
      %p316 = scmp.ne.s32.totalorder %s308, %s310
      %p317 = scmp.eq.s32.totalorder %s43, 1
      %p318 = por %p316, %p317
      %p319 = scmp.ne.s32.totalorder %s310, %s311
      %p320 = scmp.eq.s32.totalorder %s43, 0
      %p321 = por %p319, %p320
      %p322 = scmp.ne.s32.totalorder %s310, %s311
      %p323 = scmp.eq.s32.totalorder %s44, 1
      %p324 = por %p322, %p323
      %p326 = scmp.ne.s32.totalorder %s311, %s325
      %p327 = scmp.eq.s32.totalorder %s44, 0
      %p328 = por %p326, %p327
      %s330 = sadd.s32 %s329, 1
      %p333 = scmp.eq.s32.totalorder %s38, 1
      %p334 = scmp.ne.s32.totalorder %s329, %s331
      %p335 = scmp.eq.s32.totalorder %s38, 0
      %p336 = por %p334, %p335
      %p337 = scmp.ne.s32.totalorder %s329, %s331
      %p338 = scmp.eq.s32.totalorder %s43, 1
      %p339 = por %p337, %p338
      %p340 = scmp.ne.s32.totalorder %s331, %s332
      %p341 = scmp.eq.s32.totalorder %s43, 0
      %p342 = por %p340, %p341
      %p343 = scmp.ne.s32.totalorder %s331, %s332
      %p344 = scmp.eq.s32.totalorder %s44, 1
      %p345 = por %p343, %p344
      %p347 = scmp.ne.s32.totalorder %s332, %s346
      %p348 = scmp.eq.s32.totalorder %s44, 0
      %p349 = por %p347, %p348
      %s351 = sadd.s32 %s350, 1
      %p354 = scmp.eq.s32.totalorder %s38, 1
      %p355 = scmp.ne.s32.totalorder %s350, %s352
      %p356 = scmp.eq.s32.totalorder %s38, 0
      %p357 = por %p355, %p356
      %p358 = scmp.ne.s32.totalorder %s350, %s352
      %p359 = scmp.eq.s32.totalorder %s43, 1
      %p360 = por %p358, %p359
      %p361 = scmp.ne.s32.totalorder %s352, %s353
      %p362 = scmp.eq.s32.totalorder %s43, 0
      %p363 = por %p361, %p362
      %p364 = scmp.ne.s32.totalorder %s352, %s353
      %p365 = scmp.eq.s32.totalorder %s44, 1
      %p366 = por %p364, %p365
      %p368 = scmp.ne.s32.totalorder %s353, %s367
      %p369 = scmp.eq.s32.totalorder %s44, 0
      %p370 = por %p368, %p369
      %s372 = sadd.s32 %s371, 1
      %p375 = scmp.eq.s32.totalorder %s38, 1
      %p376 = scmp.ne.s32.totalorder %s371, %s373
      %p377 = scmp.eq.s32.totalorder %s38, 0
      %p378 = por %p376, %p377
      %p379 = scmp.ne.s32.totalorder %s371, %s373
      %p380 = scmp.eq.s32.totalorder %s43, 1
      %p381 = por %p379, %p380
      %p382 = scmp.ne.s32.totalorder %s373, %s374
      %p383 = scmp.eq.s32.totalorder %s43, 0
      %p384 = por %p382, %p383
      %p385 = scmp.ne.s32.totalorder %s373, %s374
      %p386 = scmp.eq.s32.totalorder %s44, 1
      %p387 = por %p385, %p386
      %p389 = scmp.ne.s32.totalorder %s374, %s388
      %p390 = scmp.eq.s32.totalorder %s44, 0
      %p391 = por %p389, %p390
      %s393 = sadd.s32 %s392, 1
      %p396 = scmp.eq.s32.totalorder %s38, 1
      %p397 = scmp.ne.s32.totalorder %s392, %s394
      %p398 = scmp.eq.s32.totalorder %s38, 0
      %p399 = por %p397, %p398
      %p400 = scmp.ne.s32.totalorder %s392, %s394
      %p401 = scmp.eq.s32.totalorder %s43, 1
      %p402 = por %p400, %p401
      %p403 = scmp.ne.s32.totalorder %s394, %s395
      %p404 = scmp.eq.s32.totalorder %s43, 0
      %p405 = por %p403, %p404
      %p406 = scmp.ne.s32.totalorder %s394, %s395
      %p407 = scmp.eq.s32.totalorder %s44, 1
      %p408 = por %p406, %p407
      %p410 = scmp.ne.s32.totalorder %s395, %s409
      %p411 = scmp.eq.s32.totalorder %s44, 0
      %p412 = por %p410, %p411
      %s414 = sadd.s32 %s413, 1
      %p417 = scmp.eq.s32.totalorder %s38, 1
      %p418 = scmp.ne.s32.totalorder %s413, %s415
      %p419 = scmp.eq.s32.totalorder %s38, 0
      %p420 = por %p418, %p419
      %p421 = scmp.ne.s32.totalorder %s413, %s415
      %p422 = scmp.eq.s32.totalorder %s43, 1
      %p423 = por %p421, %p422
      %p424 = scmp.ne.s32.totalorder %s415, %s416
      %p425 = scmp.eq.s32.totalorder %s43, 0
      %p426 = por %p424, %p425
      %p427 = scmp.ne.s32.totalorder %s415, %s416
      %p428 = scmp.eq.s32.totalorder %s44, 1
      %p429 = por %p427, %p428
      %p431 = scmp.ne.s32.totalorder %s416, %s430
      %p432 = scmp.eq.s32.totalorder %s44, 0
      %p433 = por %p431, %p432
      %s435 = sadd.s32 %s434, 1
      %p438 = scmp.eq.s32.totalorder %s38, 1
      %p439 = scmp.ne.s32.totalorder %s434, %s436
      %p440 = scmp.eq.s32.totalorder %s38, 0
      %p441 = por %p439, %p440
      %p442 = scmp.ne.s32.totalorder %s434, %s436
      %p443 = scmp.eq.s32.totalorder %s43, 1
      %p444 = por %p442, %p443
      %p445 = scmp.ne.s32.totalorder %s436, %s437
      %p446 = scmp.eq.s32.totalorder %s43, 0
      %p447 = por %p445, %p446
      %p448 = scmp.ne.s32.totalorder %s436, %s437
      %p449 = scmp.eq.s32.totalorder %s44, 1
      %p450 = por %p448, %p449
      %p452 = scmp.ne.s32.totalorder %s437, %s451
      %p453 = scmp.eq.s32.totalorder %s44, 0
      %p454 = por %p452, %p453
      %s456 = sadd.s32 %s455, 1
      %p459 = scmp.eq.s32.totalorder %s38, 1
      %p460 = scmp.ne.s32.totalorder %s455, %s457
      %p461 = scmp.eq.s32.totalorder %s38, 0
      %p462 = por %p460, %p461
      %p463 = scmp.ne.s32.totalorder %s455, %s457
      %p464 = scmp.eq.s32.totalorder %s43, 1
      %p465 = por %p463, %p464
      %p466 = scmp.ne.s32.totalorder %s457, %s458
      %p467 = scmp.eq.s32.totalorder %s43, 0
      %p468 = por %p466, %p467
      %p469 = scmp.ne.s32.totalorder %s457, %s458
      %p470 = scmp.eq.s32.totalorder %s44, 1
      %p471 = por %p469, %p470
      %p473 = scmp.ne.s32.totalorder %s458, %s472
      %p474 = scmp.eq.s32.totalorder %s44, 0
      %p475 = por %p473, %p474
      %s477 = sadd.s32 %s476, 1
      %p480 = scmp.eq.s32.totalorder %s38, 1
      %p481 = scmp.ne.s32.totalorder %s476, %s478
      %p482 = scmp.eq.s32.totalorder %s38, 0
      %p483 = por %p481, %p482
      %p484 = scmp.ne.s32.totalorder %s476, %s478
      %p485 = scmp.eq.s32.totalorder %s43, 1
      %p486 = por %p484, %p485
      %p487 = scmp.ne.s32.totalorder %s478, %s479
      %p488 = scmp.eq.s32.totalorder %s43, 0
      %p489 = por %p487, %p488
      %p490 = scmp.ne.s32.totalorder %s478, %s479
      %p491 = scmp.eq.s32.totalorder %s44, 1
      %p492 = por %p490, %p491
      %p494 = scmp.ne.s32.totalorder %s479, %s493
      %p495 = scmp.eq.s32.totalorder %s44, 0
      %p496 = por %p494, %p495
      %s498 = sadd.s32 %s497, 1
      %p501 = scmp.eq.s32.totalorder %s38, 1
      %p502 = scmp.ne.s32.totalorder %s497, %s499
      %p503 = scmp.eq.s32.totalorder %s38, 0
      %p504 = por %p502, %p503
      %p505 = scmp.ne.s32.totalorder %s497, %s499
      %p506 = scmp.eq.s32.totalorder %s43, 1
      %p507 = por %p505, %p506
      %p508 = scmp.ne.s32.totalorder %s499, %s500
      %p509 = scmp.eq.s32.totalorder %s43, 0
      %p510 = por %p508, %p509
      %p511 = scmp.ne.s32.totalorder %s499, %s500
      %p512 = scmp.eq.s32.totalorder %s44, 1
      %p513 = por %p511, %p512
      %p515 = scmp.ne.s32.totalorder %s500, %s514
      %p516 = scmp.eq.s32.totalorder %s44, 0
      %p517 = por %p515, %p516
      %s519 = sadd.s32 %s518, 1
      %p522 = scmp.eq.s32.totalorder %s38, 1
      %p523 = scmp.ne.s32.totalorder %s518, %s520
      %p524 = scmp.eq.s32.totalorder %s38, 0
      %p525 = por %p523, %p524
      %p526 = scmp.ne.s32.totalorder %s518, %s520
      %p527 = scmp.eq.s32.totalorder %s43, 1
      %p528 = por %p526, %p527
      %p529 = scmp.ne.s32.totalorder %s520, %s521
      %p530 = scmp.eq.s32.totalorder %s43, 0
      %p531 = por %p529, %p530
      %p532 = scmp.ne.s32.totalorder %s520, %s521
      %p533 = scmp.eq.s32.totalorder %s44, 1
      %p534 = por %p532, %p533
      %p536 = scmp.ne.s32.totalorder %s521, %s535
      %p537 = scmp.eq.s32.totalorder %s44, 0
      %p538 = por %p536, %p537
      %s540 = sadd.s32 %s539, 1
      %p543 = scmp.eq.s32.totalorder %s38, 1
      %p544 = scmp.ne.s32.totalorder %s539, %s541
      %p545 = scmp.eq.s32.totalorder %s38, 0
      %p546 = por %p544, %p545
      %p547 = scmp.ne.s32.totalorder %s539, %s541
      %p548 = scmp.eq.s32.totalorder %s43, 1
      %p549 = por %p547, %p548
      %p550 = scmp.ne.s32.totalorder %s541, %s542
      %p551 = scmp.eq.s32.totalorder %s43, 0
      %p552 = por %p550, %p551
      %p553 = scmp.ne.s32.totalorder %s541, %s542
      %p554 = scmp.eq.s32.totalorder %s44, 1
      %p555 = por %p553, %p554
      %p557 = scmp.ne.s32.totalorder %s542, %s556
      %p558 = scmp.eq.s32.totalorder %s44, 0
      %p559 = por %p557, %p558
      %s561 = sadd.s32 %s560, 1
      %p564 = scmp.eq.s32.totalorder %s38, 1
      %p565 = scmp.ne.s32.totalorder %s560, %s562
      %p566 = scmp.eq.s32.totalorder %s38, 0
      %p567 = por %p565, %p566
      %p568 = scmp.ne.s32.totalorder %s560, %s562
      %p569 = scmp.eq.s32.totalorder %s43, 1
      %p570 = por %p568, %p569
      %p571 = scmp.ne.s32.totalorder %s562, %s563
      %p572 = scmp.eq.s32.totalorder %s43, 0
      %p573 = por %p571, %p572
      %p574 = scmp.ne.s32.totalorder %s562, %s563
      %p575 = scmp.eq.s32.totalorder %s44, 1
      %p576 = por %p574, %p575
      %p578 = scmp.ne.s32.totalorder %s563, %s577
      %p579 = scmp.eq.s32.totalorder %s44, 0
      %p580 = por %p578, %p579
      %s582 = sadd.s32 %s581, 1
      %p585 = scmp.eq.s32.totalorder %s38, 1
      %p586 = scmp.ne.s32.totalorder %s581, %s583
      %p587 = scmp.eq.s32.totalorder %s38, 0
      %p588 = por %p586, %p587
      %p589 = scmp.ne.s32.totalorder %s581, %s583
      %p590 = scmp.eq.s32.totalorder %s43, 1
      %p591 = por %p589, %p590
      %p592 = scmp.ne.s32.totalorder %s583, %s584
      %p593 = scmp.eq.s32.totalorder %s43, 0
      %p594 = por %p592, %p593
      %p595 = scmp.ne.s32.totalorder %s583, %s584
      %p596 = scmp.eq.s32.totalorder %s44, 1
      %p597 = por %p595, %p596
      %p599 = scmp.ne.s32.totalorder %s584, %s598
      %p600 = scmp.eq.s32.totalorder %s44, 0
      %p601 = por %p599, %p600
      %s603 = sadd.s32 %s602, 1
      %p606 = scmp.eq.s32.totalorder %s38, 1
      %p607 = scmp.ne.s32.totalorder %s602, %s604
      %p608 = scmp.eq.s32.totalorder %s38, 0
      %p609 = por %p607, %p608
      %p610 = scmp.ne.s32.totalorder %s602, %s604
      %p611 = scmp.eq.s32.totalorder %s43, 1
      %p612 = por %p610, %p611
      %p613 = scmp.ne.s32.totalorder %s604, %s605
      %p614 = scmp.eq.s32.totalorder %s43, 0
      %p615 = por %p613, %p614
      %p616 = scmp.ne.s32.totalorder %s604, %s605
      %p617 = scmp.eq.s32.totalorder %s44, 1
      %p618 = por %p616, %p617
      %p620 = scmp.ne.s32.totalorder %s605, %s619
      %p621 = scmp.eq.s32.totalorder %s44, 0
      %p622 = por %p620, %p621
      %s623 = ssub.s32 %s38, %s45
      %p624 = scmp.eq.s32.totalorder %s623, 0
      %s626 = sadd.s32 %s625, 1
      %s627 = scalar_select %p624, %s625, %s626
      %p630 = pneg %p624
      %p631 = scmp.eq.s32.totalorder %s38, 1
      %p632 = por %p630, %p631
      %p633 = scmp.ne.s32.totalorder %s625, %s628
      %p634 = scmp.eq.s32.totalorder %s38, 0
      %p635 = por %p633, %p634
      %p636 = scmp.ne.s32.totalorder %s625, %s628
      %p637 = scmp.eq.s32.totalorder %s43, 1
      %p638 = por %p636, %p637
      %p639 = scmp.ne.s32.totalorder %s628, %s629
      %p640 = scmp.eq.s32.totalorder %s43, 0
      %p641 = por %p639, %p640
      %p642 = scmp.ne.s32.totalorder %s628, %s629
      %p643 = scmp.eq.s32.totalorder %s44, 1
      %p644 = por %p642, %p643
      %p646 = scmp.ne.s32.totalorder %s629, %s645
      %p647 = scmp.eq.s32.totalorder %s44, 0
      %p648 = por %p646, %p647
      %p649 = scmp.le.s32.totalorder 1, %s38
      %p650 = scmp.lt.s32.totalorder %s38, 3
      %p651 = pnand %p649, %p650
      %p652 = pneg %p651
      // Predicated region
      $region9: #{tpu_custom_call.1} parent=5 // pred_check
        _
      $region10: #{tpu_custom_call.1} parent=5 // pred_check_branch
        %654 = sbr.rel (%p651) target = $region12
      $region11: #{tpu_custom_call.1} parent=5 // pred_region
        %s655 = ssub.s32 %s38, 1
        // Predicated region
        $region13: #{tpu_custom_call.1} parent=11 // pred_check
          %p656 = pneg %p111
        $region14: #{tpu_custom_call.1} parent=11 // pred_check_branch
          %658 = sbr.rel (%p656) target = $region16
        $region15: #{tpu_custom_call.1} parent=11 // pred_region
          _
        $region16: #{tpu_custom_call.1} parent=11 // pred_fallthru
          _
        // Predicated region
        $region17: #{tpu_custom_call.1} parent=11 // pred_check
          %p659 = pneg %p132
        $region18: #{tpu_custom_call.1} parent=11 // pred_check_branch
          %661 = sbr.rel (%p659) target = $region20
        $region19: #{tpu_custom_call.1} parent=11 // pred_region
          _
        $region20: #{tpu_custom_call.1} parent=11 // pred_fallthru
          _
        // Predicated region
        $region21: #{tpu_custom_call.1} parent=11 // pred_check
          %p662 = pneg %p153
        $region22: #{tpu_custom_call.1} parent=11 // pred_check_branch
          %664 = sbr.rel (%p662) target = $region24
        $region23: #{tpu_custom_call.1} parent=11 // pred_region
          _
        $region24: #{tpu_custom_call.1} parent=11 // pred_fallthru
          _
        // Predicated region
        $region25: #{tpu_custom_call.1} parent=11 // pred_check
          %p665 = pneg %p174
        $region26: #{tpu_custom_call.1} parent=11 // pred_check_branch
          %667 = sbr.rel (%p665) target = $region28
        $region27: #{tpu_custom_call.1} parent=11 // pred_region
          _
        $region28: #{tpu_custom_call.1} parent=11 // pred_fallthru
          _
        // Predicated region
        $region29: #{tpu_custom_call.1} parent=11 // pred_check
          %p668 = pneg %p195
        $region30: #{tpu_custom_call.1} parent=11 // pred_check_branch
          %670 = sbr.rel (%p668) target = $region32
        $region31: #{tpu_custom_call.1} parent=11 // pred_region
          _
        $region32: #{tpu_custom_call.1} parent=11 // pred_fallthru
          _
        // Predicated region
        $region33: #{tpu_custom_call.1} parent=11 // pred_check
          %p671 = pneg %p216
        $region34: #{tpu_custom_call.1} parent=11 // pred_check_branch
          %673 = sbr.rel (%p671) target = $region36
        $region35: #{tpu_custom_call.1} parent=11 // pred_region
          _
        $region36: #{tpu_custom_call.1} parent=11 // pred_fallthru
          _
        // Predicated region
        $region37: #{tpu_custom_call.1} parent=11 // pred_check
          %p674 = pneg %p237
        $region38: #{tpu_custom_call.1} parent=11 // pred_check_branch
          %676 = sbr.rel (%p674) target = $region40
        $region39: #{tpu_custom_call.1} parent=11 // pred_region
          %s678 = ssub.s32 32, 32
          %679 = vsyncadd [#allocation3], %s678
          %s680 = sshll.u32 [#allocation2], 4
          %s681 = int_to_ptr.vmem [resolvable:$true] %s680
          %686 = dma.hbm_to_vmem [thread:$0]  %s8, 32, %s681, [#allocation3], 16, 16, 1
        $region40: #{tpu_custom_call.1} parent=11 // pred_fallthru
          _
        // Predicated region
        $region41: #{tpu_custom_call.1} parent=11 // pred_check
          %p687 = pneg %p258
        $region42: #{tpu_custom_call.1} parent=11 // pred_check_branch
          %689 = sbr.rel (%p687) target = $region44
        $region43: #{tpu_custom_call.1} parent=11 // pred_region
          _
        $region44: #{tpu_custom_call.1} parent=11 // pred_fallthru
          _
        // Predicated region
        $region45: #{tpu_custom_call.1} parent=11 // pred_check
          %p690 = pneg %p279
        $region46: #{tpu_custom_call.1} parent=11 // pred_check_branch
          %692 = sbr.rel (%p690) target = $region48
        $region47: #{tpu_custom_call.1} parent=11 // pred_region
          %s694 = ssub.s32 32, 32
          %695 = vsyncadd [#allocation6], %s694
          %s696 = sshll.u32 [#allocation5], 4
          %s697 = int_to_ptr.vmem [resolvable:$true] %s696
          %702 = dma.hbm_to_vmem [thread:$0]  %s10, 32, %s697, [#allocation6], 16, 16, 1
        $region48: #{tpu_custom_call.1} parent=11 // pred_fallthru
          _
        // Predicated region
        $region49: #{tpu_custom_call.1} parent=11 // pred_check
          %p703 = pneg %p300
        $region50: #{tpu_custom_call.1} parent=11 // pred_check_branch
          %705 = sbr.rel (%p703) target = $region52
        $region51: #{tpu_custom_call.1} parent=11 // pred_region
          _
        $region52: #{tpu_custom_call.1} parent=11 // pred_fallthru
          _
        // Predicated region
        $region53: #{tpu_custom_call.1} parent=11 // pred_check
          %p706 = pneg %p321
        $region54: #{tpu_custom_call.1} parent=11 // pred_check_branch
          %708 = sbr.rel (%p706) target = $region56
        $region55: #{tpu_custom_call.1} parent=11 // pred_region
          _
        $region56: #{tpu_custom_call.1} parent=11 // pred_fallthru
          _
        // Predicated region
        $region57: #{tpu_custom_call.1} parent=11 // pred_check
          %p709 = pneg %p342
        $region58: #{tpu_custom_call.1} parent=11 // pred_check_branch
          %711 = sbr.rel (%p709) target = $region60
        $region59: #{tpu_custom_call.1} parent=11 // pred_region
          _
        $region60: #{tpu_custom_call.1} parent=11 // pred_fallthru
          _
        // Predicated region
        $region61: #{tpu_custom_call.1} parent=11 // pred_check
          %p712 = pneg %p363
        $region62: #{tpu_custom_call.1} parent=11 // pred_check_branch
          %714 = sbr.rel (%p712) target = $region64
        $region63: #{tpu_custom_call.1} parent=11 // pred_region
          _
        $region64: #{tpu_custom_call.1} parent=11 // pred_fallthru
          _
        // Predicated region
        $region65: #{tpu_custom_call.1} parent=11 // pred_check
          %p715 = pneg %p384
        $region66: #{tpu_custom_call.1} parent=11 // pred_check_branch
          %717 = sbr.rel (%p715) target = $region68
        $region67: #{tpu_custom_call.1} parent=11 // pred_region
          _
        $region68: #{tpu_custom_call.1} parent=11 // pred_fallthru
          _
        // Predicated region
        $region69: #{tpu_custom_call.1} parent=11 // pred_check
          %p718 = pneg %p405
        $region70: #{tpu_custom_call.1} parent=11 // pred_check_branch
          %720 = sbr.rel (%p718) target = $region72
        $region71: #{tpu_custom_call.1} parent=11 // pred_region
          _
        $region72: #{tpu_custom_call.1} parent=11 // pred_fallthru
          _
        // Predicated region
        $region73: #{tpu_custom_call.1} parent=11 // pred_check
          %p721 = pneg %p426
        $region74: #{tpu_custom_call.1} parent=11 // pred_check_branch
          %723 = sbr.rel (%p721) target = $region76
        $region75: #{tpu_custom_call.1} parent=11 // pred_region
          _
        $region76: #{tpu_custom_call.1} parent=11 // pred_fallthru
          _
        // Predicated region
        $region77: #{tpu_custom_call.1} parent=11 // pred_check
          %p724 = pneg %p447
        $region78: #{tpu_custom_call.1} parent=11 // pred_check_branch
          %726 = sbr.rel (%p724) target = $region80
        $region79: #{tpu_custom_call.1} parent=11 // pred_region
          _
        $region80: #{tpu_custom_call.1} parent=11 // pred_fallthru
          _
        // Predicated region
        $region81: #{tpu_custom_call.1} parent=11 // pred_check
          %p727 = pneg %p468
        $region82: #{tpu_custom_call.1} parent=11 // pred_check_branch
          %729 = sbr.rel (%p727) target = $region84
        $region83: #{tpu_custom_call.1} parent=11 // pred_region
          _
        $region84: #{tpu_custom_call.1} parent=11 // pred_fallthru
          _
        // Predicated region
        $region85: #{tpu_custom_call.1} parent=11 // pred_check
          %p730 = pneg %p489
        $region86: #{tpu_custom_call.1} parent=11 // pred_check_branch
          %732 = sbr.rel (%p730) target = $region88
        $region87: #{tpu_custom_call.1} parent=11 // pred_region
          _
        $region88: #{tpu_custom_call.1} parent=11 // pred_fallthru
          _
        // Predicated region
        $region89: #{tpu_custom_call.1} parent=11 // pred_check
          %p733 = pneg %p510
        $region90: #{tpu_custom_call.1} parent=11 // pred_check_branch
          %735 = sbr.rel (%p733) target = $region92
        $region91: #{tpu_custom_call.1} parent=11 // pred_region
          _
        $region92: #{tpu_custom_call.1} parent=11 // pred_fallthru
          _
        // Predicated region
        $region93: #{tpu_custom_call.1} parent=11 // pred_check
          %p736 = pneg %p531
        $region94: #{tpu_custom_call.1} parent=11 // pred_check_branch
          %738 = sbr.rel (%p736) target = $region96
        $region95: #{tpu_custom_call.1} parent=11 // pred_region
          _
        $region96: #{tpu_custom_call.1} parent=11 // pred_fallthru
          _
        // Predicated region
        $region97: #{tpu_custom_call.1} parent=11 // pred_check
          %p739 = pneg %p552
        $region98: #{tpu_custom_call.1} parent=11 // pred_check_branch
          %741 = sbr.rel (%p739) target = $region100
        $region99: #{tpu_custom_call.1} parent=11 // pred_region
          _
        $region100: #{tpu_custom_call.1} parent=11 // pred_fallthru
          _
        // Predicated region
        $region101: #{tpu_custom_call.1} parent=11 // pred_check
          %p742 = pneg %p573
        $region102: #{tpu_custom_call.1} parent=11 // pred_check_branch
          %744 = sbr.rel (%p742) target = $region104
        $region103: #{tpu_custom_call.1} parent=11 // pred_region
          _
        $region104: #{tpu_custom_call.1} parent=11 // pred_fallthru
          _
        // Predicated region
        $region105: #{tpu_custom_call.1} parent=11 // pred_check
          %p745 = pneg %p594
        $region106: #{tpu_custom_call.1} parent=11 // pred_check_branch
          %747 = sbr.rel (%p745) target = $region108
        $region107: #{tpu_custom_call.1} parent=11 // pred_region
          _
        $region108: #{tpu_custom_call.1} parent=11 // pred_fallthru
          _
        // Predicated region
        $region109: #{tpu_custom_call.1} parent=11 // pred_check
          %p748 = pneg %p615
        $region110: #{tpu_custom_call.1} parent=11 // pred_check_branch
          %750 = sbr.rel (%p748) target = $region112
        $region111: #{tpu_custom_call.1} parent=11 // pred_region
          _
        $region112: #{tpu_custom_call.1} parent=11 // pred_fallthru
          _
      $region12: #{tpu_custom_call.1} parent=5 // pred_fallthru
        _
      %p751 = scmp.lt.s32.totalorder %s38, 2
      // Predicated region
      $region113: #{tpu_custom_call.1} parent=5 // pred_check
        %p752 = pneg %p751
      $region114: #{tpu_custom_call.1} parent=5 // pred_check_branch
        %754 = sbr.rel (%p752) target = $region116
      $region115: #{tpu_custom_call.1} parent=5 // pred_region
        // Predicated region
        $region117: #{tpu_custom_call.1} parent=115 // pred_check
          %p755 = pneg %p58
        $region118: #{tpu_custom_call.1} parent=115 // pred_check_branch
          %757 = sbr.rel (%p755) target = $region120
        $region119: #{tpu_custom_call.1} parent=115 // pred_region
          %p758 = scmp.lt.s32.totalorder %s38, 1
          %s759 = scalar_select %p758, %s38, 1
          %s760 = smul.addr %s759, 4
          %s761 = smul.addr %s760, 8
          %s762 = scalar_lea.vmem %s0, %s761
        $region120: #{tpu_custom_call.1} parent=115 // pred_fallthru
          _
        // Predicated region
        $region121: #{tpu_custom_call.1} parent=115 // pred_check
          %p763 = pneg %p84
        $region122: #{tpu_custom_call.1} parent=115 // pred_check_branch
          %765 = sbr.rel (%p763) target = $region124
        $region123: #{tpu_custom_call.1} parent=115 // pred_region
          %p766 = scmp.lt.s32.totalorder %s38, 1
          %s767 = scalar_select %p766, %s38, 1
          %s768 = scalar_lea.vmem %s1, %s767
        $region124: #{tpu_custom_call.1} parent=115 // pred_fallthru
          _
      $region116: #{tpu_custom_call.1} parent=5 // pred_fallthru
        _
      %p769 = scmp.le.s32.totalorder 1, %s38
      %p770 = scmp.lt.s32.totalorder %s38, 3
      %p771 = pnand %p769, %p770
      %p772 = pneg %p771
      // Predicated region
      $region125: #{tpu_custom_call.1} parent=5 // pred_check
        _
      $region126: #{tpu_custom_call.1} parent=5 // pred_check_branch
        %774 = sbr.rel (%p771) target = $region128
      $region127: #{tpu_custom_call.1} parent=5 // pred_region
        %s775 = ssub.s32 %s38, 1
        // Predicated region
        $region129: #{tpu_custom_call.1} parent=127 // pred_check
          %p776 = pneg %p237
        $region130: #{tpu_custom_call.1} parent=127 // pred_check_branch
          %778 = sbr.rel (%p776) target = $region132
        $region131: #{tpu_custom_call.1} parent=127 // pred_region
          %779 = dma.done [#allocation3], 32
        $region132: #{tpu_custom_call.1} parent=127 // pred_fallthru
          _
        // Predicated region
        $region133: #{tpu_custom_call.1} parent=127 // pred_check
          %p780 = pneg %p279
        $region134: #{tpu_custom_call.1} parent=127 // pred_check_branch
          %782 = sbr.rel (%p780) target = $region136
        $region135: #{tpu_custom_call.1} parent=127 // pred_region
          %783 = dma.done [#allocation6], 32
        $region136: #{tpu_custom_call.1} parent=127 // pred_fallthru
          _
        %p784 = scmp.lt.s32.totalorder %s43, 1
        %s785 = scalar_select %p784, %s43, 1
        %s786 = smul.addr %s785, 4
        %s787 = smul.addr %s786, 8
        %s788 = scalar_lea.vmem %s0, %s787
        %p789 = pneg %p64
        %p790 = pneg %p61
        %p791 = scmp.lt.s32.totalorder %s43, 1
        %s792 = scalar_select %p791, %s43, 1
        %s793 = scalar_lea.vmem %s1, %s792
        %p794 = pneg %p90
        %p795 = pneg %p87
        %p796 = pneg %p111
        %p797 = pneg %p108
        %p798 = pneg %p132
        %p799 = pneg %p129
        %p800 = pneg %p153
        %p801 = pneg %p150
        %p802 = pneg %p174
        %p803 = pneg %p171
        %p804 = pneg %p195
        %p805 = pneg %p192
        %p806 = pneg %p216
        %p807 = pneg %p213
        %p808 = pneg %p237
        %p809 = pneg %p234
        %p810 = pneg %p258
        %p811 = pneg %p255
        %p812 = pneg %p279
        %p813 = pneg %p276
        %p814 = pneg %p300
        %p815 = pneg %p297
        %p816 = pneg %p321
        %p817 = pneg %p318
        %p818 = pneg %p342
        %p819 = pneg %p339
        %p820 = pneg %p363
        %p821 = pneg %p360
        %p822 = pneg %p384
        %p823 = pneg %p381
        %p824 = pneg %p405
        %p825 = pneg %p402
        %p826 = pneg %p426
        %p827 = pneg %p423
        %p828 = pneg %p447
        %p829 = pneg %p444
        %p830 = pneg %p468
        %p831 = pneg %p465
        %p832 = pneg %p489
        %p833 = pneg %p486
        %p834 = pneg %p510
        %p835 = pneg %p507
        %p836 = pneg %p531
        %p837 = pneg %p528
        %p838 = pneg %p552
        %p839 = pneg %p549
        %p840 = pneg %p573
        %p841 = pneg %p570
        %p842 = pneg %p594
        %p843 = pneg %p591
        %p844 = pneg %p615
        %p845 = pneg %p612
        %p846 = pneg %p641
        %p847 = pneg %p638
        %s848 = sand.u32 %s628, 1
        %s849 = scalar_lea.sflag [#allocation4], %s848
        %s850 = sand.u32 %s628, 1
        %s851 = scalar_lea.vmem [#allocation7], %s850
        %p852 = scmp.lt.s32.totalorder %s43, 1
        %s853 = scalar_select %p852, %s43, 1
        %s854 = smul.addr %s853, 4
        %s855 = smul.addr %s854, 8
        %s856 = scalar_lea.vmem %s0, %s855
        %p857 = scmp.lt.s32.totalorder %s43, 1
        %s858 = scalar_select %p857, %s43, 1
        %s859 = scalar_lea.vmem %s1, %s858
        %v861 = vld [vmem:[%s4] sm:$0xff]
        %v862 = vld [vmem:[%s4 + $0x8] sm:$0xff]
        %v863 = vld [vmem:[%s4 + $0x10] sm:$0xff]
        %v864 = vld [vmem:[%s4 + $0x18] sm:$0xff]
        %v865 = vld [vmem:[%s2] sm:$0xff]
        %v866 = vld [vmem:[%s2 + $0x8] sm:$0xff]
        %v867 = vld [vmem:[%s2 + $0x10] sm:$0xff]
        %v868 = vld [vmem:[%s2 + $0x18] sm:$0xff]
        %v869 = vld [vmem:[%s2 + $0x20] sm:$0xff]
        %v870 = vld [vmem:[%s2 + $0x28] sm:$0xff]
        %v871 = vld [vmem:[%s2 + $0x30] sm:$0xff]
        %v872 = vld [vmem:[%s2 + $0x38] sm:$0xff]
        %v873 = vld [vmem:[%s2 + $0x40] sm:$0xff]
        %v874 = vld [vmem:[%s2 + $0x48] sm:$0xff]
        %v875 = vld [vmem:[%s2 + $0x50] sm:$0xff]
        %v876 = vld [vmem:[%s2 + $0x58] sm:$0xff]
        %v877 = vld [vmem:[%s2 + $0x60] sm:$0xff]
        %v878 = vld [vmem:[%s2 + $0x68] sm:$0xff]
        %v879 = vld [vmem:[%s2 + $0x70] sm:$0xff]
        %v880 = vld [vmem:[%s2 + $0x78] sm:$0xff]
        %v881 = vpack.c.bf16 %v866, %v865
        %v882 = vpack.c.bf16 %v868, %v867
        %v883 = vpack.c.bf16 %v870, %v869
        %v884 = vpack.c.bf16 %v872, %v871
        %v885 = vpack.c.bf16 %v874, %v873
        %v886 = vpack.c.bf16 %v876, %v875
        %v887 = vpack.c.bf16 %v878, %v877
        %v888 = vpack.c.bf16 %v880, %v879
        %v889 = vld [vmem:[%s859] sm:$0x1]
        %v891 = vlaneseq
        %v892 = vshrl.u32 %v891, 7
        %v893 = vsub.s32 0, %v892
        %v894 = vrot.slane %v889, %v893
        %v896 = vld [vmem:[%s856] sm:$0xff]
        %v897 = vld [vmem:[%s856 + $0x8] sm:$0xff]
        %v898 = vld [vmem:[%s856 + $0x10] sm:$0xff]
        %v899 = vld [vmem:[%s856 + $0x18] sm:$0xff]
        %v900 = vld [vmem:[%s3] sm:$0xf]
        %v901 = vld [vmem:[%s3 + $0x4] sm:$0xf]
        %v902 = vld [vmem:[%s3 + $0x8] sm:$0xf]
        %v903 = vld [vmem:[%s3 + $0xc] sm:$0xf]
        %v904 = vld [vmem:[%s3 + $0x10] sm:$0xf]
        %v905 = vld [vmem:[%s3 + $0x14] sm:$0xf]
        %v906 = vld [vmem:[%s3 + $0x18] sm:$0xf]
        %v907 = vld [vmem:[%s3 + $0x1c] sm:$0xf]
        %v908 = vld [vmem:[%s3 + $0x20] sm:$0xf]
        %v909 = vld [vmem:[%s3 + $0x24] sm:$0xf]
        %v910 = vld [vmem:[%s3 + $0x28] sm:$0xf]
        %v911 = vld [vmem:[%s3 + $0x2c] sm:$0xf]
        %v912 = vld [vmem:[%s3 + $0x30] sm:$0xf]
        %v913 = vld [vmem:[%s3 + $0x34] sm:$0xf]
        %v914 = vld [vmem:[%s3 + $0x38] sm:$0xf]
        %v915 = vld [vmem:[%s3 + $0x3c] sm:$0xf]
        %v916 = vpack.c.bf16 %v897, %v896
        %v917 = vpack.c.bf16 %v899, %v898
        %v934 = vunpack.c.l.b16 %v900
        %v935 = vunpack.c.l.b16 %v901
        %v936 = vunpack.c.l.b16 %v902
        %v937 = vunpack.c.l.b16 %v903
        %v938 = vunpack.c.l.b16 %v904
        %v939 = vunpack.c.l.b16 %v905
        %v940 = vunpack.c.l.b16 %v906
        %v941 = vunpack.c.l.b16 %v907
        %v942 = vunpack.c.l.b16 %v908
        %v943 = vunpack.c.l.b16 %v909
        %v944 = vunpack.c.l.b16 %v910
        %v945 = vunpack.c.l.b16 %v911
        %v946 = vunpack.c.l.b16 %v912
        %v947 = vunpack.c.l.b16 %v913
        %v948 = vunpack.c.l.b16 %v914
        %v949 = vunpack.c.l.b16 %v915
        %v950 = vpack.c.b16 %v935, %v934
        %v951 = vpack.c.b16 %v937, %v936
        %v952 = vpack.c.b16 %v939, %v938
        %v953 = vpack.c.b16 %v941, %v940
        %v954 = vpack.c.b16 %v943, %v942
        %v955 = vpack.c.b16 %v945, %v944
        %v956 = vpack.c.b16 %v947, %v946
        %v957 = vpack.c.b16 %v949, %v948
        %966 = vmatprep.subr.bf16.mxu0 0
        %967 = vmatpush1.bf16.msra.mxu0 %v950
        %968 = vmatprep.subr.bf16.mxu0 0
        %969 = vmatpush1.bf16.msra.mxu0 %v951
        %970 = vmatprep.subr.bf16.mxu0 0
        %971 = vmatpush1.bf16.msra.mxu0 %v952
        %972 = vmatprep.subr.bf16.mxu0 0
        %973 = vmatpush1.bf16.msra.mxu0 %v953
        %974 = vmatprep.subr.bf16.mxu0 0
        %975 = vmatpush1.bf16.msra.mxu0 %v954
        %976 = vmatprep.subr.bf16.mxu0 0
        %977 = vmatpush1.bf16.msra.mxu0 %v955
        %978 = vmatprep.subr.bf16.mxu0 0
        %979 = vmatpush1.bf16.msra.mxu0 %v956
        %980 = vmatprep.subr.bf16.mxu0 0
        %981 = vmatpush1.bf16.msra.mxu0 %v957
        %982 = vmatprep.subr.bf16.mxu0 0
        %983 = vmatpush1.bf16.msra.mxu0 0
        %984 = vmatprep.subr.bf16.mxu0 0
        %985 = vmatpush1.bf16.msra.mxu0 0
        %986 = vmatprep.subr.bf16.mxu0 0
        %987 = vmatpush1.bf16.msra.mxu0 0
        %988 = vmatprep.subr.bf16.mxu0 0
        %989 = vmatpush1.bf16.msra.mxu0 0
        %990 = vmatprep.subr.bf16.mxu0 0
        %991 = vmatpush1.bf16.msra.mxu0 0
        %992 = vmatprep.subr.bf16.mxu0 0
        %993 = vmatpush1.bf16.msra.mxu0 0
        %994 = vmatprep.subr.bf16.mxu0 0
        %995 = vmatpush1.bf16.msra.mxu0 0
        %996 = vmatprep.subr.bf16.mxu0 0
        %997 = vmatpush1.bf16.msra.mxu0 0
        %998 = vmatprep.mubr.bf16.mxu0 0
        %999 = vmatmul.mubr.bf16.gmra.mrb[0].mxu0 %v916
        %v1000 = vpop.f32.mrb[0].mxu0
        %v1001 = vadd.f32 0.0, %v1000
        %v1002 = vpop.f32.mrb[0].mxu0
        %v1003 = vpop.f32.mrb[0].mxu0
        %v1004 = vadd.f32 0.0, %v1003
        %v1005 = vpop.f32.mrb[0].mxu0
        %1006 = vmatprep.mubr.bf16.mxu0 0
        %1007 = vmatmul.mubr.bf16.gmra.mrb[0].mxu0 %v917
        %v1008 = vpop.f32.mrb[0].mxu0
        %v1009 = vadd.f32 0.0, %v1008
        %v1010 = vpop.f32.mrb[0].mxu0
        %v1011 = vpop.f32.mrb[0].mxu0
        %v1012 = vadd.f32 0.0, %v1011
        %v1013 = vpop.f32.mrb[0].mxu0
        %1014 = vdwg.mxu0
        %v1015 = vadd.f32 %v1001, %v861
        %v1016 = vadd.f32 %v1004, %v862
        %v1017 = vadd.f32 %v1009, %v863
        %v1018 = vadd.f32 %v1012, %v864
        %v1019 = vld [vmem:[%s5] sm:$0xf]
        %v1020 = vld [vmem:[%s5 + $0x4] sm:$0xf]
        %v1021 = vld [vmem:[%s5 + $0x8] sm:$0xf]
        %v1022 = vld [vmem:[%s5 + $0xc] sm:$0xf]
        %v1023 = vpack.c.bf16 %v1016, %v1015
        %v1024 = vpack.c.bf16 %v1018, %v1017
        %v1025 = vld [vmem:[%s6] sm:$0x1]
        %v1027 = vlaneseq
        %v1028 = vshrl.u32 %v1027, 7
        %v1029 = vsub.s32 0, %v1028
        %v1030 = vrot.slane %v1025, %v1029
        %v1036 = vunpack.c.l.b16 %v1019
        %v1037 = vunpack.c.l.b16 %v1020
        %v1038 = vunpack.c.l.b16 %v1021
        %v1039 = vunpack.c.l.b16 %v1022
        %v1040 = vpack.c.b16 %v1037, %v1036
        %v1041 = vpack.c.b16 %v1039, %v1038
        %vm1044 = vcmask 261120
        %v1046 = vsel %vm1044, %v1023, 0
        %v1049 = vsel %vm1044, %v1024, 0
        %1051 = vmatprep.subr.bf16.mxu0 0
        %1052 = vmatpush1.bf16.msra.mxu0 %v1040
        %1053 = vmatprep.subr.bf16.mxu0 0
        %1054 = vmatpush1.bf16.msra.mxu0 %v1041
        %1055 = vmatprep.subr.bf16.mxu0 0
        %1056 = vmatpush1.bf16.msra.mxu0 0
        %1057 = vmatprep.subr.bf16.mxu0 0
        %1058 = vmatpush1.bf16.msra.mxu0 0
        %1059 = vmatprep.subr.bf16.mxu0 0
        %1060 = vmatpush1.bf16.msra.mxu0 0
        %1061 = vmatprep.subr.bf16.mxu0 0
        %1062 = vmatpush1.bf16.msra.mxu0 0
        %1063 = vmatprep.subr.bf16.mxu0 0
        %1064 = vmatpush1.bf16.msra.mxu0 0
        %1065 = vmatprep.subr.bf16.mxu0 0
        %1066 = vmatpush1.bf16.msra.mxu0 0
        %1067 = vmatprep.subr.bf16.mxu0 0
        %1068 = vmatpush1.bf16.msra.mxu0 0
        %1069 = vmatprep.subr.bf16.mxu0 0
        %1070 = vmatpush1.bf16.msra.mxu0 0
        %1071 = vmatprep.subr.bf16.mxu0 0
        %1072 = vmatpush1.bf16.msra.mxu0 0
        %1073 = vmatprep.subr.bf16.mxu0 0
        %1074 = vmatpush1.bf16.msra.mxu0 0
        %1075 = vmatprep.subr.bf16.mxu0 0
        %1076 = vmatpush1.bf16.msra.mxu0 0
        %1077 = vmatprep.subr.bf16.mxu0 0
        %1078 = vmatpush1.bf16.msra.mxu0 0
        %1079 = vmatprep.subr.bf16.mxu0 0
        %1080 = vmatpush1.bf16.msra.mxu0 0
        %1081 = vmatprep.subr.bf16.mxu0 0
        %1082 = vmatpush1.bf16.msra.mxu0 0
        %1083 = vmatprep.mubr.bf16.mxu0 0
        %1084 = vmatmul.mubr.bf16.gmra.mrb[0].mxu0 %v1046
        %v1085 = vpop.f32.mrb[0].mxu0
        %v1086 = vadd.f32 %v1030, %v1085
        %v1087 = vpop.f32.mrb[0].mxu0
        %v1088 = vpop.f32.mrb[0].mxu0
        %v1089 = vadd.f32 %v1030, %v1088
        %v1090 = vpop.f32.mrb[0].mxu0
        %1091 = vmatprep.mubr.bf16.mxu0 0
        %1092 = vmatmul.mubr.bf16.gmra.mrb[0].mxu0 %v1049
        %v1093 = vpop.f32.mrb[0].mxu0
        %v1094 = vadd.f32 %v1030, %v1093
        %v1095 = vpop.f32.mrb[0].mxu0
        %v1096 = vpop.f32.mrb[0].mxu0
        %v1097 = vadd.f32 %v1030, %v1096
        %v1098 = vpop.f32.mrb[0].mxu0
        %1099 = vdwg.mxu0
        %v1100 = vld [vmem:[%s7] sm:$0xf]
        %v1101 = vld [vmem:[%s7 + $0x4] sm:$0xf]
        %v1102 = vld [vmem:[%s7 + $0x8] sm:$0xf]
        %v1103 = vld [vmem:[%s7 + $0xc] sm:$0xf]
        %v1104 = vld [vmem:[#allocation2] sm:$0x1]
        %v1106 = vlaneseq
        %v1107 = vshrl.u32 %v1106, 7
        %v1108 = vsub.s32 0, %v1107
        %v1109 = vrot.slane %v1104, %v1108
        %v1115 = vunpack.c.l.b16 %v1100
        %v1116 = vunpack.c.l.b16 %v1101
        %v1117 = vunpack.c.l.b16 %v1102
        %v1118 = vunpack.c.l.b16 %v1103
        %v1119 = vpack.c.b16 %v1116, %v1115
        %v1120 = vpack.c.b16 %v1118, %v1117
        %1123 = vmatprep.subr.bf16.mxu0 0
        %1124 = vmatpush1.bf16.msra.mxu0 %v1119
        %1125 = vmatprep.subr.bf16.mxu0 0
        %1126 = vmatpush1.bf16.msra.mxu0 %v1120
        %1127 = vmatprep.subr.bf16.mxu0 0
        %1128 = vmatpush1.bf16.msra.mxu0 0
        %1129 = vmatprep.subr.bf16.mxu0 0
        %1130 = vmatpush1.bf16.msra.mxu0 0
        %1131 = vmatprep.subr.bf16.mxu0 0
        %1132 = vmatpush1.bf16.msra.mxu0 0
        %1133 = vmatprep.subr.bf16.mxu0 0
        %1134 = vmatpush1.bf16.msra.mxu0 0
        %1135 = vmatprep.subr.bf16.mxu0 0
        %1136 = vmatpush1.bf16.msra.mxu0 0
        %1137 = vmatprep.subr.bf16.mxu0 0
        %1138 = vmatpush1.bf16.msra.mxu0 0
        %1139 = vmatprep.subr.bf16.mxu0 0
        %1140 = vmatpush1.bf16.msra.mxu0 0
        %1141 = vmatprep.subr.bf16.mxu0 0
        %1142 = vmatpush1.bf16.msra.mxu0 0
        %1143 = vmatprep.subr.bf16.mxu0 0
        %1144 = vmatpush1.bf16.msra.mxu0 0
        %1145 = vmatprep.subr.bf16.mxu0 0
        %1146 = vmatpush1.bf16.msra.mxu0 0
        %1147 = vmatprep.subr.bf16.mxu0 0
        %1148 = vmatpush1.bf16.msra.mxu0 0
        %1149 = vmatprep.subr.bf16.mxu0 0
        %1150 = vmatpush1.bf16.msra.mxu0 0
        %1151 = vmatprep.subr.bf16.mxu0 0
        %1152 = vmatpush1.bf16.msra.mxu0 0
        %1153 = vmatprep.subr.bf16.mxu0 0
        %1154 = vmatpush1.bf16.msra.mxu0 0
        %1155 = vmatprep.mubr.bf16.mxu0 0
        %1156 = vmatmul.mubr.bf16.gmra.mrb[0].mxu0 %v1046
        %v1157 = vpop.f32.mrb[0].mxu0
        %v1158 = vadd.f32 %v1109, %v1157
        %v1159 = vpop.f32.mrb[0].mxu0
        %v1160 = vpop.f32.mrb[0].mxu0
        %v1161 = vadd.f32 %v1109, %v1160
        %v1162 = vpop.f32.mrb[0].mxu0
        %1163 = vmatprep.mubr.bf16.mxu0 0
        %1164 = vmatmul.mubr.bf16.gmra.mrb[0].mxu0 %v1049
        %v1165 = vpop.f32.mrb[0].mxu0
        %v1166 = vadd.f32 %v1109, %v1165
        %v1167 = vpop.f32.mrb[0].mxu0
        %v1168 = vpop.f32.mrb[0].mxu0
        %v1169 = vadd.f32 %v1109, %v1168
        %v1170 = vpop.f32.mrb[0].mxu0
        %1171 = vdwg.mxu0
        %v1172 = vld [vmem:[%s9] sm:$0xf]
        %v1173 = vld [vmem:[%s9 + $0x4] sm:$0xf]
        %v1174 = vld [vmem:[%s9 + $0x8] sm:$0xf]
        %v1175 = vld [vmem:[%s9 + $0xc] sm:$0xf]
        %v1176 = vpack.c.bf16 %v1004, %v1001
        %v1177 = vpack.c.bf16 %v1012, %v1009
        %v1178 = vld [vmem:[#allocation5] sm:$0x1]
        %v1180 = vlaneseq
        %v1181 = vshrl.u32 %v1180, 7
        %v1182 = vsub.s32 0, %v1181
        %v1183 = vrot.slane %v1178, %v1182
        %v1189 = vunpack.c.l.b16 %v1172
        %v1190 = vunpack.c.l.b16 %v1173
        %v1191 = vunpack.c.l.b16 %v1174
        %v1192 = vunpack.c.l.b16 %v1175
        %v1193 = vpack.c.b16 %v1190, %v1189
        %v1194 = vpack.c.b16 %v1192, %v1191
        %v1198 = vsel %vm1044, %v1176, 0
        %v1201 = vsel %vm1044, %v1177, 0
        %1203 = vmatprep.subr.bf16.mxu0 0
        %1204 = vmatpush1.bf16.msra.mxu0 %v1193
        %1205 = vmatprep.subr.bf16.mxu0 0
        %1206 = vmatpush1.bf16.msra.mxu0 %v1194
        %1207 = vmatprep.subr.bf16.mxu0 0
        %1208 = vmatpush1.bf16.msra.mxu0 0
        %1209 = vmatprep.subr.bf16.mxu0 0
        %1210 = vmatpush1.bf16.msra.mxu0 0
        %1211 = vmatprep.subr.bf16.mxu0 0
        %1212 = vmatpush1.bf16.msra.mxu0 0
        %1213 = vmatprep.subr.bf16.mxu0 0
        %1214 = vmatpush1.bf16.msra.mxu0 0
        %1215 = vmatprep.subr.bf16.mxu0 0
        %1216 = vmatpush1.bf16.msra.mxu0 0
        %1217 = vmatprep.subr.bf16.mxu0 0
        %1218 = vmatpush1.bf16.msra.mxu0 0
        %1219 = vmatprep.subr.bf16.mxu0 0
        %1220 = vmatpush1.bf16.msra.mxu0 0
        %1221 = vmatprep.subr.bf16.mxu0 0
        %1222 = vmatpush1.bf16.msra.mxu0 0
        %1223 = vmatprep.subr.bf16.mxu0 0
        %1224 = vmatpush1.bf16.msra.mxu0 0
        %1225 = vmatprep.subr.bf16.mxu0 0
        %1226 = vmatpush1.bf16.msra.mxu0 0
        %1227 = vmatprep.subr.bf16.mxu0 0
        %1228 = vmatpush1.bf16.msra.mxu0 0
        %1229 = vmatprep.subr.bf16.mxu0 0
        %1230 = vmatpush1.bf16.msra.mxu0 0
        %1231 = vmatprep.subr.bf16.mxu0 0
        %1232 = vmatpush1.bf16.msra.mxu0 0
        %1233 = vmatprep.subr.bf16.mxu0 0
        %1234 = vmatpush1.bf16.msra.mxu0 0
        %1235 = vmatprep.mubr.bf16.mxu0 0
        %1236 = vmatmul.mubr.bf16.gmra.mrb[0].mxu0 %v1198
        %v1237 = vpop.f32.mrb[0].mxu0
        %v1238 = vadd.f32 %v1183, %v1237
        %v1239 = vpop.f32.mrb[0].mxu0
        %v1240 = vpop.f32.mrb[0].mxu0
        %v1241 = vadd.f32 %v1183, %v1240
        %v1242 = vpop.f32.mrb[0].mxu0
        %1243 = vmatprep.mubr.bf16.mxu0 0
        %1244 = vmatmul.mubr.bf16.gmra.mrb[0].mxu0 %v1201
        %v1245 = vpop.f32.mrb[0].mxu0
        %v1246 = vadd.f32 %v1183, %v1245
        %v1247 = vpop.f32.mrb[0].mxu0
        %v1248 = vpop.f32.mrb[0].mxu0
        %v1249 = vadd.f32 %v1183, %v1248
        %v1250 = vpop.f32.mrb[0].mxu0
        %1251 = vdwg.mxu0
        %v1252 = vmul.f32 %v1158, %v865
        %v1253 = vmul.f32 %v1161, %v866
        %v1254 = vmul.f32 %v1166, %v867
        %v1255 = vmul.f32 %v1169, %v868
        %v1256 = vmul.f32 %v1158, %v869
        %v1257 = vmul.f32 %v1161, %v870
        %v1258 = vmul.f32 %v1166, %v871
        %v1259 = vmul.f32 %v1169, %v872
        %v1260 = vmul.f32 %v1158, %v873
        %v1261 = vmul.f32 %v1161, %v874
        %v1262 = vmul.f32 %v1166, %v875
        %v1263 = vmul.f32 %v1169, %v876
        %v1264 = vmul.f32 %v1158, %v877
        %v1265 = vmul.f32 %v1161, %v878
        %v1266 = vmul.f32 %v1166, %v879
        %v1267 = vmul.f32 %v1169, %v880
        %v1268 = vpack.c.bf16 %v1253, %v1252
        %v1269 = vpack.c.bf16 %v1255, %v1254
        %v1270 = vpack.c.bf16 %v1257, %v1256
        %v1271 = vpack.c.bf16 %v1259, %v1258
        %v1272 = vpack.c.bf16 %v1261, %v1260
        %v1273 = vpack.c.bf16 %v1263, %v1262
        %v1274 = vpack.c.bf16 %v1265, %v1264
        %v1275 = vpack.c.bf16 %v1267, %v1266
        %v1276 = vmul.f32 %v1238, %v865
        %v1277 = vmul.f32 %v1241, %v866
        %v1278 = vmul.f32 %v1246, %v867
        %v1279 = vmul.f32 %v1249, %v868
        %v1280 = vmul.f32 %v1238, %v869
        %v1281 = vmul.f32 %v1241, %v870
        %v1282 = vmul.f32 %v1246, %v871
        %v1283 = vmul.f32 %v1249, %v872
        %v1284 = vmul.f32 %v1238, %v873
        %v1285 = vmul.f32 %v1241, %v874
        %v1286 = vmul.f32 %v1246, %v875
        %v1287 = vmul.f32 %v1249, %v876
        %v1288 = vmul.f32 %v1238, %v877
        %v1289 = vmul.f32 %v1241, %v878
        %v1290 = vmul.f32 %v1246, %v879
        %v1291 = vmul.f32 %v1249, %v880
        %v1292 = vpack.c.bf16 %v1277, %v1276
        %v1293 = vpack.c.bf16 %v1279, %v1278
        %v1294 = vpack.c.bf16 %v1281, %v1280
        %v1295 = vpack.c.bf16 %v1283, %v1282
        %v1296 = vpack.c.bf16 %v1285, %v1284
        %v1297 = vpack.c.bf16 %v1287, %v1286
        %v1298 = vpack.c.bf16 %v1289, %v1288
        %v1299 = vpack.c.bf16 %v1291, %v1290
        %v1300 = vpack.c.bf16 %v1089, %v1086
        %v1301 = vpack.c.bf16 %v1097, %v1094
        %v1303 = vsel %vm1044, %v1300, 0
        %v1306 = vsel %vm1044, %v1301, 0
        %v1309 = vsel %vm1044, %v1268, 0
        %v1312 = vsel %vm1044, %v1269, 0
        %v1315 = vsel %vm1044, %v1270, 0
        %v1318 = vsel %vm1044, %v1271, 0
        %v1321 = vsel %vm1044, %v1272, 0
        %v1324 = vsel %vm1044, %v1273, 0
        %v1327 = vsel %vm1044, %v1274, 0
        %v1330 = vsel %vm1044, %v1275, 0
        %1332 = vmatprep.subr.bf16.mxu0 0
        %1333 = vmatpush1.bf16.xpose.msra.mxu0 %v1309
        %1334 = vmatprep.subr.bf16.mxu0 0
        %1335 = vmatpush1.bf16.xpose.msra.mxu0 %v1312
        %1336 = vmatprep.subr.bf16.mxu0 0
        %1337 = vmatpush1.bf16.xpose.msra.mxu0 %v1315
        %1338 = vmatprep.subr.bf16.mxu0 0
        %1339 = vmatpush1.bf16.xpose.msra.mxu0 %v1318
        %1340 = vmatprep.subr.bf16.mxu0 0
        %1341 = vmatpush1.bf16.xpose.msra.mxu0 %v1321
        %1342 = vmatprep.subr.bf16.mxu0 0
        %1343 = vmatpush1.bf16.xpose.msra.mxu0 %v1324
        %1344 = vmatprep.subr.bf16.mxu0 0
        %1345 = vmatpush1.bf16.xpose.msra.mxu0 %v1327
        %1346 = vmatprep.subr.bf16.mxu0 0
        %1347 = vmatpush1.bf16.xpose.msra.mxu0 %v1330
        %1348 = vmatprep.subr.bf16.mxu0 0
        %1349 = vmatpush1.bf16.xpose.msra.mxu0 0
        %1350 = vmatprep.subr.bf16.mxu0 0
        %1351 = vmatpush1.bf16.xpose.msra.mxu0 0
        %1352 = vmatprep.subr.bf16.mxu0 0
        %1353 = vmatpush1.bf16.xpose.msra.mxu0 0
        %1354 = vmatprep.subr.bf16.mxu0 0
        %1355 = vmatpush1.bf16.xpose.msra.mxu0 0
        %1356 = vmatprep.subr.bf16.mxu0 0
        %1357 = vmatpush1.bf16.xpose.msra.mxu0 0
        %1358 = vmatprep.subr.bf16.mxu0 0
        %1359 = vmatpush1.bf16.xpose.msra.mxu0 0
        %1360 = vmatprep.subr.bf16.mxu0 0
        %1361 = vmatpush1.bf16.xpose.msra.mxu0 0
        %1362 = vmatprep.subr.bf16.mxu0 0
        %1363 = vmatpush1.bf16.xpose.msra.mxu0 0
        %1364 = vmatprep.mubr.bf16.mxu0 0
        %1365 = vmatmul.mubr.bf16.gmra.mrb[0].mxu0 %v1303
        %v1366 = vpop.f32.mrb[0].mxu0
        %v1367 = vadd.f32 %v894, %v1366
        %v1368 = vpop.f32.mrb[0].mxu0
        %v1369 = vpop.f32.mrb[0].mxu0
        %v1370 = vadd.f32 %v894, %v1369
        %v1371 = vpop.f32.mrb[0].mxu0
        %1372 = vmatprep.mubr.bf16.mxu0 0
        %1373 = vmatmul.mubr.bf16.gmra.mrb[0].mxu0 %v1306
        %v1374 = vpop.f32.mrb[0].mxu0
        %v1375 = vadd.f32 %v894, %v1374
        %v1376 = vpop.f32.mrb[0].mxu0
        %v1377 = vpop.f32.mrb[0].mxu0
        %v1378 = vadd.f32 %v894, %v1377
        %v1379 = vpop.f32.mrb[0].mxu0
        %1380 = vdwg.mxu0
        %1381 = vmax.xlane.f32.xlu0 %v1367
        %v1382 = vpop.xlane.xlu0 %1381
        %1383 = vmax.xlane.f32.xlu0 %v1370
        %v1384 = vpop.xlane.xlu0 %1383
        %1385 = vmax.xlane.f32.xlu0 %v1375
        %v1386 = vpop.xlane.xlu0 %1385
        %1387 = vmax.xlane.f32.xlu0 %v1378
        %v1388 = vpop.xlane.xlu0 %1387
        %v1389 = vsub.f32 %v1367, %v1382
        %v1390 = vsub.f32 %v1370, %v1384
        %v1391 = vsub.f32 %v1375, %v1386
        %v1392 = vsub.f32 %v1378, %v1388
        %v1393 = vmul.f32 %v1389, 1.442695
        %v1394 = vpow.pop %v1393
        %v1395 = vmul.f32 %v1390, 1.442695
        %v1396 = vpow.pop %v1395
        %v1397 = vmul.f32 %v1391, 1.442695
        %v1398 = vpow.pop %v1397
        %v1399 = vmul.f32 %v1392, 1.442695
        %v1400 = vpow.pop %v1399
        %v1401 = vpack.c.bf16 %v1396, %v1394
        %v1402 = vpack.c.bf16 %v1400, %v1398
        %1403 = vmatprep.subr.bf16.mxu0 0
        %1404 = vmatpush1.bf16.msra.mxu0 %v881
        %1405 = vmatprep.subr.bf16.mxu0 0
        %1406 = vmatpush1.bf16.msra.mxu0 %v882
        %1407 = vmatprep.subr.bf16.mxu0 0
        %1408 = vmatpush1.bf16.msra.mxu0 %v883
        %1409 = vmatprep.subr.bf16.mxu0 0
        %1410 = vmatpush1.bf16.msra.mxu0 %v884
        %1411 = vmatprep.subr.bf16.mxu0 0
        %1412 = vmatpush1.bf16.msra.mxu0 %v885
        %1413 = vmatprep.subr.bf16.mxu0 0
        %1414 = vmatpush1.bf16.msra.mxu0 %v886
        %1415 = vmatprep.subr.bf16.mxu0 0
        %1416 = vmatpush1.bf16.msra.mxu0 %v887
        %1417 = vmatprep.subr.bf16.mxu0 0
        %1418 = vmatpush1.bf16.msra.mxu0 %v888
        %1419 = vmatprep.subr.bf16.mxu0 0
        %1420 = vmatpush1.bf16.msra.mxu0 0
        %1421 = vmatprep.subr.bf16.mxu0 0
        %1422 = vmatpush1.bf16.msra.mxu0 0
        %1423 = vmatprep.subr.bf16.mxu0 0
        %1424 = vmatpush1.bf16.msra.mxu0 0
        %1425 = vmatprep.subr.bf16.mxu0 0
        %1426 = vmatpush1.bf16.msra.mxu0 0
        %1427 = vmatprep.subr.bf16.mxu0 0
        %1428 = vmatpush1.bf16.msra.mxu0 0
        %1429 = vmatprep.subr.bf16.mxu0 0
        %1430 = vmatpush1.bf16.msra.mxu0 0
        %1431 = vmatprep.subr.bf16.mxu0 0
        %1432 = vmatpush1.bf16.msra.mxu0 0
        %1433 = vmatprep.subr.bf16.mxu0 0
        %1434 = vmatpush1.bf16.msra.mxu0 0
        %1435 = vmatprep.mubr.bf16.mxu0 0
        %1436 = vmatmul.mubr.bf16.gmra.mrb[0].mxu0 %v1401
        %v1437 = vpop.f32.mrb[0].mxu0
        %v1438 = vadd.f32 0.0, %v1437
        %v1439 = vpop.f32.mrb[0].mxu0
        %v1440 = vpop.f32.mrb[0].mxu0
        %v1441 = vadd.f32 0.0, %v1440
        %v1442 = vpop.f32.mrb[0].mxu0
        %1443 = vmatprep.mubr.bf16.mxu0 0
        %1444 = vmatmul.mubr.bf16.gmra.mrb[0].mxu0 %v1402
        %v1445 = vpop.f32.mrb[0].mxu0
        %v1446 = vadd.f32 0.0, %v1445
        %v1447 = vpop.f32.mrb[0].mxu0
        %v1448 = vpop.f32.mrb[0].mxu0
        %v1449 = vadd.f32 0.0, %v1448
        %v1450 = vpop.f32.mrb[0].mxu0
        %1451 = vdwg.mxu0
        %1452 = vmatprep.subr.bf16.mxu0 0
        %1453 = vmatpush1.bf16.msra.mxu0 %v1292
        %1454 = vmatprep.subr.bf16.mxu0 0
        %1455 = vmatpush1.bf16.msra.mxu0 %v1293
        %1456 = vmatprep.subr.bf16.mxu0 0
        %1457 = vmatpush1.bf16.msra.mxu0 %v1294
        %1458 = vmatprep.subr.bf16.mxu0 0
        %1459 = vmatpush1.bf16.msra.mxu0 %v1295
        %1460 = vmatprep.subr.bf16.mxu0 0
        %1461 = vmatpush1.bf16.msra.mxu0 %v1296
        %1462 = vmatprep.subr.bf16.mxu0 0
        %1463 = vmatpush1.bf16.msra.mxu0 %v1297
        %1464 = vmatprep.subr.bf16.mxu0 0
        %1465 = vmatpush1.bf16.msra.mxu0 %v1298
        %1466 = vmatprep.subr.bf16.mxu0 0
        %1467 = vmatpush1.bf16.msra.mxu0 %v1299
        %1468 = vmatprep.subr.bf16.mxu0 0
        %1469 = vmatpush1.bf16.msra.mxu0 0
        %1470 = vmatprep.subr.bf16.mxu0 0
        %1471 = vmatpush1.bf16.msra.mxu0 0
        %1472 = vmatprep.subr.bf16.mxu0 0
        %1473 = vmatpush1.bf16.msra.mxu0 0
        %1474 = vmatprep.subr.bf16.mxu0 0
        %1475 = vmatpush1.bf16.msra.mxu0 0
        %1476 = vmatprep.subr.bf16.mxu0 0
        %1477 = vmatpush1.bf16.msra.mxu0 0
        %1478 = vmatprep.subr.bf16.mxu0 0
        %1479 = vmatpush1.bf16.msra.mxu0 0
        %1480 = vmatprep.subr.bf16.mxu0 0
        %1481 = vmatpush1.bf16.msra.mxu0 0
        %1482 = vmatprep.subr.bf16.mxu0 0
        %1483 = vmatpush1.bf16.msra.mxu0 0
        %1484 = vmatprep.mubr.bf16.mxu0 0
        %1485 = vmatmul.mubr.bf16.gmra.mrb[0].mxu0 %v1401
        %v1486 = vpop.f32.mrb[0].mxu0
        %v1487 = vadd.f32 0.0, %v1486
        %v1488 = vpop.f32.mrb[0].mxu0
        %v1489 = vpop.f32.mrb[0].mxu0
        %v1490 = vadd.f32 0.0, %v1489
        %v1491 = vpop.f32.mrb[0].mxu0
        %1492 = vmatprep.mubr.bf16.mxu0 0
        %1493 = vmatmul.mubr.bf16.gmra.mrb[0].mxu0 %v1402
        %v1494 = vpop.f32.mrb[0].mxu0
        %v1495 = vadd.f32 0.0, %v1494
        %v1496 = vpop.f32.mrb[0].mxu0
        %v1497 = vpop.f32.mrb[0].mxu0
        %v1498 = vadd.f32 0.0, %v1497
        %v1499 = vpop.f32.mrb[0].mxu0
        %1500 = vdwg.mxu0
        %v1501 = vrcp.pop %v1438
        %v1502 = vrcp.pop %v1441
        %v1503 = vrcp.pop %v1446
        %v1504 = vrcp.pop %v1449
        %v1505 = vmul.f32 %v1487, %v1501
        %v1506 = vmul.f32 %v1490, %v1502
        %v1507 = vmul.f32 %v1495, %v1503
        %v1508 = vmul.f32 %v1498, %v1504
        %v1509 = vld [vmem:[%s11] sm:$0xf]
        %v1510 = vld [vmem:[%s11 + $0x4] sm:$0xf]
        %v1511 = vld [vmem:[%s11 + $0x8] sm:$0xf]
        %v1512 = vld [vmem:[%s11 + $0xc] sm:$0xf]
        %v1513 = vpack.c.bf16 %v1506, %v1505
        %v1514 = vpack.c.bf16 %v1508, %v1507
        %v1515 = vld [vmem:[%s12] sm:$0x1]
        %v1517 = vlaneseq
        %v1518 = vshrl.u32 %v1517, 7
        %v1519 = vsub.s32 0, %v1518
        %v1520 = vrot.slane %v1515, %v1519
        %v1526 = vunpack.c.l.b16 %v1509
        %v1527 = vunpack.c.l.b16 %v1510
        %v1528 = vunpack.c.l.b16 %v1511
        %v1529 = vunpack.c.l.b16 %v1512
        %v1530 = vpack.c.b16 %v1527, %v1526
        %v1531 = vpack.c.b16 %v1529, %v1528
        %v1535 = vsel %vm1044, %v1513, 0
        %v1538 = vsel %vm1044, %v1514, 0
        %1540 = vmatprep.subr.bf16.mxu0 0
        %1541 = vmatpush1.bf16.msra.mxu0 %v1530
        %1542 = vmatprep.subr.bf16.mxu0 0
        %1543 = vmatpush1.bf16.msra.mxu0 %v1531
        %1544 = vmatprep.subr.bf16.mxu0 0
        %1545 = vmatpush1.bf16.msra.mxu0 0
        %1546 = vmatprep.subr.bf16.mxu0 0
        %1547 = vmatpush1.bf16.msra.mxu0 0
        %1548 = vmatprep.subr.bf16.mxu0 0
        %1549 = vmatpush1.bf16.msra.mxu0 0
        %1550 = vmatprep.subr.bf16.mxu0 0
        %1551 = vmatpush1.bf16.msra.mxu0 0
        %1552 = vmatprep.subr.bf16.mxu0 0
        %1553 = vmatpush1.bf16.msra.mxu0 0
        %1554 = vmatprep.subr.bf16.mxu0 0
        %1555 = vmatpush1.bf16.msra.mxu0 0
        %1556 = vmatprep.subr.bf16.mxu0 0
        %1557 = vmatpush1.bf16.msra.mxu0 0
        %1558 = vmatprep.subr.bf16.mxu0 0
        %1559 = vmatpush1.bf16.msra.mxu0 0
        %1560 = vmatprep.subr.bf16.mxu0 0
        %1561 = vmatpush1.bf16.msra.mxu0 0
        %1562 = vmatprep.subr.bf16.mxu0 0
        %1563 = vmatpush1.bf16.msra.mxu0 0
        %1564 = vmatprep.subr.bf16.mxu0 0
        %1565 = vmatpush1.bf16.msra.mxu0 0
        %1566 = vmatprep.subr.bf16.mxu0 0
        %1567 = vmatpush1.bf16.msra.mxu0 0
        %1568 = vmatprep.subr.bf16.mxu0 0
        %1569 = vmatpush1.bf16.msra.mxu0 0
        %1570 = vmatprep.subr.bf16.mxu0 0
        %1571 = vmatpush1.bf16.msra.mxu0 0
        %1572 = vmatprep.mubr.bf16.mxu0 0
        %1573 = vmatmul.mubr.bf16.gmra.mrb[0].mxu0 %v1535
        %v1574 = vpop.f32.mrb[0].mxu0
        %v1575 = vadd.f32 %v1520, %v1574
        %v1576 = vpop.f32.mrb[0].mxu0
        %v1577 = vpop.f32.mrb[0].mxu0
        %v1578 = vadd.f32 %v1520, %v1577
        %v1579 = vpop.f32.mrb[0].mxu0
        %1580 = vmatprep.mubr.bf16.mxu0 0
        %1581 = vmatmul.mubr.bf16.gmra.mrb[0].mxu0 %v1538
        %v1582 = vpop.f32.mrb[0].mxu0
        %v1583 = vadd.f32 %v1520, %v1582
        %v1584 = vpop.f32.mrb[0].mxu0
        %v1585 = vpop.f32.mrb[0].mxu0
        %v1586 = vadd.f32 %v1520, %v1585
        %v1587 = vpop.f32.mrb[0].mxu0
        %1588 = vdwg.mxu0
        %v1589 = vadd.f32 %v1001, %v1575
        %v1590 = vadd.f32 %v1004, %v1578
        %v1591 = vadd.f32 %v1009, %v1583
        %v1592 = vadd.f32 %v1012, %v1586
        %v1593 = vld [vmem:[%s13] sm:$0x1]
        %v1594 = vld [vmem:[%s14] sm:$0x1]
        %v1595 = vsel %vm1044, %v1589, 0.0
        %1596 = vadd.xlane.f32.xlu0 %v1595
        %v1597 = vpop.xlane.xlu0 %1596
        %v1598 = vsel %vm1044, %v1590, 0.0
        %1599 = vadd.xlane.f32.xlu0 %v1598
        %v1600 = vpop.xlane.xlu0 %1599
        %v1601 = vsel %vm1044, %v1591, 0.0
        %1602 = vadd.xlane.f32.xlu0 %v1601
        %v1603 = vpop.xlane.xlu0 %1602
        %v1604 = vsel %vm1044, %v1592, 0.0
        %1605 = vadd.xlane.f32.xlu0 %v1604
        %v1606 = vpop.xlane.xlu0 %1605
        %v1607 = vrcp.pop 32.0
        %v1608 = vmul.f32 %v1597, %v1607
        %v1609 = vmul.f32 %v1600, %v1607
        %v1610 = vmul.f32 %v1603, %v1607
        %v1611 = vmul.f32 %v1606, %v1607
        %v1612 = vsub.f32 %v1589, %v1608
        %v1613 = vsub.f32 %v1590, %v1609
        %v1614 = vsub.f32 %v1591, %v1610
        %v1615 = vsub.f32 %v1592, %v1611
        %v1616 = vmul.f32 %v1612, %v1612
        %v1617 = vmul.f32 %v1613, %v1613
        %v1618 = vmul.f32 %v1614, %v1614
        %v1619 = vmul.f32 %v1615, %v1615
        %v1620 = vsel %vm1044, %v1616, 0.0
        %1621 = vadd.xlane.f32.xlu0 %v1620
        %v1622 = vpop.xlane.xlu0 %1621
        %v1623 = vsel %vm1044, %v1617, 0.0
        %1624 = vadd.xlane.f32.xlu0 %v1623
        %v1625 = vpop.xlane.xlu0 %1624
        %v1626 = vsel %vm1044, %v1618, 0.0
        %1627 = vadd.xlane.f32.xlu0 %v1626
        %v1628 = vpop.xlane.xlu0 %1627
        %v1629 = vsel %vm1044, %v1619, 0.0
        %1630 = vadd.xlane.f32.xlu0 %v1629
        %v1631 = vpop.xlane.xlu0 %1630
        %v1632 = vmul.f32 %v1622, %v1607
        %v1633 = vmul.f32 %v1625, %v1607
        %v1634 = vmul.f32 %v1628, %v1607
        %v1635 = vmul.f32 %v1631, %v1607
        %v1636 = vadd.f32 %v1632, 1e-05
        %v1637 = vadd.f32 %v1633, 1e-05
        %v1638 = vadd.f32 %v1634, 1e-05
        %v1639 = vadd.f32 %v1635, 1e-05
        %v1640 = vrsqrt.pop %v1636
        %v1641 = vrsqrt.pop %v1637
        %v1642 = vrsqrt.pop %v1638
        %v1643 = vrsqrt.pop %v1639
        %v1644 = vmul.f32 %v1612, %v1640
        %v1645 = vmul.f32 %v1613, %v1641
        %v1646 = vmul.f32 %v1614, %v1642
        %v1647 = vmul.f32 %v1615, %v1643
        %v1649 = vlaneseq
        %v1650 = vshrl.u32 %v1649, 7
        %v1651 = vsub.s32 0, %v1650
        %v1652 = vrot.slane %v1593, %v1651
        %v1654 = vmul.f32 %v1644, %v1652
        %v1655 = vmul.f32 %v1645, %v1652
        %v1656 = vmul.f32 %v1646, %v1652
        %v1657 = vmul.f32 %v1647, %v1652
        %v1659 = vlaneseq
        %v1660 = vshrl.u32 %v1659, 7
        %v1661 = vsub.s32 0, %v1660
        %v1662 = vrot.slane %v1594, %v1661
        %v1664 = vadd.f32 %v1654, %v1662
        %v1665 = vadd.f32 %v1655, %v1662
        %v1666 = vadd.f32 %v1656, %v1662
        %v1667 = vadd.f32 %v1657, %v1662
        %v1668 = vld [vmem:[%s15] sm:$0xf]
        %v1669 = vld [vmem:[%s15 + $0x4] sm:$0xf]
        %v1670 = vld [vmem:[%s15 + $0x8] sm:$0xf]
        %v1671 = vld [vmem:[%s15 + $0xc] sm:$0xf]
        %v1672 = vpack.c.bf16 %v1665, %v1664
        %v1673 = vpack.c.bf16 %v1667, %v1666
        %v1674 = vld [vmem:[%s16] sm:$0x1]
        %v1676 = vlaneseq
        %v1677 = vshrl.u32 %v1676, 7
        %v1678 = vsub.s32 0, %v1677
        %v1679 = vrot.slane %v1674, %v1678
        %v1685 = vunpack.c.l.b16 %v1668
        %v1686 = vunpack.c.l.b16 %v1669
        %v1687 = vunpack.c.l.b16 %v1670
        %v1688 = vunpack.c.l.b16 %v1671
        %v1689 = vpack.c.b16 %v1686, %v1685
        %v1690 = vpack.c.b16 %v1688, %v1687
        %v1694 = vsel %vm1044, %v1672, 0
        %v1697 = vsel %vm1044, %v1673, 0
        %1699 = vmatprep.subr.bf16.mxu0 0
        %1700 = vmatpush1.bf16.msra.mxu0 %v1689
        %1701 = vmatprep.subr.bf16.mxu0 0
        %1702 = vmatpush1.bf16.msra.mxu0 %v1690
        %1703 = vmatprep.subr.bf16.mxu0 0
        %1704 = vmatpush1.bf16.msra.mxu0 0
        %1705 = vmatprep.subr.bf16.mxu0 0
        %1706 = vmatpush1.bf16.msra.mxu0 0
        %1707 = vmatprep.subr.bf16.mxu0 0
        %1708 = vmatpush1.bf16.msra.mxu0 0
        %1709 = vmatprep.subr.bf16.mxu0 0
        %1710 = vmatpush1.bf16.msra.mxu0 0
        %1711 = vmatprep.subr.bf16.mxu0 0
        %1712 = vmatpush1.bf16.msra.mxu0 0
        %1713 = vmatprep.subr.bf16.mxu0 0
        %1714 = vmatpush1.bf16.msra.mxu0 0
        %1715 = vmatprep.subr.bf16.mxu0 0
        %1716 = vmatpush1.bf16.msra.mxu0 0
        %1717 = vmatprep.subr.bf16.mxu0 0
        %1718 = vmatpush1.bf16.msra.mxu0 0
        %1719 = vmatprep.subr.bf16.mxu0 0
        %1720 = vmatpush1.bf16.msra.mxu0 0
        %1721 = vmatprep.subr.bf16.mxu0 0
        %1722 = vmatpush1.bf16.msra.mxu0 0
        %1723 = vmatprep.subr.bf16.mxu0 0
        %1724 = vmatpush1.bf16.msra.mxu0 0
        %1725 = vmatprep.subr.bf16.mxu0 0
        %1726 = vmatpush1.bf16.msra.mxu0 0
        %1727 = vmatprep.subr.bf16.mxu0 0
        %1728 = vmatpush1.bf16.msra.mxu0 0
        %1729 = vmatprep.subr.bf16.mxu0 0
        %1730 = vmatpush1.bf16.msra.mxu0 0
        %1731 = vmatprep.mubr.bf16.mxu0 0
        %1732 = vmatmul.mubr.bf16.gmra.mrb[0].mxu0 %v1694
        %v1733 = vpop.f32.mrb[0].mxu0
        %v1734 = vadd.f32 %v1679, %v1733
        %v1735 = vpop.f32.mrb[0].mxu0
        %v1736 = vpop.f32.mrb[0].mxu0
        %v1737 = vadd.f32 %v1679, %v1736
        %v1738 = vpop.f32.mrb[0].mxu0
        %1739 = vmatprep.mubr.bf16.mxu0 0
        %1740 = vmatmul.mubr.bf16.gmra.mrb[0].mxu0 %v1697
        %v1741 = vpop.f32.mrb[0].mxu0
        %v1742 = vadd.f32 %v1679, %v1741
        %v1743 = vpop.f32.mrb[0].mxu0
        %v1744 = vpop.f32.mrb[0].mxu0
        %v1745 = vadd.f32 %v1679, %v1744
        %v1746 = vpop.f32.mrb[0].mxu0
        %1747 = vdwg.mxu0
        %v1748 = vmax.f32 %v1734, 0.0
        %v1749 = vmax.f32 %v1737, 0.0
        %v1750 = vmax.f32 %v1742, 0.0
        %v1751 = vmax.f32 %v1745, 0.0
        %v1752 = vld [vmem:[%s17] sm:$0xf]
        %v1753 = vld [vmem:[%s17 + $0x4] sm:$0xf]
        %v1754 = vld [vmem:[%s17 + $0x8] sm:$0xf]
        %v1755 = vld [vmem:[%s17 + $0xc] sm:$0xf]
        %v1756 = vld [vmem:[%s17 + $0x10] sm:$0xf]
        %v1757 = vld [vmem:[%s17 + $0x14] sm:$0xf]
        %v1758 = vld [vmem:[%s17 + $0x18] sm:$0xf]
        %v1759 = vld [vmem:[%s17 + $0x1c] sm:$0xf]
        %v1760 = vpack.c.bf16 %v1749, %v1748
        %v1761 = vpack.c.bf16 %v1751, %v1750
        %v1762 = vld [vmem:[%s18] sm:$0x1]
        %v1764 = vlaneseq
        %v1765 = vshrl.u32 %v1764, 7
        %v1766 = vsub.s32 0, %v1765
        %v1767 = vrot.slane %v1762, %v1766
        %v1777 = vunpack.c.l.b16 %v1752
        %v1778 = vunpack.c.l.b16 %v1753
        %v1779 = vunpack.c.l.b16 %v1754
        %v1780 = vunpack.c.l.b16 %v1755
        %v1781 = vunpack.c.l.b16 %v1756
        %v1782 = vunpack.c.l.b16 %v1757
        %v1783 = vunpack.c.l.b16 %v1758
        %v1784 = vunpack.c.l.b16 %v1759
        %v1785 = vpack.c.b16 %v1778, %v1777
        %v1786 = vpack.c.b16 %v1780, %v1779
        %v1787 = vpack.c.b16 %v1782, %v1781
        %v1788 = vpack.c.b16 %v1784, %v1783
        %vm1793 = vcmask 523264
        %v1795 = vsel %vm1793, %v1760, 0
        %v1798 = vsel %vm1793, %v1761, 0
        %1800 = vmatprep.subr.bf16.mxu0 0
        %1801 = vmatpush1.bf16.msra.mxu0 %v1785
        %1802 = vmatprep.subr.bf16.mxu0 0
        %1803 = vmatpush1.bf16.msra.mxu0 %v1786
        %1804 = vmatprep.subr.bf16.mxu0 0
        %1805 = vmatpush1.bf16.msra.mxu0 %v1787
        %1806 = vmatprep.subr.bf16.mxu0 0
        %1807 = vmatpush1.bf16.msra.mxu0 %v1788
        %1808 = vmatprep.subr.bf16.mxu0 0
        %1809 = vmatpush1.bf16.msra.mxu0 0
        %1810 = vmatprep.subr.bf16.mxu0 0
        %1811 = vmatpush1.bf16.msra.mxu0 0
        %1812 = vmatprep.subr.bf16.mxu0 0
        %1813 = vmatpush1.bf16.msra.mxu0 0
        %1814 = vmatprep.subr.bf16.mxu0 0
        %1815 = vmatpush1.bf16.msra.mxu0 0
        %1816 = vmatprep.subr.bf16.mxu0 0
        %1817 = vmatpush1.bf16.msra.mxu0 0
        %1818 = vmatprep.subr.bf16.mxu0 0
        %1819 = vmatpush1.bf16.msra.mxu0 0
        %1820 = vmatprep.subr.bf16.mxu0 0
        %1821 = vmatpush1.bf16.msra.mxu0 0
        %1822 = vmatprep.subr.bf16.mxu0 0
        %1823 = vmatpush1.bf16.msra.mxu0 0
        %1824 = vmatprep.subr.bf16.mxu0 0
        %1825 = vmatpush1.bf16.msra.mxu0 0
        %1826 = vmatprep.subr.bf16.mxu0 0
        %1827 = vmatpush1.bf16.msra.mxu0 0
        %1828 = vmatprep.subr.bf16.mxu0 0
        %1829 = vmatpush1.bf16.msra.mxu0 0
        %1830 = vmatprep.subr.bf16.mxu0 0
        %1831 = vmatpush1.bf16.msra.mxu0 0
        %1832 = vmatprep.mubr.bf16.mxu0 0
        %1833 = vmatmul.mubr.bf16.gmra.mrb[0].mxu0 %v1795
        %v1834 = vpop.f32.mrb[0].mxu0
        %v1835 = vadd.f32 %v1767, %v1834
        %v1836 = vpop.f32.mrb[0].mxu0
        %v1837 = vpop.f32.mrb[0].mxu0
        %v1838 = vadd.f32 %v1767, %v1837
        %v1839 = vpop.f32.mrb[0].mxu0
        %1840 = vmatprep.mubr.bf16.mxu0 0
        %1841 = vmatmul.mubr.bf16.gmra.mrb[0].mxu0 %v1798
        %v1842 = vpop.f32.mrb[0].mxu0
        %v1843 = vadd.f32 %v1767, %v1842
        %v1844 = vpop.f32.mrb[0].mxu0
        %v1845 = vpop.f32.mrb[0].mxu0
        %v1846 = vadd.f32 %v1767, %v1845
        %v1847 = vpop.f32.mrb[0].mxu0
        %1848 = vdwg.mxu0
        %v1849 = vadd.f32 %v1664, %v1835
        %v1850 = vadd.f32 %v1665, %v1838
        %v1851 = vadd.f32 %v1666, %v1843
        %v1852 = vadd.f32 %v1667, %v1846
        %v1853 = vld [vmem:[%s19] sm:$0x1]
        %v1854 = vld [vmem:[%s20] sm:$0x1]
        %v1855 = vsel %vm1044, %v1849, 0.0
        %1856 = vadd.xlane.f32.xlu0 %v1855
        %v1857 = vpop.xlane.xlu0 %1856
        %v1858 = vsel %vm1044, %v1850, 0.0
        %1859 = vadd.xlane.f32.xlu0 %v1858
        %v1860 = vpop.xlane.xlu0 %1859
        %v1861 = vsel %vm1044, %v1851, 0.0
        %1862 = vadd.xlane.f32.xlu0 %v1861
        %v1863 = vpop.xlane.xlu0 %1862
        %v1864 = vsel %vm1044, %v1852, 0.0
        %1865 = vadd.xlane.f32.xlu0 %v1864
        %v1866 = vpop.xlane.xlu0 %1865
        %v1867 = vmul.f32 %v1857, %v1607
        %v1868 = vmul.f32 %v1860, %v1607
        %v1869 = vmul.f32 %v1863, %v1607
        %v1870 = vmul.f32 %v1866, %v1607
        %v1871 = vsub.f32 %v1849, %v1867
        %v1872 = vsub.f32 %v1850, %v1868
        %v1873 = vsub.f32 %v1851, %v1869
        %v1874 = vsub.f32 %v1852, %v1870
        %v1875 = vmul.f32 %v1871, %v1871
        %v1876 = vmul.f32 %v1872, %v1872
        %v1877 = vmul.f32 %v1873, %v1873
        %v1878 = vmul.f32 %v1874, %v1874
        %v1879 = vsel %vm1044, %v1875, 0.0
        %1880 = vadd.xlane.f32.xlu0 %v1879
        %v1881 = vpop.xlane.xlu0 %1880
        %v1882 = vsel %vm1044, %v1876, 0.0
        %1883 = vadd.xlane.f32.xlu0 %v1882
        %v1884 = vpop.xlane.xlu0 %1883
        %v1885 = vsel %vm1044, %v1877, 0.0
        %1886 = vadd.xlane.f32.xlu0 %v1885
        %v1887 = vpop.xlane.xlu0 %1886
        %v1888 = vsel %vm1044, %v1878, 0.0
        %1889 = vadd.xlane.f32.xlu0 %v1888
        %v1890 = vpop.xlane.xlu0 %1889
        %v1891 = vmul.f32 %v1881, %v1607
        %v1892 = vmul.f32 %v1884, %v1607
        %v1893 = vmul.f32 %v1887, %v1607
        %v1894 = vmul.f32 %v1890, %v1607
        %v1895 = vadd.f32 %v1891, 1e-05
        %v1896 = vadd.f32 %v1892, 1e-05
        %v1897 = vadd.f32 %v1893, 1e-05
        %v1898 = vadd.f32 %v1894, 1e-05
        %v1899 = vrsqrt.pop %v1895
        %v1900 = vrsqrt.pop %v1896
        %v1901 = vrsqrt.pop %v1897
        %v1902 = vrsqrt.pop %v1898
        %v1903 = vmul.f32 %v1871, %v1899
        %v1904 = vmul.f32 %v1872, %v1900
        %v1905 = vmul.f32 %v1873, %v1901
        %v1906 = vmul.f32 %v1874, %v1902
        %v1908 = vlaneseq
        %v1909 = vshrl.u32 %v1908, 7
        %v1910 = vsub.s32 0, %v1909
        %v1911 = vrot.slane %v1853, %v1910
        %v1913 = vmul.f32 %v1903, %v1911
        %v1914 = vmul.f32 %v1904, %v1911
        %v1915 = vmul.f32 %v1905, %v1911
        %v1916 = vmul.f32 %v1906, %v1911
        %v1918 = vlaneseq
        %v1919 = vshrl.u32 %v1918, 7
        %v1920 = vsub.s32 0, %v1919
        %v1921 = vrot.slane %v1854, %v1920
        %v1923 = vadd.f32 %v1913, %v1921
        %v1924 = vadd.f32 %v1914, %v1921
        %v1925 = vadd.f32 %v1915, %v1921
        %v1926 = vadd.f32 %v1916, %v1921
        %v1927 = vadd.f32 %v1923, %v861
        %v1928 = vadd.f32 %v1924, %v862
        %v1929 = vadd.f32 %v1925, %v863
        %v1930 = vadd.f32 %v1926, %v864
        %s1931 = scalar_lea.vmem %s5, 16
        %v1932 = vld [vmem:[%s1931] sm:$0xf]
        %v1933 = vld [vmem:[%s1931 + $0x4] sm:$0xf]
        %v1934 = vld [vmem:[%s1931 + $0x8] sm:$0xf]
        %v1935 = vld [vmem:[%s1931 + $0xc] sm:$0xf]
        %v1936 = vpack.c.bf16 %v1928, %v1927
        %v1937 = vpack.c.bf16 %v1930, %v1929
        %s1938 = scalar_lea.vmem %s6, 1
        %v1939 = vld [vmem:[%s1938] sm:$0x1]
        %v1941 = vlaneseq
        %v1942 = vshrl.u32 %v1941, 7
        %v1943 = vsub.s32 0, %v1942
        %v1944 = vrot.slane %v1939, %v1943
        %v1950 = vunpack.c.l.b16 %v1932
        %v1951 = vunpack.c.l.b16 %v1933
        %v1952 = vunpack.c.l.b16 %v1934
        %v1953 = vunpack.c.l.b16 %v1935
        %v1954 = vpack.c.b16 %v1951, %v1950
        %v1955 = vpack.c.b16 %v1953, %v1952
        %v1959 = vsel %vm1044, %v1936, 0
        %v1962 = vsel %vm1044, %v1937, 0
        %1964 = vmatprep.subr.bf16.mxu0 0
        %1965 = vmatpush1.bf16.msra.mxu0 %v1954
        %1966 = vmatprep.subr.bf16.mxu0 0
        %1967 = vmatpush1.bf16.msra.mxu0 %v1955
        %1968 = vmatprep.subr.bf16.mxu0 0
        %1969 = vmatpush1.bf16.msra.mxu0 0
        %1970 = vmatprep.subr.bf16.mxu0 0
        %1971 = vmatpush1.bf16.msra.mxu0 0
        %1972 = vmatprep.subr.bf16.mxu0 0
        %1973 = vmatpush1.bf16.msra.mxu0 0
        %1974 = vmatprep.subr.bf16.mxu0 0
        %1975 = vmatpush1.bf16.msra.mxu0 0
        %1976 = vmatprep.subr.bf16.mxu0 0
        %1977 = vmatpush1.bf16.msra.mxu0 0
        %1978 = vmatprep.subr.bf16.mxu0 0
        %1979 = vmatpush1.bf16.msra.mxu0 0
        %1980 = vmatprep.subr.bf16.mxu0 0
        %1981 = vmatpush1.bf16.msra.mxu0 0
        %1982 = vmatprep.subr.bf16.mxu0 0
        %1983 = vmatpush1.bf16.msra.mxu0 0
        %1984 = vmatprep.subr.bf16.mxu0 0
        %1985 = vmatpush1.bf16.msra.mxu0 0
        %1986 = vmatprep.subr.bf16.mxu0 0
        %1987 = vmatpush1.bf16.msra.mxu0 0
        %1988 = vmatprep.subr.bf16.mxu0 0
        %1989 = vmatpush1.bf16.msra.mxu0 0
        %1990 = vmatprep.subr.bf16.mxu0 0
        %1991 = vmatpush1.bf16.msra.mxu0 0
        %1992 = vmatprep.subr.bf16.mxu0 0
        %1993 = vmatpush1.bf16.msra.mxu0 0
        %1994 = vmatprep.subr.bf16.mxu0 0
        %1995 = vmatpush1.bf16.msra.mxu0 0
        %1996 = vmatprep.mubr.bf16.mxu0 0
        %1997 = vmatmul.mubr.bf16.gmra.mrb[0].mxu0 %v1959
        %v1998 = vpop.f32.mrb[0].mxu0
        %v1999 = vadd.f32 %v1944, %v1998
        %v2000 = vpop.f32.mrb[0].mxu0
        %v2001 = vpop.f32.mrb[0].mxu0
        %v2002 = vadd.f32 %v1944, %v2001
        %v2003 = vpop.f32.mrb[0].mxu0
        %2004 = vmatprep.mubr.bf16.mxu0 0
        %2005 = vmatmul.mubr.bf16.gmra.mrb[0].mxu0 %v1962
        %v2006 = vpop.f32.mrb[0].mxu0
        %v2007 = vadd.f32 %v1944, %v2006
        %v2008 = vpop.f32.mrb[0].mxu0
        %v2009 = vpop.f32.mrb[0].mxu0
        %v2010 = vadd.f32 %v1944, %v2009
        %v2011 = vpop.f32.mrb[0].mxu0
        %2012 = vdwg.mxu0
        %s2013 = scalar_lea.vmem %s7, 16
        %v2014 = vld [vmem:[%s2013] sm:$0xf]
        %v2015 = vld [vmem:[%s2013 + $0x4] sm:$0xf]
        %v2016 = vld [vmem:[%s2013 + $0x8] sm:$0xf]
        %v2017 = vld [vmem:[%s2013 + $0xc] sm:$0xf]
        %s2018 = scalar_lea.vmem [#allocation2], 1
        %v2019 = vld [vmem:[%s2018] sm:$0x1]
        %v2021 = vlaneseq
        %v2022 = vshrl.u32 %v2021, 7
        %v2023 = vsub.s32 0, %v2022
        %v2024 = vrot.slane %v2019, %v2023
        %v2030 = vunpack.c.l.b16 %v2014
        %v2031 = vunpack.c.l.b16 %v2015
        %v2032 = vunpack.c.l.b16 %v2016
        %v2033 = vunpack.c.l.b16 %v2017
        %v2034 = vpack.c.b16 %v2031, %v2030
        %v2035 = vpack.c.b16 %v2033, %v2032
        %2038 = vmatprep.subr.bf16.mxu0 0
        %2039 = vmatpush1.bf16.msra.mxu0 %v2034
        %2040 = vmatprep.subr.bf16.mxu0 0
        %2041 = vmatpush1.bf16.msra.mxu0 %v2035
        %2042 = vmatprep.subr.bf16.mxu0 0
        %2043 = vmatpush1.bf16.msra.mxu0 0
        %2044 = vmatprep.subr.bf16.mxu0 0
        %2045 = vmatpush1.bf16.msra.mxu0 0
        %2046 = vmatprep.subr.bf16.mxu0 0
        %2047 = vmatpush1.bf16.msra.mxu0 0
        %2048 = vmatprep.subr.bf16.mxu0 0
        %2049 = vmatpush1.bf16.msra.mxu0 0
        %2050 = vmatprep.subr.bf16.mxu0 0
        %2051 = vmatpush1.bf16.msra.mxu0 0
        %2052 = vmatprep.subr.bf16.mxu0 0
        %2053 = vmatpush1.bf16.msra.mxu0 0
        %2054 = vmatprep.subr.bf16.mxu0 0
        %2055 = vmatpush1.bf16.msra.mxu0 0
        %2056 = vmatprep.subr.bf16.mxu0 0
        %2057 = vmatpush1.bf16.msra.mxu0 0
        %2058 = vmatprep.subr.bf16.mxu0 0
        %2059 = vmatpush1.bf16.msra.mxu0 0
        %2060 = vmatprep.subr.bf16.mxu0 0
        %2061 = vmatpush1.bf16.msra.mxu0 0
        %2062 = vmatprep.subr.bf16.mxu0 0
        %2063 = vmatpush1.bf16.msra.mxu0 0
        %2064 = vmatprep.subr.bf16.mxu0 0
        %2065 = vmatpush1.bf16.msra.mxu0 0
        %2066 = vmatprep.subr.bf16.mxu0 0
        %2067 = vmatpush1.bf16.msra.mxu0 0
        %2068 = vmatprep.subr.bf16.mxu0 0
        %2069 = vmatpush1.bf16.msra.mxu0 0
        %2070 = vmatprep.mubr.bf16.mxu0 0
        %2071 = vmatmul.mubr.bf16.gmra.mrb[0].mxu0 %v1959
        %v2072 = vpop.f32.mrb[0].mxu0
        %v2073 = vadd.f32 %v2024, %v2072
        %v2074 = vpop.f32.mrb[0].mxu0
        %v2075 = vpop.f32.mrb[0].mxu0
        %v2076 = vadd.f32 %v2024, %v2075
        %v2077 = vpop.f32.mrb[0].mxu0
        %2078 = vmatprep.mubr.bf16.mxu0 0
        %2079 = vmatmul.mubr.bf16.gmra.mrb[0].mxu0 %v1962
        %v2080 = vpop.f32.mrb[0].mxu0
        %v2081 = vadd.f32 %v2024, %v2080
        %v2082 = vpop.f32.mrb[0].mxu0
        %v2083 = vpop.f32.mrb[0].mxu0
        %v2084 = vadd.f32 %v2024, %v2083
        %v2085 = vpop.f32.mrb[0].mxu0
        %2086 = vdwg.mxu0
        %s2087 = scalar_lea.vmem %s9, 16
        %v2088 = vld [vmem:[%s2087] sm:$0xf]
        %v2089 = vld [vmem:[%s2087 + $0x4] sm:$0xf]
        %v2090 = vld [vmem:[%s2087 + $0x8] sm:$0xf]
        %v2091 = vld [vmem:[%s2087 + $0xc] sm:$0xf]
        %v2092 = vpack.c.bf16 %v1924, %v1923
        %v2093 = vpack.c.bf16 %v1926, %v1925
        %s2094 = scalar_lea.vmem [#allocation5], 1
        %v2095 = vld [vmem:[%s2094] sm:$0x1]
        %v2097 = vlaneseq
        %v2098 = vshrl.u32 %v2097, 7
        %v2099 = vsub.s32 0, %v2098
        %v2100 = vrot.slane %v2095, %v2099
        %v2106 = vunpack.c.l.b16 %v2088
        %v2107 = vunpack.c.l.b16 %v2089
        %v2108 = vunpack.c.l.b16 %v2090
        %v2109 = vunpack.c.l.b16 %v2091
        %v2110 = vpack.c.b16 %v2107, %v2106
        %v2111 = vpack.c.b16 %v2109, %v2108
        %v2115 = vsel %vm1044, %v2092, 0
        %v2118 = vsel %vm1044, %v2093, 0
        %2120 = vmatprep.subr.bf16.mxu0 0
        %2121 = vmatpush1.bf16.msra.mxu0 %v2110
        %2122 = vmatprep.subr.bf16.mxu0 0
        %2123 = vmatpush1.bf16.msra.mxu0 %v2111
        %2124 = vmatprep.subr.bf16.mxu0 0
        %2125 = vmatpush1.bf16.msra.mxu0 0
        %2126 = vmatprep.subr.bf16.mxu0 0
        %2127 = vmatpush1.bf16.msra.mxu0 0
        %2128 = vmatprep.subr.bf16.mxu0 0
        %2129 = vmatpush1.bf16.msra.mxu0 0
        %2130 = vmatprep.subr.bf16.mxu0 0
        %2131 = vmatpush1.bf16.msra.mxu0 0
        %2132 = vmatprep.subr.bf16.mxu0 0
        %2133 = vmatpush1.bf16.msra.mxu0 0
        %2134 = vmatprep.subr.bf16.mxu0 0
        %2135 = vmatpush1.bf16.msra.mxu0 0
        %2136 = vmatprep.subr.bf16.mxu0 0
        %2137 = vmatpush1.bf16.msra.mxu0 0
        %2138 = vmatprep.subr.bf16.mxu0 0
        %2139 = vmatpush1.bf16.msra.mxu0 0
        %2140 = vmatprep.subr.bf16.mxu0 0
        %2141 = vmatpush1.bf16.msra.mxu0 0
        %2142 = vmatprep.subr.bf16.mxu0 0
        %2143 = vmatpush1.bf16.msra.mxu0 0
        %2144 = vmatprep.subr.bf16.mxu0 0
        %2145 = vmatpush1.bf16.msra.mxu0 0
        %2146 = vmatprep.subr.bf16.mxu0 0
        %2147 = vmatpush1.bf16.msra.mxu0 0
        %2148 = vmatprep.subr.bf16.mxu0 0
        %2149 = vmatpush1.bf16.msra.mxu0 0
        %2150 = vmatprep.subr.bf16.mxu0 0
        %2151 = vmatpush1.bf16.msra.mxu0 0
        %2152 = vmatprep.mubr.bf16.mxu0 0
        %2153 = vmatmul.mubr.bf16.gmra.mrb[0].mxu0 %v2115
        %v2154 = vpop.f32.mrb[0].mxu0
        %v2155 = vadd.f32 %v2100, %v2154
        %v2156 = vpop.f32.mrb[0].mxu0
        %v2157 = vpop.f32.mrb[0].mxu0
        %v2158 = vadd.f32 %v2100, %v2157
        %v2159 = vpop.f32.mrb[0].mxu0
        %2160 = vmatprep.mubr.bf16.mxu0 0
        %2161 = vmatmul.mubr.bf16.gmra.mrb[0].mxu0 %v2118
        %v2162 = vpop.f32.mrb[0].mxu0
        %v2163 = vadd.f32 %v2100, %v2162
        %v2164 = vpop.f32.mrb[0].mxu0
        %v2165 = vpop.f32.mrb[0].mxu0
        %v2166 = vadd.f32 %v2100, %v2165
        %v2167 = vpop.f32.mrb[0].mxu0
        %2168 = vdwg.mxu0
        %v2169 = vmul.f32 %v2073, %v865
        %v2170 = vmul.f32 %v2076, %v866
        %v2171 = vmul.f32 %v2081, %v867
        %v2172 = vmul.f32 %v2084, %v868
        %v2173 = vmul.f32 %v2073, %v869
        %v2174 = vmul.f32 %v2076, %v870
        %v2175 = vmul.f32 %v2081, %v871
        %v2176 = vmul.f32 %v2084, %v872
        %v2177 = vmul.f32 %v2073, %v873
        %v2178 = vmul.f32 %v2076, %v874
        %v2179 = vmul.f32 %v2081, %v875
        %v2180 = vmul.f32 %v2084, %v876
        %v2181 = vmul.f32 %v2073, %v877
        %v2182 = vmul.f32 %v2076, %v878
        %v2183 = vmul.f32 %v2081, %v879
        %v2184 = vmul.f32 %v2084, %v880
        %v2185 = vpack.c.bf16 %v2170, %v2169
        %v2186 = vpack.c.bf16 %v2172, %v2171
        %v2187 = vpack.c.bf16 %v2174, %v2173
        %v2188 = vpack.c.bf16 %v2176, %v2175
        %v2189 = vpack.c.bf16 %v2178, %v2177
        %v2190 = vpack.c.bf16 %v2180, %v2179
        %v2191 = vpack.c.bf16 %v2182, %v2181
        %v2192 = vpack.c.bf16 %v2184, %v2183
        %v2193 = vmul.f32 %v2155, %v865
        %v2194 = vmul.f32 %v2158, %v866
        %v2195 = vmul.f32 %v2163, %v867
        %v2196 = vmul.f32 %v2166, %v868
        %v2197 = vmul.f32 %v2155, %v869
        %v2198 = vmul.f32 %v2158, %v870
        %v2199 = vmul.f32 %v2163, %v871
        %v2200 = vmul.f32 %v2166, %v872
        %v2201 = vmul.f32 %v2155, %v873
        %v2202 = vmul.f32 %v2158, %v874
        %v2203 = vmul.f32 %v2163, %v875
        %v2204 = vmul.f32 %v2166, %v876
        %v2205 = vmul.f32 %v2155, %v877
        %v2206 = vmul.f32 %v2158, %v878
        %v2207 = vmul.f32 %v2163, %v879
        %v2208 = vmul.f32 %v2166, %v880
        %v2209 = vpack.c.bf16 %v2194, %v2193
        %v2210 = vpack.c.bf16 %v2196, %v2195
        %v2211 = vpack.c.bf16 %v2198, %v2197
        %v2212 = vpack.c.bf16 %v2200, %v2199
        %v2213 = vpack.c.bf16 %v2202, %v2201
        %v2214 = vpack.c.bf16 %v2204, %v2203
        %v2215 = vpack.c.bf16 %v2206, %v2205
        %v2216 = vpack.c.bf16 %v2208, %v2207
        %v2217 = vpack.c.bf16 %v2002, %v1999
        %v2218 = vpack.c.bf16 %v2010, %v2007
        %v2220 = vsel %vm1044, %v2217, 0
        %v2223 = vsel %vm1044, %v2218, 0
        %v2226 = vsel %vm1044, %v2185, 0
        %v2229 = vsel %vm1044, %v2186, 0
        %v2232 = vsel %vm1044, %v2187, 0
        %v2235 = vsel %vm1044, %v2188, 0
        %v2238 = vsel %vm1044, %v2189, 0
        %v2241 = vsel %vm1044, %v2190, 0
        %v2244 = vsel %vm1044, %v2191, 0
        %v2247 = vsel %vm1044, %v2192, 0
        %2249 = vmatprep.subr.bf16.mxu0 0
        %2250 = vmatpush1.bf16.xpose.msra.mxu0 %v2226
        %2251 = vmatprep.subr.bf16.mxu0 0
        %2252 = vmatpush1.bf16.xpose.msra.mxu0 %v2229
        %2253 = vmatprep.subr.bf16.mxu0 0
        %2254 = vmatpush1.bf16.xpose.msra.mxu0 %v2232
        %2255 = vmatprep.subr.bf16.mxu0 0
        %2256 = vmatpush1.bf16.xpose.msra.mxu0 %v2235
        %2257 = vmatprep.subr.bf16.mxu0 0
        %2258 = vmatpush1.bf16.xpose.msra.mxu0 %v2238
        %2259 = vmatprep.subr.bf16.mxu0 0
        %2260 = vmatpush1.bf16.xpose.msra.mxu0 %v2241
        %2261 = vmatprep.subr.bf16.mxu0 0
        %2262 = vmatpush1.bf16.xpose.msra.mxu0 %v2244
        %2263 = vmatprep.subr.bf16.mxu0 0
        %2264 = vmatpush1.bf16.xpose.msra.mxu0 %v2247
        %2265 = vmatprep.subr.bf16.mxu0 0
        %2266 = vmatpush1.bf16.xpose.msra.mxu0 0
        %2267 = vmatprep.subr.bf16.mxu0 0
        %2268 = vmatpush1.bf16.xpose.msra.mxu0 0
        %2269 = vmatprep.subr.bf16.mxu0 0
        %2270 = vmatpush1.bf16.xpose.msra.mxu0 0
        %2271 = vmatprep.subr.bf16.mxu0 0
        %2272 = vmatpush1.bf16.xpose.msra.mxu0 0
        %2273 = vmatprep.subr.bf16.mxu0 0
        %2274 = vmatpush1.bf16.xpose.msra.mxu0 0
        %2275 = vmatprep.subr.bf16.mxu0 0
        %2276 = vmatpush1.bf16.xpose.msra.mxu0 0
        %2277 = vmatprep.subr.bf16.mxu0 0
        %2278 = vmatpush1.bf16.xpose.msra.mxu0 0
        %2279 = vmatprep.subr.bf16.mxu0 0
        %2280 = vmatpush1.bf16.xpose.msra.mxu0 0
        %2281 = vmatprep.mubr.bf16.mxu0 0
        %2282 = vmatmul.mubr.bf16.gmra.mrb[0].mxu0 %v2220
        %v2283 = vpop.f32.mrb[0].mxu0
        %v2284 = vadd.f32 %v894, %v2283
        %v2285 = vpop.f32.mrb[0].mxu0
        %v2286 = vpop.f32.mrb[0].mxu0
        %v2287 = vadd.f32 %v894, %v2286
        %v2288 = vpop.f32.mrb[0].mxu0
        %2289 = vmatprep.mubr.bf16.mxu0 0
        %2290 = vmatmul.mubr.bf16.gmra.mrb[0].mxu0 %v2223
        %v2291 = vpop.f32.mrb[0].mxu0
        %v2292 = vadd.f32 %v894, %v2291
        %v2293 = vpop.f32.mrb[0].mxu0
        %v2294 = vpop.f32.mrb[0].mxu0
        %v2295 = vadd.f32 %v894, %v2294
        %v2296 = vpop.f32.mrb[0].mxu0
        %2297 = vdwg.mxu0
        %2298 = vmax.xlane.f32.xlu0 %v2284
        %v2299 = vpop.xlane.xlu0 %2298
        %2300 = vmax.xlane.f32.xlu0 %v2287
        %v2301 = vpop.xlane.xlu0 %2300
        %2302 = vmax.xlane.f32.xlu0 %v2292
        %v2303 = vpop.xlane.xlu0 %2302
        %2304 = vmax.xlane.f32.xlu0 %v2295
        %v2305 = vpop.xlane.xlu0 %2304
        %v2306 = vsub.f32 %v2284, %v2299
        %v2307 = vsub.f32 %v2287, %v2301
        %v2308 = vsub.f32 %v2292, %v2303
        %v2309 = vsub.f32 %v2295, %v2305
        %v2310 = vmul.f32 %v2306, 1.442695
        %v2311 = vpow.pop %v2310
        %v2312 = vmul.f32 %v2307, 1.442695
        %v2313 = vpow.pop %v2312
        %v2314 = vmul.f32 %v2308, 1.442695
        %v2315 = vpow.pop %v2314
        %v2316 = vmul.f32 %v2309, 1.442695
        %v2317 = vpow.pop %v2316
        %v2318 = vpack.c.bf16 %v2313, %v2311
        %v2319 = vpack.c.bf16 %v2317, %v2315
        %2320 = vmatprep.subr.bf16.mxu0 0
        %2321 = vmatpush1.bf16.msra.mxu0 %v881
        %2322 = vmatprep.subr.bf16.mxu0 0
        %2323 = vmatpush1.bf16.msra.mxu0 %v882
        %2324 = vmatprep.subr.bf16.mxu0 0
        %2325 = vmatpush1.bf16.msra.mxu0 %v883
        %2326 = vmatprep.subr.bf16.mxu0 0
        %2327 = vmatpush1.bf16.msra.mxu0 %v884
        %2328 = vmatprep.subr.bf16.mxu0 0
        %2329 = vmatpush1.bf16.msra.mxu0 %v885
        %2330 = vmatprep.subr.bf16.mxu0 0
        %2331 = vmatpush1.bf16.msra.mxu0 %v886
        %2332 = vmatprep.subr.bf16.mxu0 0
        %2333 = vmatpush1.bf16.msra.mxu0 %v887
        %2334 = vmatprep.subr.bf16.mxu0 0
        %2335 = vmatpush1.bf16.msra.mxu0 %v888
        %2336 = vmatprep.subr.bf16.mxu0 0
        %2337 = vmatpush1.bf16.msra.mxu0 0
        %2338 = vmatprep.subr.bf16.mxu0 0
        %2339 = vmatpush1.bf16.msra.mxu0 0
        %2340 = vmatprep.subr.bf16.mxu0 0
        %2341 = vmatpush1.bf16.msra.mxu0 0
        %2342 = vmatprep.subr.bf16.mxu0 0
        %2343 = vmatpush1.bf16.msra.mxu0 0
        %2344 = vmatprep.subr.bf16.mxu0 0
        %2345 = vmatpush1.bf16.msra.mxu0 0
        %2346 = vmatprep.subr.bf16.mxu0 0
        %2347 = vmatpush1.bf16.msra.mxu0 0
        %2348 = vmatprep.subr.bf16.mxu0 0
        %2349 = vmatpush1.bf16.msra.mxu0 0
        %2350 = vmatprep.subr.bf16.mxu0 0
        %2351 = vmatpush1.bf16.msra.mxu0 0
        %2352 = vmatprep.mubr.bf16.mxu0 0
        %2353 = vmatmul.mubr.bf16.gmra.mrb[0].mxu0 %v2318
        %v2354 = vpop.f32.mrb[0].mxu0
        %v2355 = vadd.f32 0.0, %v2354
        %v2356 = vpop.f32.mrb[0].mxu0
        %v2357 = vpop.f32.mrb[0].mxu0
        %v2358 = vadd.f32 0.0, %v2357
        %v2359 = vpop.f32.mrb[0].mxu0
        %2360 = vmatprep.mubr.bf16.mxu0 0
        %2361 = vmatmul.mubr.bf16.gmra.mrb[0].mxu0 %v2319
        %v2362 = vpop.f32.mrb[0].mxu0
        %v2363 = vadd.f32 0.0, %v2362
        %v2364 = vpop.f32.mrb[0].mxu0
        %v2365 = vpop.f32.mrb[0].mxu0
        %v2366 = vadd.f32 0.0, %v2365
        %v2367 = vpop.f32.mrb[0].mxu0
        %2368 = vdwg.mxu0
        %2369 = vmatprep.subr.bf16.mxu0 0
        %2370 = vmatpush1.bf16.msra.mxu0 %v2209
        %2371 = vmatprep.subr.bf16.mxu0 0
        %2372 = vmatpush1.bf16.msra.mxu0 %v2210
        %2373 = vmatprep.subr.bf16.mxu0 0
        %2374 = vmatpush1.bf16.msra.mxu0 %v2211
        %2375 = vmatprep.subr.bf16.mxu0 0
        %2376 = vmatpush1.bf16.msra.mxu0 %v2212
        %2377 = vmatprep.subr.bf16.mxu0 0
        %2378 = vmatpush1.bf16.msra.mxu0 %v2213
        %2379 = vmatprep.subr.bf16.mxu0 0
        %2380 = vmatpush1.bf16.msra.mxu0 %v2214
        %2381 = vmatprep.subr.bf16.mxu0 0
        %2382 = vmatpush1.bf16.msra.mxu0 %v2215
        %2383 = vmatprep.subr.bf16.mxu0 0
        %2384 = vmatpush1.bf16.msra.mxu0 %v2216
        %2385 = vmatprep.subr.bf16.mxu0 0
        %2386 = vmatpush1.bf16.msra.mxu0 0
        %2387 = vmatprep.subr.bf16.mxu0 0
        %2388 = vmatpush1.bf16.msra.mxu0 0
        %2389 = vmatprep.subr.bf16.mxu0 0
        %2390 = vmatpush1.bf16.msra.mxu0 0
        %2391 = vmatprep.subr.bf16.mxu0 0
        %2392 = vmatpush1.bf16.msra.mxu0 0
        %2393 = vmatprep.subr.bf16.mxu0 0
        %2394 = vmatpush1.bf16.msra.mxu0 0
        %2395 = vmatprep.subr.bf16.mxu0 0
        %2396 = vmatpush1.bf16.msra.mxu0 0
        %2397 = vmatprep.subr.bf16.mxu0 0
        %2398 = vmatpush1.bf16.msra.mxu0 0
        %2399 = vmatprep.subr.bf16.mxu0 0
        %2400 = vmatpush1.bf16.msra.mxu0 0
        %2401 = vmatprep.mubr.bf16.mxu0 0
        %2402 = vmatmul.mubr.bf16.gmra.mrb[0].mxu0 %v2318
        %v2403 = vpop.f32.mrb[0].mxu0
        %v2404 = vadd.f32 0.0, %v2403
        %v2405 = vpop.f32.mrb[0].mxu0
        %v2406 = vpop.f32.mrb[0].mxu0
        %v2407 = vadd.f32 0.0, %v2406
        %v2408 = vpop.f32.mrb[0].mxu0
        %2409 = vmatprep.mubr.bf16.mxu0 0
        %2410 = vmatmul.mubr.bf16.gmra.mrb[0].mxu0 %v2319
        %v2411 = vpop.f32.mrb[0].mxu0
        %v2412 = vadd.f32 0.0, %v2411
        %v2413 = vpop.f32.mrb[0].mxu0
        %v2414 = vpop.f32.mrb[0].mxu0
        %v2415 = vadd.f32 0.0, %v2414
        %v2416 = vpop.f32.mrb[0].mxu0
        %2417 = vdwg.mxu0
        %v2418 = vrcp.pop %v2355
        %v2419 = vrcp.pop %v2358
        %v2420 = vrcp.pop %v2363
        %v2421 = vrcp.pop %v2366
        %v2422 = vmul.f32 %v2404, %v2418
        %v2423 = vmul.f32 %v2407, %v2419
        %v2424 = vmul.f32 %v2412, %v2420
        %v2425 = vmul.f32 %v2415, %v2421
        %s2426 = scalar_lea.vmem %s11, 16
        %v2427 = vld [vmem:[%s2426] sm:$0xf]
        %v2428 = vld [vmem:[%s2426 + $0x4] sm:$0xf]
        %v2429 = vld [vmem:[%s2426 + $0x8] sm:$0xf]
        %v2430 = vld [vmem:[%s2426 + $0xc] sm:$0xf]
        %v2431 = vpack.c.bf16 %v2423, %v2422
        %v2432 = vpack.c.bf16 %v2425, %v2424
        %s2433 = scalar_lea.vmem %s12, 1
        %v2434 = vld [vmem:[%s2433] sm:$0x1]
        %v2436 = vlaneseq
        %v2437 = vshrl.u32 %v2436, 7
        %v2438 = vsub.s32 0, %v2437
        %v2439 = vrot.slane %v2434, %v2438
        %v2445 = vunpack.c.l.b16 %v2427
        %v2446 = vunpack.c.l.b16 %v2428
        %v2447 = vunpack.c.l.b16 %v2429
        %v2448 = vunpack.c.l.b16 %v2430
        %v2449 = vpack.c.b16 %v2446, %v2445
        %v2450 = vpack.c.b16 %v2448, %v2447
        %v2454 = vsel %vm1044, %v2431, 0
        %v2457 = vsel %vm1044, %v2432, 0
        %2459 = vmatprep.subr.bf16.mxu0 0
        %2460 = vmatpush1.bf16.msra.mxu0 %v2449
        %2461 = vmatprep.subr.bf16.mxu0 0
        %2462 = vmatpush1.bf16.msra.mxu0 %v2450
        %2463 = vmatprep.subr.bf16.mxu0 0
        %2464 = vmatpush1.bf16.msra.mxu0 0
        %2465 = vmatprep.subr.bf16.mxu0 0
        %2466 = vmatpush1.bf16.msra.mxu0 0
        %2467 = vmatprep.subr.bf16.mxu0 0
        %2468 = vmatpush1.bf16.msra.mxu0 0
        %2469 = vmatprep.subr.bf16.mxu0 0
        %2470 = vmatpush1.bf16.msra.mxu0 0
        %2471 = vmatprep.subr.bf16.mxu0 0
        %2472 = vmatpush1.bf16.msra.mxu0 0
        %2473 = vmatprep.subr.bf16.mxu0 0
        %2474 = vmatpush1.bf16.msra.mxu0 0
        %2475 = vmatprep.subr.bf16.mxu0 0
        %2476 = vmatpush1.bf16.msra.mxu0 0
        %2477 = vmatprep.subr.bf16.mxu0 0
        %2478 = vmatpush1.bf16.msra.mxu0 0
        %2479 = vmatprep.subr.bf16.mxu0 0
        %2480 = vmatpush1.bf16.msra.mxu0 0
        %2481 = vmatprep.subr.bf16.mxu0 0
        %2482 = vmatpush1.bf16.msra.mxu0 0
        %2483 = vmatprep.subr.bf16.mxu0 0
        %2484 = vmatpush1.bf16.msra.mxu0 0
        %2485 = vmatprep.subr.bf16.mxu0 0
        %2486 = vmatpush1.bf16.msra.mxu0 0
        %2487 = vmatprep.subr.bf16.mxu0 0
        %2488 = vmatpush1.bf16.msra.mxu0 0
        %2489 = vmatprep.subr.bf16.mxu0 0
        %2490 = vmatpush1.bf16.msra.mxu0 0
        %2491 = vmatprep.mubr.bf16.mxu0 0
        %2492 = vmatmul.mubr.bf16.gmra.mrb[0].mxu0 %v2454
        %v2493 = vpop.f32.mrb[0].mxu0
        %v2494 = vadd.f32 %v2439, %v2493
        %v2495 = vpop.f32.mrb[0].mxu0
        %v2496 = vpop.f32.mrb[0].mxu0
        %v2497 = vadd.f32 %v2439, %v2496
        %v2498 = vpop.f32.mrb[0].mxu0
        %2499 = vmatprep.mubr.bf16.mxu0 0
        %2500 = vmatmul.mubr.bf16.gmra.mrb[0].mxu0 %v2457
        %v2501 = vpop.f32.mrb[0].mxu0
        %v2502 = vadd.f32 %v2439, %v2501
        %v2503 = vpop.f32.mrb[0].mxu0
        %v2504 = vpop.f32.mrb[0].mxu0
        %v2505 = vadd.f32 %v2439, %v2504
        %v2506 = vpop.f32.mrb[0].mxu0
        %2507 = vdwg.mxu0
        %v2508 = vadd.f32 %v1923, %v2494
        %v2509 = vadd.f32 %v1924, %v2497
        %v2510 = vadd.f32 %v1925, %v2502
        %v2511 = vadd.f32 %v1926, %v2505
        %s2512 = scalar_lea.vmem %s13, 1
        %v2513 = vld [vmem:[%s2512] sm:$0x1]
        %s2514 = scalar_lea.vmem %s14, 1
        %v2515 = vld [vmem:[%s2514] sm:$0x1]
        %v2516 = vsel %vm1044, %v2508, 0.0
        %2517 = vadd.xlane.f32.xlu0 %v2516
        %v2518 = vpop.xlane.xlu0 %2517
        %v2519 = vsel %vm1044, %v2509, 0.0
        %2520 = vadd.xlane.f32.xlu0 %v2519
        %v2521 = vpop.xlane.xlu0 %2520
        %v2522 = vsel %vm1044, %v2510, 0.0
        %2523 = vadd.xlane.f32.xlu0 %v2522
        %v2524 = vpop.xlane.xlu0 %2523
        %v2525 = vsel %vm1044, %v2511, 0.0
        %2526 = vadd.xlane.f32.xlu0 %v2525
        %v2527 = vpop.xlane.xlu0 %2526
        %v2528 = vmul.f32 %v2518, %v1607
        %v2529 = vmul.f32 %v2521, %v1607
        %v2530 = vmul.f32 %v2524, %v1607
        %v2531 = vmul.f32 %v2527, %v1607
        %v2532 = vsub.f32 %v2508, %v2528
        %v2533 = vsub.f32 %v2509, %v2529
        %v2534 = vsub.f32 %v2510, %v2530
        %v2535 = vsub.f32 %v2511, %v2531
        %v2536 = vmul.f32 %v2532, %v2532
        %v2537 = vmul.f32 %v2533, %v2533
        %v2538 = vmul.f32 %v2534, %v2534
        %v2539 = vmul.f32 %v2535, %v2535
        %v2540 = vsel %vm1044, %v2536, 0.0
        %2541 = vadd.xlane.f32.xlu0 %v2540
        %v2542 = vpop.xlane.xlu0 %2541
        %v2543 = vsel %vm1044, %v2537, 0.0
        %2544 = vadd.xlane.f32.xlu0 %v2543
        %v2545 = vpop.xlane.xlu0 %2544
        %v2546 = vsel %vm1044, %v2538, 0.0
        %2547 = vadd.xlane.f32.xlu0 %v2546
        %v2548 = vpop.xlane.xlu0 %2547
        %v2549 = vsel %vm1044, %v2539, 0.0
        %2550 = vadd.xlane.f32.xlu0 %v2549
        %v2551 = vpop.xlane.xlu0 %2550
        %v2552 = vmul.f32 %v2542, %v1607
        %v2553 = vmul.f32 %v2545, %v1607
        %v2554 = vmul.f32 %v2548, %v1607
        %v2555 = vmul.f32 %v2551, %v1607
        %v2556 = vadd.f32 %v2552, 1e-05
        %v2557 = vadd.f32 %v2553, 1e-05
        %v2558 = vadd.f32 %v2554, 1e-05
        %v2559 = vadd.f32 %v2555, 1e-05
        %v2560 = vrsqrt.pop %v2556
        %v2561 = vrsqrt.pop %v2557
        %v2562 = vrsqrt.pop %v2558
        %v2563 = vrsqrt.pop %v2559
        %v2564 = vmul.f32 %v2532, %v2560
        %v2565 = vmul.f32 %v2533, %v2561
        %v2566 = vmul.f32 %v2534, %v2562
        %v2567 = vmul.f32 %v2535, %v2563
        %v2569 = vlaneseq
        %v2570 = vshrl.u32 %v2569, 7
        %v2571 = vsub.s32 0, %v2570
        %v2572 = vrot.slane %v2513, %v2571
        %v2574 = vmul.f32 %v2564, %v2572
        %v2575 = vmul.f32 %v2565, %v2572
        %v2576 = vmul.f32 %v2566, %v2572
        %v2577 = vmul.f32 %v2567, %v2572
        %v2579 = vlaneseq
        %v2580 = vshrl.u32 %v2579, 7
        %v2581 = vsub.s32 0, %v2580
        %v2582 = vrot.slane %v2515, %v2581
        %v2584 = vadd.f32 %v2574, %v2582
        %v2585 = vadd.f32 %v2575, %v2582
        %v2586 = vadd.f32 %v2576, %v2582
        %v2587 = vadd.f32 %v2577, %v2582
        %s2588 = scalar_lea.vmem %s15, 16
        %v2589 = vld [vmem:[%s2588] sm:$0xf]
        %v2590 = vld [vmem:[%s2588 + $0x4] sm:$0xf]
        %v2591 = vld [vmem:[%s2588 + $0x8] sm:$0xf]
        %v2592 = vld [vmem:[%s2588 + $0xc] sm:$0xf]
        %v2593 = vpack.c.bf16 %v2585, %v2584
        %v2594 = vpack.c.bf16 %v2587, %v2586
        %s2595 = scalar_lea.vmem %s16, 1
        %v2596 = vld [vmem:[%s2595] sm:$0x1]
        %v2598 = vlaneseq
        %v2599 = vshrl.u32 %v2598, 7
        %v2600 = vsub.s32 0, %v2599
        %v2601 = vrot.slane %v2596, %v2600
        %v2607 = vunpack.c.l.b16 %v2589
        %v2608 = vunpack.c.l.b16 %v2590
        %v2609 = vunpack.c.l.b16 %v2591
        %v2610 = vunpack.c.l.b16 %v2592
        %v2611 = vpack.c.b16 %v2608, %v2607
        %v2612 = vpack.c.b16 %v2610, %v2609
        %v2616 = vsel %vm1044, %v2593, 0
        %v2619 = vsel %vm1044, %v2594, 0
        %2621 = vmatprep.subr.bf16.mxu0 0
        %2622 = vmatpush1.bf16.msra.mxu0 %v2611
        %2623 = vmatprep.subr.bf16.mxu0 0
        %2624 = vmatpush1.bf16.msra.mxu0 %v2612
        %2625 = vmatprep.subr.bf16.mxu0 0
        %2626 = vmatpush1.bf16.msra.mxu0 0
        %2627 = vmatprep.subr.bf16.mxu0 0
        %2628 = vmatpush1.bf16.msra.mxu0 0
        %2629 = vmatprep.subr.bf16.mxu0 0
        %2630 = vmatpush1.bf16.msra.mxu0 0
        %2631 = vmatprep.subr.bf16.mxu0 0
        %2632 = vmatpush1.bf16.msra.mxu0 0
        %2633 = vmatprep.subr.bf16.mxu0 0
        %2634 = vmatpush1.bf16.msra.mxu0 0
        %2635 = vmatprep.subr.bf16.mxu0 0
        %2636 = vmatpush1.bf16.msra.mxu0 0
        %2637 = vmatprep.subr.bf16.mxu0 0
        %2638 = vmatpush1.bf16.msra.mxu0 0
        %2639 = vmatprep.subr.bf16.mxu0 0
        %2640 = vmatpush1.bf16.msra.mxu0 0
        %2641 = vmatprep.subr.bf16.mxu0 0
        %2642 = vmatpush1.bf16.msra.mxu0 0
        %2643 = vmatprep.subr.bf16.mxu0 0
        %2644 = vmatpush1.bf16.msra.mxu0 0
        %2645 = vmatprep.subr.bf16.mxu0 0
        %2646 = vmatpush1.bf16.msra.mxu0 0
        %2647 = vmatprep.subr.bf16.mxu0 0
        %2648 = vmatpush1.bf16.msra.mxu0 0
        %2649 = vmatprep.subr.bf16.mxu0 0
        %2650 = vmatpush1.bf16.msra.mxu0 0
        %2651 = vmatprep.subr.bf16.mxu0 0
        %2652 = vmatpush1.bf16.msra.mxu0 0
        %2653 = vmatprep.mubr.bf16.mxu0 0
        %2654 = vmatmul.mubr.bf16.gmra.mrb[0].mxu0 %v2616
        %v2655 = vpop.f32.mrb[0].mxu0
        %v2656 = vadd.f32 %v2601, %v2655
        %v2657 = vpop.f32.mrb[0].mxu0
        %v2658 = vpop.f32.mrb[0].mxu0
        %v2659 = vadd.f32 %v2601, %v2658
        %v2660 = vpop.f32.mrb[0].mxu0
        %2661 = vmatprep.mubr.bf16.mxu0 0
        %2662 = vmatmul.mubr.bf16.gmra.mrb[0].mxu0 %v2619
        %v2663 = vpop.f32.mrb[0].mxu0
        %v2664 = vadd.f32 %v2601, %v2663
        %v2665 = vpop.f32.mrb[0].mxu0
        %v2666 = vpop.f32.mrb[0].mxu0
        %v2667 = vadd.f32 %v2601, %v2666
        %v2668 = vpop.f32.mrb[0].mxu0
        %2669 = vdwg.mxu0
        %v2670 = vmax.f32 %v2656, 0.0
        %v2671 = vmax.f32 %v2659, 0.0
        %v2672 = vmax.f32 %v2664, 0.0
        %v2673 = vmax.f32 %v2667, 0.0
        %s2674 = scalar_lea.vmem %s17, 32
        %v2675 = vld [vmem:[%s2674] sm:$0xf]
        %v2676 = vld [vmem:[%s2674 + $0x4] sm:$0xf]
        %v2677 = vld [vmem:[%s2674 + $0x8] sm:$0xf]
        %v2678 = vld [vmem:[%s2674 + $0xc] sm:$0xf]
        %v2679 = vld [vmem:[%s2674 + $0x10] sm:$0xf]
        %v2680 = vld [vmem:[%s2674 + $0x14] sm:$0xf]
        %v2681 = vld [vmem:[%s2674 + $0x18] sm:$0xf]
        %v2682 = vld [vmem:[%s2674 + $0x1c] sm:$0xf]
        %v2683 = vpack.c.bf16 %v2671, %v2670
        %v2684 = vpack.c.bf16 %v2673, %v2672
        %s2685 = scalar_lea.vmem %s18, 1
        %v2686 = vld [vmem:[%s2685] sm:$0x1]
        %v2688 = vlaneseq
        %v2689 = vshrl.u32 %v2688, 7
        %v2690 = vsub.s32 0, %v2689
        %v2691 = vrot.slane %v2686, %v2690
        %v2701 = vunpack.c.l.b16 %v2675
        %v2702 = vunpack.c.l.b16 %v2676
        %v2703 = vunpack.c.l.b16 %v2677
        %v2704 = vunpack.c.l.b16 %v2678
        %v2705 = vunpack.c.l.b16 %v2679
        %v2706 = vunpack.c.l.b16 %v2680
        %v2707 = vunpack.c.l.b16 %v2681
        %v2708 = vunpack.c.l.b16 %v2682
        %v2709 = vpack.c.b16 %v2702, %v2701
        %v2710 = vpack.c.b16 %v2704, %v2703
        %v2711 = vpack.c.b16 %v2706, %v2705
        %v2712 = vpack.c.b16 %v2708, %v2707
        %v2718 = vsel %vm1793, %v2683, 0
        %v2721 = vsel %vm1793, %v2684, 0
        %2723 = vmatprep.subr.bf16.mxu0 0
        %2724 = vmatpush1.bf16.msra.mxu0 %v2709
        %2725 = vmatprep.subr.bf16.mxu0 0
        %2726 = vmatpush1.bf16.msra.mxu0 %v2710
        %2727 = vmatprep.subr.bf16.mxu0 0
        %2728 = vmatpush1.bf16.msra.mxu0 %v2711
        %2729 = vmatprep.subr.bf16.mxu0 0
        %2730 = vmatpush1.bf16.msra.mxu0 %v2712
        %2731 = vmatprep.subr.bf16.mxu0 0
        %2732 = vmatpush1.bf16.msra.mxu0 0
        %2733 = vmatprep.subr.bf16.mxu0 0
        %2734 = vmatpush1.bf16.msra.mxu0 0
        %2735 = vmatprep.subr.bf16.mxu0 0
        %2736 = vmatpush1.bf16.msra.mxu0 0
        %2737 = vmatprep.subr.bf16.mxu0 0
        %2738 = vmatpush1.bf16.msra.mxu0 0
        %2739 = vmatprep.subr.bf16.mxu0 0
        %2740 = vmatpush1.bf16.msra.mxu0 0
        %2741 = vmatprep.subr.bf16.mxu0 0
        %2742 = vmatpush1.bf16.msra.mxu0 0
        %2743 = vmatprep.subr.bf16.mxu0 0
        %2744 = vmatpush1.bf16.msra.mxu0 0
        %2745 = vmatprep.subr.bf16.mxu0 0
        %2746 = vmatpush1.bf16.msra.mxu0 0
        %2747 = vmatprep.subr.bf16.mxu0 0
        %2748 = vmatpush1.bf16.msra.mxu0 0
        %2749 = vmatprep.subr.bf16.mxu0 0
        %2750 = vmatpush1.bf16.msra.mxu0 0
        %2751 = vmatprep.subr.bf16.mxu0 0
        %2752 = vmatpush1.bf16.msra.mxu0 0
        %2753 = vmatprep.subr.bf16.mxu0 0
        %2754 = vmatpush1.bf16.msra.mxu0 0
        %2755 = vmatprep.mubr.bf16.mxu0 0
        %2756 = vmatmul.mubr.bf16.gmra.mrb[0].mxu0 %v2718
        %v2757 = vpop.f32.mrb[0].mxu0
        %v2758 = vadd.f32 %v2691, %v2757
        %v2759 = vpop.f32.mrb[0].mxu0
        %v2760 = vpop.f32.mrb[0].mxu0
        %v2761 = vpop.f32.mrb[0].mxu0
        %2762 = vmatprep.mubr.bf16.mxu0 0
        %2763 = vmatmul.mubr.bf16.gmra.mrb[0].mxu0 %v2721
        %v2764 = vpop.f32.mrb[0].mxu0
        %v2765 = vpop.f32.mrb[0].mxu0
        %v2766 = vpop.f32.mrb[0].mxu0
        %v2767 = vpop.f32.mrb[0].mxu0
        %2768 = vdwg.mxu0
        %v2769 = vadd.f32 %v2584, %v2758
        %s2770 = scalar_lea.vmem %s19, 1
        %v2771 = vld [vmem:[%s2770] sm:$0x1]
        %s2772 = scalar_lea.vmem %s20, 1
        %v2773 = vld [vmem:[%s2772] sm:$0x1]
        %v2774 = vsel %vm1044, %v2769, 0.0
        %2775 = vadd.xlane.f32.xlu0 %v2774
        %v2776 = vpop.xlane.xlu0 %2775
        %v2777 = vmul.f32 %v2776, %v1607
        %v2778 = vsub.f32 %v2769, %v2777
        %v2779 = vmul.f32 %v2778, %v2778
        %v2780 = vsel %vm1044, %v2779, 0.0
        %2781 = vadd.xlane.f32.xlu0 %v2780
        %v2782 = vpop.xlane.xlu0 %2781
        %v2783 = vmul.f32 %v2782, %v1607
        %v2784 = vadd.f32 %v2783, 1e-05
        %v2785 = vrsqrt.pop %v2784
        %v2786 = vmul.f32 %v2778, %v2785
        %v2788 = vlaneseq
        %v2789 = vshrl.u32 %v2788, 7
        %v2790 = vsub.s32 0, %v2789
        %v2791 = vrot.slane %v2771, %v2790
        %v2793 = vmul.f32 %v2786, %v2791
        %v2795 = vlaneseq
        %v2796 = vshrl.u32 %v2795, 7
        %v2797 = vsub.s32 0, %v2796
        %v2798 = vrot.slane %v2773, %v2797
        %v2800 = vadd.f32 %v2793, %v2798
        %v2801 = vld [vmem:[%s21] sm:$0xf]
        %v2802 = vld [vmem:[%s21 + $0x4] sm:$0xf]
        %v2803 = vld [vmem:[%s21 + $0x8] sm:$0xf]
        %v2804 = vld [vmem:[%s21 + $0xc] sm:$0xf]
        %v2805 = vpack.c.bf16 %v2800, %v2800
        %v2806 = vld [vmem:[%s22] sm:$0x1]
        %v2811 = vunpack.c.l.b16 %v2801
        %v2812 = vunpack.c.l.b16 %v2802
        %v2813 = vunpack.c.l.b16 %v2803
        %v2814 = vunpack.c.l.b16 %v2804
        %v2815 = vpack.c.b16 %v2812, %v2811
        %v2816 = vpack.c.b16 %v2814, %v2813
        %v2820 = vsel %vm1044, %v2805, 0
        %2822 = vmatprep.subr.bf16.mxu0 0
        %2823 = vmatpush1.bf16.msra.mxu0 %v2815
        %2824 = vmatprep.subr.bf16.mxu0 0
        %2825 = vmatpush1.bf16.msra.mxu0 %v2816
        %2826 = vmatprep.subr.bf16.mxu0 0
        %2827 = vmatpush1.bf16.msra.mxu0 0
        %2828 = vmatprep.subr.bf16.mxu0 0
        %2829 = vmatpush1.bf16.msra.mxu0 0
        %2830 = vmatprep.subr.bf16.mxu0 0
        %2831 = vmatpush1.bf16.msra.mxu0 0
        %2832 = vmatprep.subr.bf16.mxu0 0
        %2833 = vmatpush1.bf16.msra.mxu0 0
        %2834 = vmatprep.subr.bf16.mxu0 0
        %2835 = vmatpush1.bf16.msra.mxu0 0
        %2836 = vmatprep.subr.bf16.mxu0 0
        %2837 = vmatpush1.bf16.msra.mxu0 0
        %2838 = vmatprep.subr.bf16.mxu0 0
        %2839 = vmatpush1.bf16.msra.mxu0 0
        %2840 = vmatprep.subr.bf16.mxu0 0
        %2841 = vmatpush1.bf16.msra.mxu0 0
        %2842 = vmatprep.subr.bf16.mxu0 0
        %2843 = vmatpush1.bf16.msra.mxu0 0
        %2844 = vmatprep.subr.bf16.mxu0 0
        %2845 = vmatpush1.bf16.msra.mxu0 0
        %2846 = vmatprep.subr.bf16.mxu0 0
        %2847 = vmatpush1.bf16.msra.mxu0 0
        %2848 = vmatprep.subr.bf16.mxu0 0
        %2849 = vmatpush1.bf16.msra.mxu0 0
        %2850 = vmatprep.subr.bf16.mxu0 0
        %2851 = vmatpush1.bf16.msra.mxu0 0
        %2852 = vmatprep.subr.bf16.mxu0 0
        %2853 = vmatpush1.bf16.msra.mxu0 0
        %2854 = vmatprep.mubr.bf16.mxu0 0
        %2855 = vmatmul.mubr.bf16.gmra.mrb[0].mxu0 %v2820
        %v2856 = vpop.f32.mrb[0].mxu0
        %v2857 = vadd.f32 %v2806, %v2856
        %v2858 = vpop.f32.mrb[0].mxu0
        %v2859 = vpop.f32.mrb[0].mxu0
        %v2860 = vpop.f32.mrb[0].mxu0
        %2861 = vdwg.mxu0
        %v2862 = vmax.f32 %v2857, 0.0
        %v2863 = vld [vmem:[%s23] sm:$0xf]
        %v2864 = vld [vmem:[%s23 + $0x4] sm:$0xf]
        %v2865 = vld [vmem:[%s23 + $0x8] sm:$0xf]
        %v2866 = vld [vmem:[%s23 + $0xc] sm:$0xf]
        %v2867 = vpack.c.bf16 %v2862, %v2862
        %v2868 = vld [vmem:[%s24] sm:$0x1]
        %v2873 = vunpack.c.l.b16 %v2863
        %v2874 = vunpack.c.l.b16 %v2864
        %v2875 = vunpack.c.l.b16 %v2865
        %v2876 = vunpack.c.l.b16 %v2866
        %v2877 = vpack.c.b16 %v2874, %v2873
        %v2878 = vpack.c.b16 %v2876, %v2875
        %v2882 = vsel %vm1044, %v2867, 0
        %2884 = vmatprep.subr.bf16.mxu0 0
        %2885 = vmatpush1.bf16.msra.mxu0 %v2877
        %2886 = vmatprep.subr.bf16.mxu0 0
        %2887 = vmatpush1.bf16.msra.mxu0 %v2878
        %2888 = vmatprep.subr.bf16.mxu0 0
        %2889 = vmatpush1.bf16.msra.mxu0 0
        %2890 = vmatprep.subr.bf16.mxu0 0
        %2891 = vmatpush1.bf16.msra.mxu0 0
        %2892 = vmatprep.subr.bf16.mxu0 0
        %2893 = vmatpush1.bf16.msra.mxu0 0
        %2894 = vmatprep.subr.bf16.mxu0 0
        %2895 = vmatpush1.bf16.msra.mxu0 0
        %2896 = vmatprep.subr.bf16.mxu0 0
        %2897 = vmatpush1.bf16.msra.mxu0 0
        %2898 = vmatprep.subr.bf16.mxu0 0
        %2899 = vmatpush1.bf16.msra.mxu0 0
        %2900 = vmatprep.subr.bf16.mxu0 0
        %2901 = vmatpush1.bf16.msra.mxu0 0
        %2902 = vmatprep.subr.bf16.mxu0 0
        %2903 = vmatpush1.bf16.msra.mxu0 0
        %2904 = vmatprep.subr.bf16.mxu0 0
        %2905 = vmatpush1.bf16.msra.mxu0 0
        %2906 = vmatprep.subr.bf16.mxu0 0
        %2907 = vmatpush1.bf16.msra.mxu0 0
        %2908 = vmatprep.subr.bf16.mxu0 0
        %2909 = vmatpush1.bf16.msra.mxu0 0
        %2910 = vmatprep.subr.bf16.mxu0 0
        %2911 = vmatpush1.bf16.msra.mxu0 0
        %2912 = vmatprep.subr.bf16.mxu0 0
        %2913 = vmatpush1.bf16.msra.mxu0 0
        %2914 = vmatprep.subr.bf16.mxu0 0
        %2915 = vmatpush1.bf16.msra.mxu0 0
        %2916 = vmatprep.mubr.bf16.mxu0 0
        %2917 = vmatmul.mubr.bf16.gmra.mrb[0].mxu0 %v2882
        %v2918 = vpop.f32.mrb[0].mxu0
        %v2919 = vadd.f32 %v2868, %v2918
        %v2920 = vpop.f32.mrb[0].mxu0
        %v2921 = vpop.f32.mrb[0].mxu0
        %v2922 = vpop.f32.mrb[0].mxu0
        %2923 = vdwg.mxu0
        %v2924 = vmax.f32 %v2919, 0.0
        %v2925 = vld [vmem:[%s25] sm:$0xf]
        %v2926 = vld [vmem:[%s25 + $0x4] sm:$0xf]
        %v2927 = vld [vmem:[%s25 + $0x8] sm:$0xf]
        %v2928 = vld [vmem:[%s25 + $0xc] sm:$0xf]
        %v2929 = vpack.c.bf16 %v2924, %v2924
        %v2930 = vld [vmem:[%s26] sm:$0x1]
        %v2935 = vunpack.c.l.b16 %v2925
        %v2936 = vunpack.c.l.b16 %v2926
        %v2937 = vunpack.c.l.b16 %v2927
        %v2938 = vunpack.c.l.b16 %v2928
        %v2939 = vpack.c.b16 %v2936, %v2935
        %v2940 = vpack.c.b16 %v2938, %v2937
        %v2944 = vsel %vm1044, %v2929, 0
        %2946 = vmatprep.subr.bf16.mxu0 0
        %2947 = vmatpush1.bf16.msra.mxu0 %v2939
        %2948 = vmatprep.subr.bf16.mxu0 0
        %2949 = vmatpush1.bf16.msra.mxu0 %v2940
        %2950 = vmatprep.subr.bf16.mxu0 0
        %2951 = vmatpush1.bf16.msra.mxu0 0
        %2952 = vmatprep.subr.bf16.mxu0 0
        %2953 = vmatpush1.bf16.msra.mxu0 0
        %2954 = vmatprep.subr.bf16.mxu0 0
        %2955 = vmatpush1.bf16.msra.mxu0 0
        %2956 = vmatprep.subr.bf16.mxu0 0
        %2957 = vmatpush1.bf16.msra.mxu0 0
        %2958 = vmatprep.subr.bf16.mxu0 0
        %2959 = vmatpush1.bf16.msra.mxu0 0
        %2960 = vmatprep.subr.bf16.mxu0 0
        %2961 = vmatpush1.bf16.msra.mxu0 0
        %2962 = vmatprep.subr.bf16.mxu0 0
        %2963 = vmatpush1.bf16.msra.mxu0 0
        %2964 = vmatprep.subr.bf16.mxu0 0
        %2965 = vmatpush1.bf16.msra.mxu0 0
        %2966 = vmatprep.subr.bf16.mxu0 0
        %2967 = vmatpush1.bf16.msra.mxu0 0
        %2968 = vmatprep.subr.bf16.mxu0 0
        %2969 = vmatpush1.bf16.msra.mxu0 0
        %2970 = vmatprep.subr.bf16.mxu0 0
        %2971 = vmatpush1.bf16.msra.mxu0 0
        %2972 = vmatprep.subr.bf16.mxu0 0
        %2973 = vmatpush1.bf16.msra.mxu0 0
        %2974 = vmatprep.subr.bf16.mxu0 0
        %2975 = vmatpush1.bf16.msra.mxu0 0
        %2976 = vmatprep.subr.bf16.mxu0 0
        %2977 = vmatpush1.bf16.msra.mxu0 0
        %2978 = vmatprep.mubr.bf16.mxu0 0
        %2979 = vmatmul.mubr.bf16.gmra.mrb[0].mxu0 %v2944
        %v2980 = vpop.f32.mrb[0].mxu0
        %v2981 = vadd.f32 %v2930, %v2980
        %v2982 = vpop.f32.mrb[0].mxu0
        %v2983 = vpop.f32.mrb[0].mxu0
        %v2984 = vpop.f32.mrb[0].mxu0
        %2985 = vdwg.mxu0
        %v2986 = vsub.f32 0.0, %v2981
        %v2987 = vmul.f32 %v2986, 1.442695
        %v2988 = vpow.pop %v2987
        %v2989 = vadd.f32 %v2988, 1.0
        %v2990 = vrcp.pop %v2989
        %v2991 = vmul.f32 1.0, %v2990
        %2992 = vst [vmem:[%s851] sm:$0x1] %v2991
        %s2993 = sand.u32 %s628, 1
        %s2994 = scalar_lea.sflag [#allocation4], %s2993
        %s2995 = sand.u32 %s628, 1
        %s2996 = scalar_lea.vmem [#allocation7], %s2995
        // Predicated region
        $region137: #{tpu_custom_call.1} parent=127 // pred_check
          %p2997 = pneg %p638
        $region138: #{tpu_custom_call.1} parent=127 // pred_check_branch
          %2999 = sbr.rel (%p2997) target = $region140
        $region139: #{tpu_custom_call.1} parent=127 // pred_region
          %s3001 = ssub.s32 16, 16
          %3002 = vsyncadd %s2994, %s3001
          %s3003 = smul.addr %s43, 16
          %s3004 = scalar_lea.hbm %s27, %s3003
          %s3006 = sshll.u32 %s2996, 4
          %s3007 = int_to_ptr.vmem [resolvable:$true] %s3006
          %3009 = dma.vmem_to_hbm [thread:$0]  %s3007, 16, %s3004, %s2994
        $region140: #{tpu_custom_call.1} parent=127 // pred_fallthru
          _
      $region128: #{tpu_custom_call.1} parent=5 // pred_fallthru
        _
      %p3010 = scmp.le.s32.totalorder 2, %s38
      // Predicated region
      $region141: #{tpu_custom_call.1} parent=5 // pred_check
        %p3011 = pneg %p3010
      $region142: #{tpu_custom_call.1} parent=5 // pred_check_branch
        %3013 = sbr.rel (%p3011) target = $region144
      $region143: #{tpu_custom_call.1} parent=5 // pred_region
        %s3014 = ssub.s32 %s38, 2
        // Predicated region
        $region145: #{tpu_custom_call.1} parent=143 // pred_check
          %p3015 = pneg %p644
        $region146: #{tpu_custom_call.1} parent=143 // pred_check_branch
          %3017 = sbr.rel (%p3015) target = $region148
        $region147: #{tpu_custom_call.1} parent=143 // pred_region
          %s3018 = sand.u32 %s629, 1
          %s3019 = scalar_lea.sflag [#allocation4], %s3018
          %s3020 = sand.u32 %s629, 1
          %s3021 = scalar_lea.vmem [#allocation7], %s3020
          %3022 = dma.done %s3019, 16
        $region148: #{tpu_custom_call.1} parent=143 // pred_fallthru
          _
      $region144: #{tpu_custom_call.1} parent=5 // pred_fallthru
        _
    $region6: #{tpu_custom_call.1} parent=1 // loop_footer
      %s42 = sadd.s32 1, %s38
    $region7: #{tpu_custom_call.1} parent=1 // loop_footer_branch
      %37 = sbr.rel target = $region3
    $region8: #{tpu_custom_call.1} parent=1 // loop_exit
      _
    %3023 = vsyncpa [#allocation3], 1
    %s3024 = scalar_lea.sflag [#allocation3], 1
    %3025 = vsyncpa %s3024, 1
    %3026 = vsyncpa [#allocation6], 1
    %3027 = vsyncpa [#allocation4], 1
    %s3028 = scalar_lea.sflag [#allocation4], 1
    %3029 = vsyncpa %s3028, 1

</llo_original>
